<compile_context>
chip_gen: v5e
topology: v5e:2x2
jax: 0.10.0
libtpu: 0.0.40
codegen_flags: <defaults>
</compile_context>

<pallas_src>
import functools

import jax
import jax.numpy as jnp
from jax.experimental import pallas as pl
from jax.experimental.pallas import tpu as pltpu


def _fused_conv_relu_kernel(p1_ref, w1_ref, b1_ref, w2_ref, b2_ref, o_ref,
                            y_scr, p2_scr, *, OH1, OW1, OH2, OW2, KH, KW, C1P):
    # p1_ref: (1, OH1*OW1, K1P)   im2col patches of the input image (conv1 lhs)
    # w1_ref: (K1P, C1P)          conv1 weights, zero-padded
    # b1_ref: (1, C1P)            conv1 bias, zero-padded
    # w2_ref: (KH*KW*C1P, C2P)    conv2 weights, zero-padded (row order kh,kw,cin)
    # b2_ref: (1, C2P)            conv2 bias, zero-padded
    # o_ref : (1, OH2*OW2, C2P)   flat lane-dense output slab
    # y_scr : VMEM (OH1, OW1, C1P)       relu(conv1) intermediate
    # p2_scr: VMEM (OH2*OW2, KH*KW*C1P)  im2col patch matrix for conv2

    # ---- conv1 + bias + ReLU: one MXU matmul (M=OH1*OW1, K=K1P, N=C1P) ----
    y = jnp.dot(p1_ref[0], w1_ref[...], preferred_element_type=jnp.float32)
    y = jnp.maximum(y + b1_ref[...], 0.0)
    y_scr[...] = y.reshape(OH1, OW1, C1P)

    # ---- build conv2 im2col patch matrix in VMEM ----
    # Each tap is a full 128-lane tile, so writes land at aligned lane offsets.
    for kh in range(KH):
        for kw in range(KW):
            t = kh * KW + kw
            win = y_scr[kh:kh + OH2, kw:kw + OW2, :]            # (OH2, OW2, C1P)
            p2_scr[:, t * C1P:(t + 1) * C1P] = win.reshape(OH2 * OW2, C1P)

    # ---- conv2 + bias + ReLU: one MXU matmul (M=OH2*OW2, K=KH*KW*C1P, N=C2P) ----
    z = jnp.dot(p2_scr[...], w2_ref[...], preferred_element_type=jnp.float32)
    z = jnp.maximum(z + b2_ref[...], 0.0)
    o_ref[0] = z


def _im2col_input(x_nhwc, KH, KW):
    """x: (N, H, W, Cin) -> (N, OH*OW, KH*KW*Cin), row order (kh, kw, cin)."""
    N, H, W, Cin = x_nhwc.shape
    OH, OW = H - KH + 1, W - KW + 1
    cols = [x_nhwc[:, kh:kh + OH, kw:kw + OW, :]
            for kh in range(KH) for kw in range(KW)]
    p = jnp.concatenate(cols, axis=-1)                  # (N, OH, OW, KH*KW*Cin)
    return p.reshape(N, OH * OW, KH * KW * Cin)


def model_forward(x_nchw, params):
    """PyTorch-equivalent forward. x_nchw: (N, 1, H, W) f32 -> (N, 64, H-8, W-8)."""
    w1, b1, w2, b2 = params
    N, Cin, H, W = x_nchw.shape
    KH, KW, _, C1 = w1.shape
    _, _, _, C2 = w2.shape
    OH1, OW1 = H - KH + 1, W - KW + 1
    OH2, OW2 = OH1 - KH + 1, OW1 - KW + 1
    M1, M2 = OH1 * OW1, OH2 * OW2

    C1P = 128                              # pad channels to a full lane width
    C2P = 128
    K1 = KH * KW * Cin
    K1P = ((K1 + 7) // 8) * 8              # sublane-friendly contraction dim
    K2P = KH * KW * C1P

    # ---- layout plumbing (zero padding + im2col of the raw input) ----
    x_nhwc = jnp.transpose(x_nchw, (0, 2, 3, 1))
    p1 = _im2col_input(x_nhwc, KH, KW)                                 # (N, M1, K1)
    p1 = jnp.pad(p1, ((0, 0), (0, 0), (0, K1P - K1)))                  # (N, M1, K1P)

    w1p = jnp.zeros((K1P, C1P), jnp.float32).at[:K1, :C1].set(w1.reshape(K1, C1))
    b1p = jnp.zeros((1, C1P), jnp.float32).at[0, :C1].set(b1)
    w2p = (jnp.zeros((KH, KW, C1P, C2P), jnp.float32)
           .at[:, :, :C1, :C2].set(w2)
           .reshape(K2P, C2P))
    b2p = jnp.zeros((1, C2P), jnp.float32).at[0, :C2].set(b2)

    kernel = functools.partial(
        _fused_conv_relu_kernel,
        OH1=OH1, OW1=OW1, OH2=OH2, OW2=OW2, KH=KH, KW=KW, C1P=C1P)

    out_flat = pl.pallas_call(
        kernel,
        out_shape=jax.ShapeDtypeStruct((N, M2, C2P), jnp.float32),
        grid=(N,),
        in_specs=[
            pl.BlockSpec((1, M1, K1P), lambda n: (n, 0, 0)),
            pl.BlockSpec((K1P, C1P), lambda n: (0, 0)),
            pl.BlockSpec((1, C1P), lambda n: (0, 0)),
            pl.BlockSpec((K2P, C2P), lambda n: (0, 0)),
            pl.BlockSpec((1, C2P), lambda n: (0, 0)),
        ],
        out_specs=pl.BlockSpec((1, M2, C2P), lambda n: (n, 0, 0)),
        scratch_shapes=[
            pltpu.VMEM((OH1, OW1, C1P), jnp.float32),   # relu(conv1) intermediate
            pltpu.VMEM((M2, K2P), jnp.float32),          # conv2 im2col patches
        ],
        compiler_params=pltpu.CompilerParams(dimension_semantics=("parallel",)),
    )(p1, w1p, b1p, w2p, b2p)

    # Strip channel padding; flat->spatial reshape and NHWC->NCHW are metadata only.
    out = out_flat[:, :, :C2].reshape(N, OH2, OW2, C2)
    return jnp.transpose(out, (0, 3, 1, 2))


def init_params():
    # Deterministic init mimicking PyTorch's default uniform(-1/sqrt(fan_in), ...).
    key = jax.random.PRNGKey(0)
    k1, k2, k3, k4 = jax.random.split(key, 4)

    def uconv(k, kh, kw, cin, cout):
        bound = 1.0 / jnp.sqrt(cin * kh * kw)
        return jax.random.uniform(k, (kh, kw, cin, cout), jnp.float32, -bound, bound)

    w1 = uconv(k1, 5, 5, 1, 20)
    b1 = jax.random.uniform(k2, (20,), jnp.float32, -1.0 / jnp.sqrt(25.0), 1.0 / jnp.sqrt(25.0))
    w2 = uconv(k3, 5, 5, 20, 64)
    b2 = jax.random.uniform(k4, (64,), jnp.float32,
                            -1.0 / jnp.sqrt(20.0 * 25.0), 1.0 / jnp.sqrt(20.0 * 25.0))
    return w1, b1, w2, b2


def _reference_forward(x_nchw, params):
    # Pure-JAX reference (lax conv) used only to sanity-check the kernel.
    w1, b1, w2, b2 = params
    dn = jax.lax.conv_dimension_numbers(x_nchw.shape, (5, 5, 1, 20), ("NCHW", "HWIO", "NCHW"))
    y = jax.lax.conv_general_dilated(x_nchw, w1, (1, 1), "VALID", dimension_numbers=dn)
    y = jax.nn.relu(y + b1[None, :, None, None])
    dn2 = jax.lax.conv_dimension_numbers(y.shape, (5, 5, 20, 64), ("NCHW", "HWIO", "NCHW"))
    z = jax.lax.conv_general_dilated(y, w2, (1, 1), "VALID", dimension_numbers=dn2)
    return jax.nn.relu(z + b2[None, :, None, None])


if __name__ == "__main__":
    params = init_params()
    x = jax.random.normal(jax.random.PRNGKey(0), (2, 1, 16, 16), jnp.float32)  # NCHW

    fwd = jax.jit(model_forward)
    out = jax.block_until_ready(fwd(x, params))
    assert out.shape == (2, 64, 8, 8), out.shape

    ref = jax.block_until_ready(_reference_forward(x, params))
    assert jnp.allclose(out, ref, atol=1e-4, rtol=1e-4), float(jnp.max(jnp.abs(out - ref)))

    print("KERNEL_OK")
</pallas_src>

<mosaic_0001>
module attributes {stable_mosaic.version = 11 : i64} {
  func.func @_fused_conv_relu_kernel(%arg0: i32, %arg1: memref<1x144x32xf32, #tpu.memory_space<vmem>>, %arg2: memref<32x128xf32, #tpu.memory_space<vmem>>, %arg3: memref<1x128xf32, #tpu.memory_space<vmem>>, %arg4: memref<3200x128xf32, #tpu.memory_space<vmem>>, %arg5: memref<1x128xf32, #tpu.memory_space<vmem>>, %arg6: memref<1x64x128xf32, #tpu.memory_space<vmem>>, %arg7: memref<12x12x128xf32, #tpu.memory_space<vmem>>, %arg8: memref<64x3200xf32, #tpu.memory_space<vmem>>) attributes {dimension_semantics = [#tpu.dimension_semantics<parallel>], iteration_bounds = array<i64: 2>, scalar_prefetch = 0 : i64, scratch_operands = 2 : i64, tpu.core_type = #tpu.core_type<tc>, window_params = [{transform_indices = @transform_0, window_bounds = array<i64: 1, 144, 32>}, {pipeline_mode = #tpu.pipeline_mode<synchronous>, transform_indices = @transform_1, window_bounds = array<i64: 32, 128>}, {pipeline_mode = #tpu.pipeline_mode<synchronous>, transform_indices = @transform_2, window_bounds = array<i64: 1, 128>}, {pipeline_mode = #tpu.pipeline_mode<synchronous>, transform_indices = @transform_3, window_bounds = array<i64: 3200, 128>}, {pipeline_mode = #tpu.pipeline_mode<synchronous>, transform_indices = @transform_4, window_bounds = array<i64: 1, 128>}, {transform_indices = @transform_5, window_bounds = array<i64: 1, 64, 128>}]} {
    %c0 = arith.constant 0 : index
    %c0_0 = arith.constant 0 : index
    %c0_1 = arith.constant 0 : index
    %0 = vector.load %arg1[%c0, %c0_0, %c0_1] : memref<1x144x32xf32, #tpu.memory_space<vmem>>, vector<1x144x32xf32>
    %1 = vector.shape_cast %0 : vector<1x144x32xf32> to vector<144x32xf32>
    %c0_2 = arith.constant 0 : index
    %c0_3 = arith.constant 0 : index
    %2 = vector.load %arg2[%c0_2, %c0_3] : memref<32x128xf32, #tpu.memory_space<vmem>>, vector<32x128xf32>
    %cst = arith.constant dense<0.000000e+00> : vector<144x128xf32>
    %3 = tpu.matmul %1, %2, %cst {dimension_numbers = #tpu.dot_dimension_numbers<[1], [0], [0], [1], [0, 0, 1, 1], [], []>} : vector<144x32xf32>, vector<32x128xf32>, vector<144x128xf32> -> vector<144x128xf32>
    %c0_4 = arith.constant 0 : index
    %c0_5 = arith.constant 0 : index
    %4 = vector.load %arg3[%c0_4, %c0_5] : memref<1x128xf32, #tpu.memory_space<vmem>>, vector<1x128xf32>
    %5 = vector.broadcast %4 : vector<1x128xf32> to vector<144x128xf32>
    %6 = arith.addf %3, %5 : vector<144x128xf32>
    %cst_6 = arith.constant 0.000000e+00 : f32
    %7 = vector.broadcast %cst_6 : f32 to vector<144x128xf32>
    %8 = arith.maximumf %6, %7 : vector<144x128xf32>
    %9 = vector.shape_cast %8 : vector<144x128xf32> to vector<12x12x128xf32>
    %c0_7 = arith.constant 0 : index
    %c0_8 = arith.constant 0 : index
    %c0_9 = arith.constant 0 : index
    %10 = vector.load %arg7[%c0_7, %c0_8, %c0_9] : memref<12x12x128xf32, #tpu.memory_space<vmem>>, vector<12x12x128xf32>
    tpu.vector_store %arg7[%c0_7, %c0_8, %c0_9], %9 {strides = array<i32>} : memref<12x12x128xf32, #tpu.memory_space<vmem>>, vector<12x12x128xf32>,
    %c0_10 = arith.constant 0 : index
    %c0_11 = arith.constant 0 : index
    %c0_12 = arith.constant 0 : index
    %11 = vector.load %arg7[%c0_10, %c0_11, %c0_12] : memref<12x12x128xf32, #tpu.memory_space<vmem>>, vector<8x8x128xf32>
    %12 = vector.shape_cast %11 : vector<8x8x128xf32> to vector<64x128xf32>
    %c0_13 = arith.constant 0 : index
    %c0_14 = arith.constant 0 : index
    %13 = vector.load %arg8[%c0_13, %c0_14] : memref<64x3200xf32, #tpu.memory_space<vmem>>, vector<64x128xf32>
    tpu.vector_store %arg8[%c0_13, %c0_14], %12 {strides = array<i32>} : memref<64x3200xf32, #tpu.memory_space<vmem>>, vector<64x128xf32>,
    %c0_15 = arith.constant 0 : index
    %c1 = arith.constant 1 : index
    %c0_16 = arith.constant 0 : index
    %14 = vector.load %arg7[%c0_15, %c1, %c0_16] : memref<12x12x128xf32, #tpu.memory_space<vmem>>, vector<8x8x128xf32>
    %15 = vector.shape_cast %14 : vector<8x8x128xf32> to vector<64x128xf32>
    %c0_17 = arith.constant 0 : index
    %c128 = arith.constant 128 : index
    %16 = vector.load %arg8[%c0_17, %c128] : memref<64x3200xf32, #tpu.memory_space<vmem>>, vector<64x128xf32>
    tpu.vector_store %arg8[%c0_17, %c128], %15 {strides = array<i32>} : memref<64x3200xf32, #tpu.memory_space<vmem>>, vector<64x128xf32>,
    %c0_18 = arith.constant 0 : index
    %c2 = arith.constant 2 : index
    %c0_19 = arith.constant 0 : index
    %17 = vector.load %arg7[%c0_18, %c2, %c0_19] : memref<12x12x128xf32, #tpu.memory_space<vmem>>, vector<8x8x128xf32>
    %18 = vector.shape_cast %17 : vector<8x8x128xf32> to vector<64x128xf32>
    %c0_20 = arith.constant 0 : index
    %c256 = arith.constant 256 : index
    %19 = vector.load %arg8[%c0_20, %c256] : memref<64x3200xf32, #tpu.memory_space<vmem>>, vector<64x128xf32>
    tpu.vector_store %arg8[%c0_20, %c256], %18 {strides = array<i32>} : memref<64x3200xf32, #tpu.memory_space<vmem>>, vector<64x128xf32>,
    %c0_21 = arith.constant 0 : index
    %c3 = arith.constant 3 : index
    %c0_22 = arith.constant 0 : index
    %20 = vector.load %arg7[%c0_21, %c3, %c0_22] : memref<12x12x128xf32, #tpu.memory_space<vmem>>, vector<8x8x128xf32>
    %21 = vector.shape_cast %20 : vector<8x8x128xf32> to vector<64x128xf32>
    %c0_23 = arith.constant 0 : index
    %c384 = arith.constant 384 : index
    %22 = vector.load %arg8[%c0_23, %c384] : memref<64x3200xf32, #tpu.memory_space<vmem>>, vector<64x128xf32>
    tpu.vector_store %arg8[%c0_23, %c384], %21 {strides = array<i32>} : memref<64x3200xf32, #tpu.memory_space<vmem>>, vector<64x128xf32>,
    %c0_24 = arith.constant 0 : index
    %c4 = arith.constant 4 : index
    %c0_25 = arith.constant 0 : index
    %23 = vector.load %arg7[%c0_24, %c4, %c0_25] : memref<12x12x128xf32, #tpu.memory_space<vmem>>, vector<8x8x128xf32>
    %24 = vector.shape_cast %23 : vector<8x8x128xf32> to vector<64x128xf32>
    %c0_26 = arith.constant 0 : index
    %c512 = arith.constant 512 : index
    %25 = vector.load %arg8[%c0_26, %c512] : memref<64x3200xf32, #tpu.memory_space<vmem>>, vector<64x128xf32>
    tpu.vector_store %arg8[%c0_26, %c512], %24 {strides = array<i32>} : memref<64x3200xf32, #tpu.memory_space<vmem>>, vector<64x128xf32>,
    %c1_27 = arith.constant 1 : index
    %c0_28 = arith.constant 0 : index
    %c0_29 = arith.constant 0 : index
    %26 = vector.load %arg7[%c1_27, %c0_28, %c0_29] : memref<12x12x128xf32, #tpu.memory_space<vmem>>, vector<8x8x128xf32>
    %27 = vector.shape_cast %26 : vector<8x8x128xf32> to vector<64x128xf32>
    %c0_30 = arith.constant 0 : index
    %c640 = arith.constant 640 : index
    %28 = vector.load %arg8[%c0_30, %c640] : memref<64x3200xf32, #tpu.memory_space<vmem>>, vector<64x128xf32>
    tpu.vector_store %arg8[%c0_30, %c640], %27 {strides = array<i32>} : memref<64x3200xf32, #tpu.memory_space<vmem>>, vector<64x128xf32>,
    %c1_31 = arith.constant 1 : index
    %c1_32 = arith.constant 1 : index
    %c0_33 = arith.constant 0 : index
    %29 = vector.load %arg7[%c1_31, %c1_32, %c0_33] : memref<12x12x128xf32, #tpu.memory_space<vmem>>, vector<8x8x128xf32>
    %30 = vector.shape_cast %29 : vector<8x8x128xf32> to vector<64x128xf32>
    %c0_34 = arith.constant 0 : index
    %c768 = arith.constant 768 : index
    %31 = vector.load %arg8[%c0_34, %c768] : memref<64x3200xf32, #tpu.memory_space<vmem>>, vector<64x128xf32>
    tpu.vector_store %arg8[%c0_34, %c768], %30 {strides = array<i32>} : memref<64x3200xf32, #tpu.memory_space<vmem>>, vector<64x128xf32>,
    %c1_35 = arith.constant 1 : index
    %c2_36 = arith.constant 2 : index
    %c0_37 = arith.constant 0 : index
    %32 = vector.load %arg7[%c1_35, %c2_36, %c0_37] : memref<12x12x128xf32, #tpu.memory_space<vmem>>, vector<8x8x128xf32>
    %33 = vector.shape_cast %32 : vector<8x8x128xf32> to vector<64x128xf32>
    %c0_38 = arith.constant 0 : index
    %c896 = arith.constant 896 : index
    %34 = vector.load %arg8[%c0_38, %c896] : memref<64x3200xf32, #tpu.memory_space<vmem>>, vector<64x128xf32>
    tpu.vector_store %arg8[%c0_38, %c896], %33 {strides = array<i32>} : memref<64x3200xf32, #tpu.memory_space<vmem>>, vector<64x128xf32>,
    %c1_39 = arith.constant 1 : index
    %c3_40 = arith.constant 3 : index
    %c0_41 = arith.constant 0 : index
    %35 = vector.load %arg7[%c1_39, %c3_40, %c0_41] : memref<12x12x128xf32, #tpu.memory_space<vmem>>, vector<8x8x128xf32>
    %36 = vector.shape_cast %35 : vector<8x8x128xf32> to vector<64x128xf32>
    %c0_42 = arith.constant 0 : index
    %c1024 = arith.constant 1024 : index
    %37 = vector.load %arg8[%c0_42, %c1024] : memref<64x3200xf32, #tpu.memory_space<vmem>>, vector<64x128xf32>
    tpu.vector_store %arg8[%c0_42, %c1024], %36 {strides = array<i32>} : memref<64x3200xf32, #tpu.memory_space<vmem>>, vector<64x128xf32>,
    %c1_43 = arith.constant 1 : index
    %c4_44 = arith.constant 4 : index
    %c0_45 = arith.constant 0 : index
    %38 = vector.load %arg7[%c1_43, %c4_44, %c0_45] : memref<12x12x128xf32, #tpu.memory_space<vmem>>, vector<8x8x128xf32>
    %39 = vector.shape_cast %38 : vector<8x8x128xf32> to vector<64x128xf32>
    %c0_46 = arith.constant 0 : index
    %c1152 = arith.constant 1152 : index
    %40 = vector.load %arg8[%c0_46, %c1152] : memref<64x3200xf32, #tpu.memory_space<vmem>>, vector<64x128xf32>
    tpu.vector_store %arg8[%c0_46, %c1152], %39 {strides = array<i32>} : memref<64x3200xf32, #tpu.memory_space<vmem>>, vector<64x128xf32>,
    %c2_47 = arith.constant 2 : index
    %c0_48 = arith.constant 0 : index
    %c0_49 = arith.constant 0 : index
    %41 = vector.load %arg7[%c2_47, %c0_48, %c0_49] : memref<12x12x128xf32, #tpu.memory_space<vmem>>, vector<8x8x128xf32>
    %42 = vector.shape_cast %41 : vector<8x8x128xf32> to vector<64x128xf32>
    %c0_50 = arith.constant 0 : index
    %c1280 = arith.constant 1280 : index
    %43 = vector.load %arg8[%c0_50, %c1280] : memref<64x3200xf32, #tpu.memory_space<vmem>>, vector<64x128xf32>
    tpu.vector_store %arg8[%c0_50, %c1280], %42 {strides = array<i32>} : memref<64x3200xf32, #tpu.memory_space<vmem>>, vector<64x128xf32>,
    %c2_51 = arith.constant 2 : index
    %c1_52 = arith.constant 1 : index
    %c0_53 = arith.constant 0 : index
    %44 = vector.load %arg7[%c2_51, %c1_52, %c0_53] : memref<12x12x128xf32, #tpu.memory_space<vmem>>, vector<8x8x128xf32>
    %45 = vector.shape_cast %44 : vector<8x8x128xf32> to vector<64x128xf32>
    %c0_54 = arith.constant 0 : index
    %c1408 = arith.constant 1408 : index
    %46 = vector.load %arg8[%c0_54, %c1408] : memref<64x3200xf32, #tpu.memory_space<vmem>>, vector<64x128xf32>
    tpu.vector_store %arg8[%c0_54, %c1408], %45 {strides = array<i32>} : memref<64x3200xf32, #tpu.memory_space<vmem>>, vector<64x128xf32>,
    %c2_55 = arith.constant 2 : index
    %c2_56 = arith.constant 2 : index
    %c0_57 = arith.constant 0 : index
    %47 = vector.load %arg7[%c2_55, %c2_56, %c0_57] : memref<12x12x128xf32, #tpu.memory_space<vmem>>, vector<8x8x128xf32>
    %48 = vector.shape_cast %47 : vector<8x8x128xf32> to vector<64x128xf32>
    %c0_58 = arith.constant 0 : index
    %c1536 = arith.constant 1536 : index
    %49 = vector.load %arg8[%c0_58, %c1536] : memref<64x3200xf32, #tpu.memory_space<vmem>>, vector<64x128xf32>
    tpu.vector_store %arg8[%c0_58, %c1536], %48 {strides = array<i32>} : memref<64x3200xf32, #tpu.memory_space<vmem>>, vector<64x128xf32>,
    %c2_59 = arith.constant 2 : index
    %c3_60 = arith.constant 3 : index
    %c0_61 = arith.constant 0 : index
    %50 = vector.load %arg7[%c2_59, %c3_60, %c0_61] : memref<12x12x128xf32, #tpu.memory_space<vmem>>, vector<8x8x128xf32>
    %51 = vector.shape_cast %50 : vector<8x8x128xf32> to vector<64x128xf32>
    %c0_62 = arith.constant 0 : index
    %c1664 = arith.constant 1664 : index
    %52 = vector.load %arg8[%c0_62, %c1664] : memref<64x3200xf32, #tpu.memory_space<vmem>>, vector<64x128xf32>
    tpu.vector_store %arg8[%c0_62, %c1664], %51 {strides = array<i32>} : memref<64x3200xf32, #tpu.memory_space<vmem>>, vector<64x128xf32>,
    %c2_63 = arith.constant 2 : index
    %c4_64 = arith.constant 4 : index
    %c0_65 = arith.constant 0 : index
    %53 = vector.load %arg7[%c2_63, %c4_64, %c0_65] : memref<12x12x128xf32, #tpu.memory_space<vmem>>, vector<8x8x128xf32>
    %54 = vector.shape_cast %53 : vector<8x8x128xf32> to vector<64x128xf32>
    %c0_66 = arith.constant 0 : index
    %c1792 = arith.constant 1792 : index
    %55 = vector.load %arg8[%c0_66, %c1792] : memref<64x3200xf32, #tpu.memory_space<vmem>>, vector<64x128xf32>
    tpu.vector_store %arg8[%c0_66, %c1792], %54 {strides = array<i32>} : memref<64x3200xf32, #tpu.memory_space<vmem>>, vector<64x128xf32>,
    %c3_67 = arith.constant 3 : index
    %c0_68 = arith.constant 0 : index
    %c0_69 = arith.constant 0 : index
    %56 = vector.load %arg7[%c3_67, %c0_68, %c0_69] : memref<12x12x128xf32, #tpu.memory_space<vmem>>, vector<8x8x128xf32>
    %57 = vector.shape_cast %56 : vector<8x8x128xf32> to vector<64x128xf32>
    %c0_70 = arith.constant 0 : index
    %c1920 = arith.constant 1920 : index
    %58 = vector.load %arg8[%c0_70, %c1920] : memref<64x3200xf32, #tpu.memory_space<vmem>>, vector<64x128xf32>
    tpu.vector_store %arg8[%c0_70, %c1920], %57 {strides = array<i32>} : memref<64x3200xf32, #tpu.memory_space<vmem>>, vector<64x128xf32>,
    %c3_71 = arith.constant 3 : index
    %c1_72 = arith.constant 1 : index
    %c0_73 = arith.constant 0 : index
    %59 = vector.load %arg7[%c3_71, %c1_72, %c0_73] : memref<12x12x128xf32, #tpu.memory_space<vmem>>, vector<8x8x128xf32>
    %60 = vector.shape_cast %59 : vector<8x8x128xf32> to vector<64x128xf32>
    %c0_74 = arith.constant 0 : index
    %c2048 = arith.constant 2048 : index
    %61 = vector.load %arg8[%c0_74, %c2048] : memref<64x3200xf32, #tpu.memory_space<vmem>>, vector<64x128xf32>
    tpu.vector_store %arg8[%c0_74, %c2048], %60 {strides = array<i32>} : memref<64x3200xf32, #tpu.memory_space<vmem>>, vector<64x128xf32>,
    %c3_75 = arith.constant 3 : index
    %c2_76 = arith.constant 2 : index
    %c0_77 = arith.constant 0 : index
    %62 = vector.load %arg7[%c3_75, %c2_76, %c0_77] : memref<12x12x128xf32, #tpu.memory_space<vmem>>, vector<8x8x128xf32>
    %63 = vector.shape_cast %62 : vector<8x8x128xf32> to vector<64x128xf32>
    %c0_78 = arith.constant 0 : index
    %c2176 = arith.constant 2176 : index
    %64 = vector.load %arg8[%c0_78, %c2176] : memref<64x3200xf32, #tpu.memory_space<vmem>>, vector<64x128xf32>
    tpu.vector_store %arg8[%c0_78, %c2176], %63 {strides = array<i32>} : memref<64x3200xf32, #tpu.memory_space<vmem>>, vector<64x128xf32>,
    %c3_79 = arith.constant 3 : index
    %c3_80 = arith.constant 3 : index
    %c0_81 = arith.constant 0 : index
    %65 = vector.load %arg7[%c3_79, %c3_80, %c0_81] : memref<12x12x128xf32, #tpu.memory_space<vmem>>, vector<8x8x128xf32>
    %66 = vector.shape_cast %65 : vector<8x8x128xf32> to vector<64x128xf32>
    %c0_82 = arith.constant 0 : index
    %c2304 = arith.constant 2304 : index
    %67 = vector.load %arg8[%c0_82, %c2304] : memref<64x3200xf32, #tpu.memory_space<vmem>>, vector<64x128xf32>
    tpu.vector_store %arg8[%c0_82, %c2304], %66 {strides = array<i32>} : memref<64x3200xf32, #tpu.memory_space<vmem>>, vector<64x128xf32>,
    %c3_83 = arith.constant 3 : index
    %c4_84 = arith.constant 4 : index
    %c0_85 = arith.constant 0 : index
    %68 = vector.load %arg7[%c3_83, %c4_84, %c0_85] : memref<12x12x128xf32, #tpu.memory_space<vmem>>, vector<8x8x128xf32>
    %69 = vector.shape_cast %68 : vector<8x8x128xf32> to vector<64x128xf32>
    %c0_86 = arith.constant 0 : index
    %c2432 = arith.constant 2432 : index
    %70 = vector.load %arg8[%c0_86, %c2432] : memref<64x3200xf32, #tpu.memory_space<vmem>>, vector<64x128xf32>
    tpu.vector_store %arg8[%c0_86, %c2432], %69 {strides = array<i32>} : memref<64x3200xf32, #tpu.memory_space<vmem>>, vector<64x128xf32>,
    %c4_87 = arith.constant 4 : index
    %c0_88 = arith.constant 0 : index
    %c0_89 = arith.constant 0 : index
    %71 = vector.load %arg7[%c4_87, %c0_88, %c0_89] : memref<12x12x128xf32, #tpu.memory_space<vmem>>, vector<8x8x128xf32>
    %72 = vector.shape_cast %71 : vector<8x8x128xf32> to vector<64x128xf32>
    %c0_90 = arith.constant 0 : index
    %c2560 = arith.constant 2560 : index
    %73 = vector.load %arg8[%c0_90, %c2560] : memref<64x3200xf32, #tpu.memory_space<vmem>>, vector<64x128xf32>
    tpu.vector_store %arg8[%c0_90, %c2560], %72 {strides = array<i32>} : memref<64x3200xf32, #tpu.memory_space<vmem>>, vector<64x128xf32>,
    %c4_91 = arith.constant 4 : index
    %c1_92 = arith.constant 1 : index
    %c0_93 = arith.constant 0 : index
    %74 = vector.load %arg7[%c4_91, %c1_92, %c0_93] : memref<12x12x128xf32, #tpu.memory_space<vmem>>, vector<8x8x128xf32>
    %75 = vector.shape_cast %74 : vector<8x8x128xf32> to vector<64x128xf32>
    %c0_94 = arith.constant 0 : index
    %c2688 = arith.constant 2688 : index
    %76 = vector.load %arg8[%c0_94, %c2688] : memref<64x3200xf32, #tpu.memory_space<vmem>>, vector<64x128xf32>
    tpu.vector_store %arg8[%c0_94, %c2688], %75 {strides = array<i32>} : memref<64x3200xf32, #tpu.memory_space<vmem>>, vector<64x128xf32>,
    %c4_95 = arith.constant 4 : index
    %c2_96 = arith.constant 2 : index
    %c0_97 = arith.constant 0 : index
    %77 = vector.load %arg7[%c4_95, %c2_96, %c0_97] : memref<12x12x128xf32, #tpu.memory_space<vmem>>, vector<8x8x128xf32>
    %78 = vector.shape_cast %77 : vector<8x8x128xf32> to vector<64x128xf32>
    %c0_98 = arith.constant 0 : index
    %c2816 = arith.constant 2816 : index
    %79 = vector.load %arg8[%c0_98, %c2816] : memref<64x3200xf32, #tpu.memory_space<vmem>>, vector<64x128xf32>
    tpu.vector_store %arg8[%c0_98, %c2816], %78 {strides = array<i32>} : memref<64x3200xf32, #tpu.memory_space<vmem>>, vector<64x128xf32>,
    %c4_99 = arith.constant 4 : index
    %c3_100 = arith.constant 3 : index
    %c0_101 = arith.constant 0 : index
    %80 = vector.load %arg7[%c4_99, %c3_100, %c0_101] : memref<12x12x128xf32, #tpu.memory_space<vmem>>, vector<8x8x128xf32>
    %81 = vector.shape_cast %80 : vector<8x8x128xf32> to vector<64x128xf32>
    %c0_102 = arith.constant 0 : index
    %c2944 = arith.constant 2944 : index
    %82 = vector.load %arg8[%c0_102, %c2944] : memref<64x3200xf32, #tpu.memory_space<vmem>>, vector<64x128xf32>
    tpu.vector_store %arg8[%c0_102, %c2944], %81 {strides = array<i32>} : memref<64x3200xf32, #tpu.memory_space<vmem>>, vector<64x128xf32>,
    %c4_103 = arith.constant 4 : index
    %c4_104 = arith.constant 4 : index
    %c0_105 = arith.constant 0 : index
    %83 = vector.load %arg7[%c4_103, %c4_104, %c0_105] : memref<12x12x128xf32, #tpu.memory_space<vmem>>, vector<8x8x128xf32>
    %84 = vector.shape_cast %83 : vector<8x8x128xf32> to vector<64x128xf32>
    %c0_106 = arith.constant 0 : index
    %c3072 = arith.constant 3072 : index
    %85 = vector.load %arg8[%c0_106, %c3072] : memref<64x3200xf32, #tpu.memory_space<vmem>>, vector<64x128xf32>
    tpu.vector_store %arg8[%c0_106, %c3072], %84 {strides = array<i32>} : memref<64x3200xf32, #tpu.memory_space<vmem>>, vector<64x128xf32>,
    %c0_107 = arith.constant 0 : index
    %c0_108 = arith.constant 0 : index
    %86 = vector.load %arg8[%c0_107, %c0_108] : memref<64x3200xf32, #tpu.memory_space<vmem>>, vector<64x3200xf32>
    %c0_109 = arith.constant 0 : index
    %c0_110 = arith.constant 0 : index
    %87 = vector.load %arg4[%c0_109, %c0_110] : memref<3200x128xf32, #tpu.memory_space<vmem>>, vector<3200x128xf32>
    %cst_111 = arith.constant dense<0.000000e+00> : vector<64x128xf32>
    %88 = tpu.matmul %86, %87, %cst_111 {dimension_numbers = #tpu.dot_dimension_numbers<[1], [0], [0], [1], [0, 0, 1, 1], [], []>} : vector<64x3200xf32>, vector<3200x128xf32>, vector<64x128xf32> -> vector<64x128xf32>
    %c0_112 = arith.constant 0 : index
    %c0_113 = arith.constant 0 : index
    %89 = vector.load %arg5[%c0_112, %c0_113] : memref<1x128xf32, #tpu.memory_space<vmem>>, vector<1x128xf32>
    %90 = vector.broadcast %89 : vector<1x128xf32> to vector<64x128xf32>
    %91 = arith.addf %88, %90 : vector<64x128xf32>
    %cst_114 = arith.constant 0.000000e+00 : f32
    %92 = vector.broadcast %cst_114 : f32 to vector<64x128xf32>
    %93 = arith.maximumf %91, %92 : vector<64x128xf32>
    %c0_115 = arith.constant 0 : index
    %c0_116 = arith.constant 0 : index
    %c0_117 = arith.constant 0 : index
    %94 = vector.load %arg6[%c0_115, %c0_116, %c0_117] : memref<1x64x128xf32, #tpu.memory_space<vmem>>, vector<1x64x128xf32>
    %95 = vector.shape_cast %94 : vector<1x64x128xf32> to vector<64x128xf32>
    %96 = vector.shape_cast %93 : vector<64x128xf32> to vector<1x64x128xf32>
    tpu.vector_store %arg6[%c0_115, %c0_116, %c0_117], %96 {strides = array<i32>} : memref<1x64x128xf32, #tpu.memory_space<vmem>>, vector<1x64x128xf32>,
    return
  }
  func.func @transform_0(%arg0: i32) -> (i32, i32, i32) {
    %c0_i32 = arith.constant 0 : i32
    %c0_i32_0 = arith.constant 0 : i32
    %c0_i32_1 = arith.constant 0 : i32
    return %arg0, %c0_i32, %c0_i32_0 : i32, i32, i32
  }
  func.func @transform_1(%arg0: i32) -> (i32, i32) {
    %c0_i32 = arith.constant 0 : i32
    %c0_i32_0 = arith.constant 0 : i32
    %c0_i32_1 = arith.constant 0 : i32
    return %c0_i32, %c0_i32_0 : i32, i32
  }
  func.func @transform_2(%arg0: i32) -> (i32, i32) {
    %c0_i32 = arith.constant 0 : i32
    %c0_i32_0 = arith.constant 0 : i32
    %c0_i32_1 = arith.constant 0 : i32
    return %c0_i32, %c0_i32_0 : i32, i32
  }
  func.func @transform_3(%arg0: i32) -> (i32, i32) {
    %c0_i32 = arith.constant 0 : i32
    %c0_i32_0 = arith.constant 0 : i32
    %c0_i32_1 = arith.constant 0 : i32
    return %c0_i32, %c0_i32_0 : i32, i32
  }
  func.func @transform_4(%arg0: i32) -> (i32, i32) {
    %c0_i32 = arith.constant 0 : i32
    %c0_i32_0 = arith.constant 0 : i32
    %c0_i32_1 = arith.constant 0 : i32
    return %c0_i32, %c0_i32_0 : i32, i32
  }
  func.func @transform_5(%arg0: i32) -> (i32, i32, i32) {
    %c0_i32 = arith.constant 0 : i32
    %c0_i32_0 = arith.constant 0 : i32
    %c0_i32_1 = arith.constant 0 : i32
    return %arg0, %c0_i32, %c0_i32_0 : i32, i32, i32
  }
}

</mosaic_0001>

<llo_original>
// kernel: model_forward.1
$region0: #{model_forward.1}
  #allocation0 [shape = 'u32[]', space=smem, size = 0x4, offset = 0x4, fixed_abs, tag = 'smem constant byte address 0x4 - core index']
  #allocation1 [shape = 'u32[72,128]{1,0:T(1,128)}', space=vmem, size = 0x9000, scoped, tag = 'internal scratch']
  #allocation2 [shape = 'f32[12,12,128]{2,1,0:T(8,128)}', space=vmem, size = 0x18000, scoped, tag = 'scratch operand']
  #allocation3 [shape = 'f32[64,3200]{1,0:T(8,128)}', space=vmem, size = 0xc8000, scoped, tag = 'scratch operand']
  %s0 = inlined_call_operand.vmem [shape: f32[2,144,32], index: 0, kind: input, shape index: {}]
  %s1 = inlined_call_operand.vmem [shape: f32[32,128], index: 1, kind: input, shape index: {}]
  %s2 = inlined_call_operand.vmem [shape: f32[1,128], index: 2, kind: input, shape index: {}]
  %s3 = inlined_call_operand.vmem [shape: f32[3200,128], index: 3, kind: input, shape index: {}]
  %s4 = inlined_call_operand.vmem [shape: f32[1,128], index: 4, kind: input, shape index: {}]
  %s5 = inlined_call_operand.vmem [shape: f32[2,64,128], index: 5, kind: output, shape index: {}]
  %s6 = sld [smem:[#allocation0]]
  $region53: #{model_forward.1} parent=0
    _
  %s8 = ssub.s32 1, %s6
  %s9 = scalar_select 0, %s8, %s6
  loop: start=0, step=1, limit=4
  $region2: #{model_forward.1} parent=0 // loop_pre_header
    _
  $region3: #{model_forward.1} parent=0 // loop_header
    %s11 = sphi 0, %s15
    %p12 = scmp.ge.s32.totalorder %s11, 4
    %s21 = sphi 0, %s23
    %s24 = sphi 0, %s21
    %s25 = sphi 0, %s24
    %s41 = sphi 0, %s25
    %s45 = sphi 0, %s45
    %s47 = sphi 0, %s45
    %s48 = sphi 0, %s47
    %s62 = sphi 0, %s48
    %s66 = sphi 0, %s66
    %s68 = sphi 0, %s66
    %s69 = sphi 0, %s68
    %s83 = sphi 0, %s69
    %s87 = sphi 0, %s87
    %s89 = sphi 0, %s87
    %s90 = sphi 0, %s89
    %s104 = sphi 0, %s90
    %s108 = sphi 0, %s108
    %s110 = sphi 0, %s108
    %s111 = sphi 0, %s110
    %s125 = sphi 0, %s111
    %s131 = sphi 0, %s133
    %s134 = sphi 0, %s131
    %s135 = sphi 0, %s134
    %s151 = sphi 0, %s135
  $region4: #{model_forward.1} parent=0 // loop_header_branch
    %14 = sbr.rel (%p12) target = $region8
  $region5: #{model_forward.1} parent=0 // loop_body
    %s16 = ssub.s32 %s11, 1
    %s17 = ssub.s32 %s11, 2
    %s18 = sadd.s32 %s11, 1
    %s19 = ssub.s32 %s11, %s18
    %p20 = scmp.eq.s32.totalorder %s19, 0
    %s22 = sadd.s32 %s21, 1
    %s23 = scalar_select %p20, %s21, %s22
    %p26 = pneg %p20
    %p27 = scmp.eq.s32.totalorder %s11, 1
    %p28 = por %p26, %p27
    %p29 = scmp.ne.s32.totalorder %s21, %s24
    %p30 = scmp.eq.s32.totalorder %s11, 0
    %p31 = por %p29, %p30
    %p32 = scmp.ne.s32.totalorder %s21, %s24
    %p33 = scmp.eq.s32.totalorder %s16, 1
    %p34 = por %p32, %p33
    %p35 = scmp.ne.s32.totalorder %s24, %s25
    %p36 = scmp.eq.s32.totalorder %s16, 0
    %p37 = por %p35, %p36
    %p38 = scmp.ne.s32.totalorder %s24, %s25
    %p39 = scmp.eq.s32.totalorder %s17, 1
    %p40 = por %p38, %p39
    %p42 = scmp.ne.s32.totalorder %s25, %s41
    %p43 = scmp.eq.s32.totalorder %s17, 0
    %p44 = por %p42, %p43
    %s46 = sadd.s32 %s45, 1
    %p49 = scmp.eq.s32.totalorder %s11, 1
    %p50 = scmp.ne.s32.totalorder %s45, %s47
    %p51 = scmp.eq.s32.totalorder %s11, 0
    %p52 = por %p50, %p51
    %p53 = scmp.ne.s32.totalorder %s45, %s47
    %p54 = scmp.eq.s32.totalorder %s16, 1
    %p55 = por %p53, %p54
    %p56 = scmp.ne.s32.totalorder %s47, %s48
    %p57 = scmp.eq.s32.totalorder %s16, 0
    %p58 = por %p56, %p57
    %p59 = scmp.ne.s32.totalorder %s47, %s48
    %p60 = scmp.eq.s32.totalorder %s17, 1
    %p61 = por %p59, %p60
    %p63 = scmp.ne.s32.totalorder %s48, %s62
    %p64 = scmp.eq.s32.totalorder %s17, 0
    %p65 = por %p63, %p64
    %s67 = sadd.s32 %s66, 1
    %p70 = scmp.eq.s32.totalorder %s11, 1
    %p71 = scmp.ne.s32.totalorder %s66, %s68
    %p72 = scmp.eq.s32.totalorder %s11, 0
    %p73 = por %p71, %p72
    %p74 = scmp.ne.s32.totalorder %s66, %s68
    %p75 = scmp.eq.s32.totalorder %s16, 1
    %p76 = por %p74, %p75
    %p77 = scmp.ne.s32.totalorder %s68, %s69
    %p78 = scmp.eq.s32.totalorder %s16, 0
    %p79 = por %p77, %p78
    %p80 = scmp.ne.s32.totalorder %s68, %s69
    %p81 = scmp.eq.s32.totalorder %s17, 1
    %p82 = por %p80, %p81
    %p84 = scmp.ne.s32.totalorder %s69, %s83
    %p85 = scmp.eq.s32.totalorder %s17, 0
    %p86 = por %p84, %p85
    %s88 = sadd.s32 %s87, 1
    %p91 = scmp.eq.s32.totalorder %s11, 1
    %p92 = scmp.ne.s32.totalorder %s87, %s89
    %p93 = scmp.eq.s32.totalorder %s11, 0
    %p94 = por %p92, %p93
    %p95 = scmp.ne.s32.totalorder %s87, %s89
    %p96 = scmp.eq.s32.totalorder %s16, 1
    %p97 = por %p95, %p96
    %p98 = scmp.ne.s32.totalorder %s89, %s90
    %p99 = scmp.eq.s32.totalorder %s16, 0
    %p100 = por %p98, %p99
    %p101 = scmp.ne.s32.totalorder %s89, %s90
    %p102 = scmp.eq.s32.totalorder %s17, 1
    %p103 = por %p101, %p102
    %p105 = scmp.ne.s32.totalorder %s90, %s104
    %p106 = scmp.eq.s32.totalorder %s17, 0
    %p107 = por %p105, %p106
    %s109 = sadd.s32 %s108, 1
    %p112 = scmp.eq.s32.totalorder %s11, 1
    %p113 = scmp.ne.s32.totalorder %s108, %s110
    %p114 = scmp.eq.s32.totalorder %s11, 0
    %p115 = por %p113, %p114
    %p116 = scmp.ne.s32.totalorder %s108, %s110
    %p117 = scmp.eq.s32.totalorder %s16, 1
    %p118 = por %p116, %p117
    %p119 = scmp.ne.s32.totalorder %s110, %s111
    %p120 = scmp.eq.s32.totalorder %s16, 0
    %p121 = por %p119, %p120
    %p122 = scmp.ne.s32.totalorder %s110, %s111
    %p123 = scmp.eq.s32.totalorder %s17, 1
    %p124 = por %p122, %p123
    %p126 = scmp.ne.s32.totalorder %s111, %s125
    %p127 = scmp.eq.s32.totalorder %s17, 0
    %p128 = por %p126, %p127
    %s129 = ssub.s32 %s11, %s18
    %p130 = scmp.eq.s32.totalorder %s129, 0
    %s132 = sadd.s32 %s131, 1
    %s133 = scalar_select %p130, %s131, %s132
    %p136 = pneg %p130
    %p137 = scmp.eq.s32.totalorder %s11, 1
    %p138 = por %p136, %p137
    %p139 = scmp.ne.s32.totalorder %s131, %s134
    %p140 = scmp.eq.s32.totalorder %s11, 0
    %p141 = por %p139, %p140
    %p142 = scmp.ne.s32.totalorder %s131, %s134
    %p143 = scmp.eq.s32.totalorder %s16, 1
    %p144 = por %p142, %p143
    %p145 = scmp.ne.s32.totalorder %s134, %s135
    %p146 = scmp.eq.s32.totalorder %s16, 0
    %p147 = por %p145, %p146
    %p148 = scmp.ne.s32.totalorder %s134, %s135
    %p149 = scmp.eq.s32.totalorder %s17, 1
    %p150 = por %p148, %p149
    %p152 = scmp.ne.s32.totalorder %s135, %s151
    %p153 = scmp.eq.s32.totalorder %s17, 0
    %p154 = por %p152, %p153
    %p155 = scmp.le.s32.totalorder 1, %s11
    %p156 = scmp.lt.s32.totalorder %s11, 3
    %p157 = pnand %p155, %p156
    %p158 = pneg %p157
    // Predicated region
    $region9: #{model_forward.1} parent=5 // pred_check
      _
    $region10: #{model_forward.1} parent=5 // pred_check_branch
      %160 = sbr.rel (%p157) target = $region12
    $region11: #{model_forward.1} parent=5 // pred_region
      %s161 = ssub.s32 %s11, 1
      // Predicated region
      $region13: #{model_forward.1} parent=11 // pred_check
        %p162 = pneg %p58
      $region14: #{model_forward.1} parent=11 // pred_check_branch
        %164 = sbr.rel (%p162) target = $region16
      $region15: #{model_forward.1} parent=11 // pred_region
        _
      $region16: #{model_forward.1} parent=11 // pred_fallthru
        _
      // Predicated region
      $region17: #{model_forward.1} parent=11 // pred_check
        %p165 = pneg %p79
      $region18: #{model_forward.1} parent=11 // pred_check_branch
        %167 = sbr.rel (%p165) target = $region20
      $region19: #{model_forward.1} parent=11 // pred_region
        _
      $region20: #{model_forward.1} parent=11 // pred_fallthru
        _
      // Predicated region
      $region21: #{model_forward.1} parent=11 // pred_check
        %p168 = pneg %p100
      $region22: #{model_forward.1} parent=11 // pred_check_branch
        %170 = sbr.rel (%p168) target = $region24
      $region23: #{model_forward.1} parent=11 // pred_region
        _
      $region24: #{model_forward.1} parent=11 // pred_fallthru
        _
      // Predicated region
      $region25: #{model_forward.1} parent=11 // pred_check
        %p171 = pneg %p121
      $region26: #{model_forward.1} parent=11 // pred_check_branch
        %173 = sbr.rel (%p171) target = $region28
      $region27: #{model_forward.1} parent=11 // pred_region
        _
      $region28: #{model_forward.1} parent=11 // pred_fallthru
        _
    $region12: #{model_forward.1} parent=5 // pred_fallthru
      _
    %p174 = scmp.lt.s32.totalorder %s11, 2
    // Predicated region
    $region29: #{model_forward.1} parent=5 // pred_check
      %p175 = pneg %p174
    $region30: #{model_forward.1} parent=5 // pred_check_branch
      %177 = sbr.rel (%p175) target = $region32
    $region31: #{model_forward.1} parent=5 // pred_region
      // Predicated region
      $region33: #{model_forward.1} parent=31 // pred_check
        %p178 = pneg %p31
      $region34: #{model_forward.1} parent=31 // pred_check_branch
        %180 = sbr.rel (%p178) target = $region36
      $region35: #{model_forward.1} parent=31 // pred_region
        %p181 = scmp.lt.s32.totalorder %s11, 1
        %s182 = scalar_select %p181, %s11, 1
        %s183 = smul.addr %s182, 18
        %s184 = smul.addr %s183, 8
        %s185 = scalar_lea.vmem %s0, %s184
      $region36: #{model_forward.1} parent=31 // pred_fallthru
        _
    $region32: #{model_forward.1} parent=5 // pred_fallthru
      _
    %p186 = scmp.le.s32.totalorder 1, %s11
    %p187 = scmp.lt.s32.totalorder %s11, 3
    %p188 = pnand %p186, %p187
    %p189 = pneg %p188
    // Predicated region
    $region37: #{model_forward.1} parent=5 // pred_check
      _
    $region38: #{model_forward.1} parent=5 // pred_check_branch
      %191 = sbr.rel (%p188) target = $region40
    $region39: #{model_forward.1} parent=5 // pred_region
      %s192 = ssub.s32 %s11, 1
      %p193 = scmp.lt.s32.totalorder %s16, 1
      %s194 = scalar_select %p193, %s16, 1
      %s195 = smul.addr %s194, 18
      %s196 = smul.addr %s195, 8
      %s197 = scalar_lea.vmem %s0, %s196
      %p198 = pneg %p37
      %p199 = pneg %p34
      %p200 = pneg %p58
      %p201 = pneg %p55
      %p202 = pneg %p79
      %p203 = pneg %p76
      %p204 = pneg %p100
      %p205 = pneg %p97
      %p206 = pneg %p121
      %p207 = pneg %p118
      %p208 = pneg %p147
      %p209 = pneg %p144
      %p210 = scmp.lt.s32.totalorder %s16, 1
      %s211 = scalar_select %p210, %s16, 1
      %s212 = smul.addr %s211, 8
      %s213 = smul.addr %s212, 8
      %s214 = scalar_lea.vmem %s5, %s213
      %p215 = scmp.lt.s32.totalorder %s16, 1
      %s216 = scalar_select %p215, %s16, 1
      %s217 = smul.addr %s216, 18
      %s218 = smul.addr %s217, 8
      %s219 = scalar_lea.vmem %s0, %s218
      %p220 = scmp.lt.s32.totalorder %s16, 1
      %s221 = scalar_select %p220, %s16, 1
      %s222 = smul.addr %s221, 8
      %s223 = smul.addr %s222, 8
      %s224 = scalar_lea.vmem %s5, %s223
      %v225 = vld [vmem:[%s219] sm:$0xff]
      %v226 = vld [vmem:[%s219 + $0x8] sm:$0xff]
      %v227 = vld [vmem:[%s219 + $0x10] sm:$0xff]
      %v228 = vld [vmem:[%s219 + $0x18] sm:$0xff]
      %v229 = vld [vmem:[%s219 + $0x20] sm:$0xff]
      %v230 = vld [vmem:[%s219 + $0x28] sm:$0xff]
      %v231 = vld [vmem:[%s219 + $0x30] sm:$0xff]
      %v232 = vld [vmem:[%s219 + $0x38] sm:$0xff]
      %v233 = vld [vmem:[%s219 + $0x40] sm:$0xff]
      %v234 = vld [vmem:[%s219 + $0x48] sm:$0xff]
      %v235 = vld [vmem:[%s219 + $0x50] sm:$0xff]
      %v236 = vld [vmem:[%s219 + $0x58] sm:$0xff]
      %v237 = vld [vmem:[%s219 + $0x60] sm:$0xff]
      %v238 = vld [vmem:[%s219 + $0x68] sm:$0xff]
      %v239 = vld [vmem:[%s219 + $0x70] sm:$0xff]
      %v240 = vld [vmem:[%s219 + $0x78] sm:$0xff]
      %v241 = vld [vmem:[%s219 + $0x80] sm:$0xff]
      %v242 = vld [vmem:[%s219 + $0x88] sm:$0xff]
      %v243 = vld [vmem:[%s1] sm:$0xff]
      %v244 = vld [vmem:[%s1 + $0x8] sm:$0xff]
      %v245 = vld [vmem:[%s1 + $0x10] sm:$0xff]
      %v246 = vld [vmem:[%s1 + $0x18] sm:$0xff]
      %v247 = vld [vmem:[%s2] sm:$0x1]
      %v249 = vperm.slane %v247, 0
      %vm251 = vcmask 261120
      %v253 = vsel %vm251, %v225, 0
      %v256 = vsel %vm251, %v226, 0
      %v259 = vsel %vm251, %v227, 0
      %v262 = vsel %vm251, %v228, 0
      %v265 = vsel %vm251, %v229, 0
      %v268 = vsel %vm251, %v230, 0
      %v271 = vsel %vm251, %v231, 0
      %v274 = vsel %vm251, %v232, 0
      %v277 = vsel %vm251, %v233, 0
      %v280 = vsel %vm251, %v234, 0
      %v283 = vsel %vm251, %v235, 0
      %v286 = vsel %vm251, %v236, 0
      %v289 = vsel %vm251, %v237, 0
      %v292 = vsel %vm251, %v238, 0
      %v295 = vsel %vm251, %v239, 0
      %v298 = vsel %vm251, %v240, 0
      %v301 = vsel %vm251, %v241, 0
      %v304 = vsel %vm251, %v242, 0
      %306 = vmatpush.msra.mxu0 0.0
      %307 = vmatpush.msra.mxu0 0.0
      %308 = vmatpush.msra.mxu0 0.0
      %309 = vmatpush.msra.mxu0 0.0
      %310 = vmatpush.msra.mxu0 0.0
      %311 = vmatpush.msra.mxu0 0.0
      %312 = vmatpush.msra.mxu0 0.0
      %313 = vmatpush.msra.mxu0 0.0
      %314 = vmatpush.msra.mxu0 0.0
      %315 = vmatpush.msra.mxu0 0.0
      %316 = vmatpush.msra.mxu0 0.0
      %317 = vmatpush.msra.mxu0 0.0
      %318 = vmatpush.msra.mxu0 %v246
      %319 = vmatpush.msra.mxu0 %v245
      %320 = vmatpush.msra.mxu0 %v244
      %321 = vmatpush.msra.mxu0 %v243
      %322 = vmatmul.f32.gmra.mxu0 %v253
      %v323 = vpop.f32.mrf.mxu0
      %v324 = vadd.f32 %v249, %v323
      %325 = vmatmul.f32.gmra.mxu0 %v256
      %v326 = vpop.f32.mrf.mxu0
      %v327 = vadd.f32 %v249, %v326
      %328 = vmatmul.f32.gmra.mxu0 %v259
      %v329 = vpop.f32.mrf.mxu0
      %v330 = vadd.f32 %v249, %v329
      %331 = vmatmul.f32.gmra.mxu0 %v262
      %v332 = vpop.f32.mrf.mxu0
      %v333 = vadd.f32 %v249, %v332
      %334 = vmatmul.f32.gmra.mxu0 %v265
      %v335 = vpop.f32.mrf.mxu0
      %v336 = vadd.f32 %v249, %v335
      %337 = vmatmul.f32.gmra.mxu0 %v268
      %v338 = vpop.f32.mrf.mxu0
      %v339 = vadd.f32 %v249, %v338
      %340 = vmatmul.f32.gmra.mxu0 %v271
      %v341 = vpop.f32.mrf.mxu0
      %v342 = vadd.f32 %v249, %v341
      %343 = vmatmul.f32.gmra.mxu0 %v274
      %v344 = vpop.f32.mrf.mxu0
      %v345 = vadd.f32 %v249, %v344
      %346 = vmatmul.f32.gmra.mxu0 %v277
      %v347 = vpop.f32.mrf.mxu0
      %v348 = vadd.f32 %v249, %v347
      %349 = vmatmul.f32.gmra.mxu0 %v280
      %v350 = vpop.f32.mrf.mxu0
      %v351 = vadd.f32 %v249, %v350
      %352 = vmatmul.f32.gmra.mxu0 %v283
      %v353 = vpop.f32.mrf.mxu0
      %v354 = vadd.f32 %v249, %v353
      %355 = vmatmul.f32.gmra.mxu0 %v286
      %v356 = vpop.f32.mrf.mxu0
      %v357 = vadd.f32 %v249, %v356
      %358 = vmatmul.f32.gmra.mxu0 %v289
      %v359 = vpop.f32.mrf.mxu0
      %v360 = vadd.f32 %v249, %v359
      %361 = vmatmul.f32.gmra.mxu0 %v292
      %v362 = vpop.f32.mrf.mxu0
      %v363 = vadd.f32 %v249, %v362
      %364 = vmatmul.f32.gmra.mxu0 %v295
      %v365 = vpop.f32.mrf.mxu0
      %v366 = vadd.f32 %v249, %v365
      %367 = vmatmul.f32.gmra.mxu0 %v298
      %v368 = vpop.f32.mrf.mxu0
      %v369 = vadd.f32 %v249, %v368
      %370 = vmatmul.f32.gmra.mxu0 %v301
      %v371 = vpop.f32.mrf.mxu0
      %v372 = vadd.f32 %v249, %v371
      %373 = vmatmul.f32.gmra.mxu0 %v304
      %v374 = vpop.f32.mrf.mxu0
      %v375 = vadd.f32 %v249, %v374
      %376 = vdwg.mxu0
      %v377 = vmax.f32 %v324, 0.0
      %v378 = vmax.f32 %v327, 0.0
      %v379 = vmax.f32 %v330, 0.0
      %v380 = vmax.f32 %v333, 0.0
      %v381 = vmax.f32 %v336, 0.0
      %v382 = vmax.f32 %v339, 0.0
      %v383 = vmax.f32 %v342, 0.0
      %v384 = vmax.f32 %v345, 0.0
      %v385 = vmax.f32 %v348, 0.0
      %v386 = vmax.f32 %v351, 0.0
      %v387 = vmax.f32 %v354, 0.0
      %v388 = vmax.f32 %v357, 0.0
      %v389 = vmax.f32 %v360, 0.0
      %v390 = vmax.f32 %v363, 0.0
      %v391 = vmax.f32 %v366, 0.0
      %v392 = vmax.f32 %v369, 0.0
      %v393 = vmax.f32 %v372, 0.0
      %v394 = vmax.f32 %v375, 0.0
      %v413 = vrot.slane %v377, 4
      %v414 = vrot.slane %v378, 4
      %v415 = vrot.slane %v379, 4
      %v416 = vrot.slane %v380, 4
      %v417 = vrot.slane %v381, 4
      %v418 = vrot.slane %v382, 4
      %v419 = vrot.slane %v383, 4
      %v420 = vrot.slane %v384, 4
      %v421 = vrot.slane %v385, 4
      %v422 = vrot.slane %v386, 4
      %v423 = vrot.slane %v387, 4
      %v424 = vrot.slane %v388, 4
      %v425 = vrot.slane %v389, 4
      %v426 = vrot.slane %v390, 4
      %v427 = vrot.slane %v391, 4
      %v428 = vrot.slane %v392, 4
      %v429 = vrot.slane %v393, 4
      %v430 = vrot.slane %v394, 4
      %431 = vst [vmem:[#allocation1] ss:$2 sm:$0xff] %v377
      %s432 = scalar_lea.vmem [#allocation1], 1
      %433 = vst [vmem:[%s432] ss:$2 sm:$0xff] %v413
      %s434 = scalar_lea.vmem [#allocation1], 16
      %435 = vst [vmem:[%s434] ss:$2 sm:$0xff] %v378
      %v436 = vld.sshfl [vmem:[#allocation1] sm:$0xff pattern:$0x75316420]
      %v437 = vld.sshfl [vmem:[#allocation1 + $0x10] sm:$0xff pattern:$0x75316420]
      %s438 = scalar_lea.vmem [#allocation1], 32
      %439 = vst [vmem:[%s438] ss:$2 sm:$0xff] %v414
      %s440 = scalar_lea.vmem [#allocation1], 33
      %441 = vst [vmem:[%s440] ss:$2 sm:$0xff] %v379
      %s442 = scalar_lea.vmem [#allocation1], 48
      %443 = vst [vmem:[%s442] ss:$2 sm:$0xff] %v415
      %v444 = vld.sshfl [vmem:[#allocation1 + $0x20] sm:$0xff pattern:$0x75316420]
      %v445 = vld.sshfl [vmem:[#allocation1 + $0x30] sm:$0xff pattern:$0x75316420]
      %446 = vst [vmem:[#allocation1] ss:$2 sm:$0xff] %v380
      %447 = vst [vmem:[%s432] ss:$2 sm:$0xff] %v416
      %448 = vst [vmem:[%s434] ss:$2 sm:$0xff] %v381
      %v449 = vld.sshfl [vmem:[#allocation1] sm:$0xff pattern:$0x75316420]
      %v450 = vld.sshfl [vmem:[#allocation1 + $0x10] sm:$0xff pattern:$0x75316420]
      %451 = vst [vmem:[%s438] ss:$2 sm:$0xff] %v417
      %452 = vst [vmem:[%s440] ss:$2 sm:$0xff] %v382
      %453 = vst [vmem:[%s442] ss:$2 sm:$0xff] %v418
      %v454 = vld.sshfl [vmem:[#allocation1 + $0x20] sm:$0xff pattern:$0x75316420]
      %v455 = vld.sshfl [vmem:[#allocation1 + $0x30] sm:$0xff pattern:$0x75316420]
      %456 = vst [vmem:[#allocation1] ss:$2 sm:$0xff] %v383
      %457 = vst [vmem:[%s432] ss:$2 sm:$0xff] %v419
      %458 = vst [vmem:[%s434] ss:$2 sm:$0xff] %v384
      %v459 = vld.sshfl [vmem:[#allocation1] sm:$0xff pattern:$0x75316420]
      %v460 = vld.sshfl [vmem:[#allocation1 + $0x10] sm:$0xff pattern:$0x75316420]
      %461 = vst [vmem:[%s438] ss:$2 sm:$0xff] %v420
      %462 = vst [vmem:[%s440] ss:$2 sm:$0xff] %v385
      %463 = vst [vmem:[%s442] ss:$2 sm:$0xff] %v421
      %v464 = vld.sshfl [vmem:[#allocation1 + $0x20] sm:$0xff pattern:$0x75316420]
      %v465 = vld.sshfl [vmem:[#allocation1 + $0x30] sm:$0xff pattern:$0x75316420]
      %466 = vst [vmem:[#allocation1] ss:$2 sm:$0xff] %v386
      %467 = vst [vmem:[%s432] ss:$2 sm:$0xff] %v422
      %468 = vst [vmem:[%s434] ss:$2 sm:$0xff] %v387
      %v469 = vld.sshfl [vmem:[#allocation1] sm:$0xff pattern:$0x75316420]
      %v470 = vld.sshfl [vmem:[#allocation1 + $0x10] sm:$0xff pattern:$0x75316420]
      %471 = vst [vmem:[%s438] ss:$2 sm:$0xff] %v423
      %472 = vst [vmem:[%s440] ss:$2 sm:$0xff] %v388
      %473 = vst [vmem:[%s442] ss:$2 sm:$0xff] %v424
      %v474 = vld.sshfl [vmem:[#allocation1 + $0x20] sm:$0xff pattern:$0x75316420]
      %v475 = vld.sshfl [vmem:[#allocation1 + $0x30] sm:$0xff pattern:$0x75316420]
      %476 = vst [vmem:[#allocation1] ss:$2 sm:$0xff] %v389
      %477 = vst [vmem:[%s432] ss:$2 sm:$0xff] %v425
      %478 = vst [vmem:[%s434] ss:$2 sm:$0xff] %v390
      %v479 = vld.sshfl [vmem:[#allocation1] sm:$0xff pattern:$0x75316420]
      %v480 = vld.sshfl [vmem:[#allocation1 + $0x10] sm:$0xff pattern:$0x75316420]
      %481 = vst [vmem:[%s438] ss:$2 sm:$0xff] %v426
      %482 = vst [vmem:[%s440] ss:$2 sm:$0xff] %v391
      %483 = vst [vmem:[%s442] ss:$2 sm:$0xff] %v427
      %v484 = vld.sshfl [vmem:[#allocation1 + $0x20] sm:$0xff pattern:$0x75316420]
      %v485 = vld.sshfl [vmem:[#allocation1 + $0x30] sm:$0xff pattern:$0x75316420]
      %486 = vst [vmem:[#allocation1] ss:$2 sm:$0xff] %v392
      %487 = vst [vmem:[%s432] ss:$2 sm:$0xff] %v428
      %488 = vst [vmem:[%s434] ss:$2 sm:$0xff] %v393
      %v489 = vld.sshfl [vmem:[#allocation1] sm:$0xff pattern:$0x75316420]
      %v490 = vld.sshfl [vmem:[#allocation1 + $0x10] sm:$0xff pattern:$0x75316420]
      %491 = vst [vmem:[%s438] ss:$2 sm:$0xff] %v429
      %492 = vst [vmem:[%s440] ss:$2 sm:$0xff] %v394
      %493 = vst [vmem:[%s442] ss:$2 sm:$0xff] %v430
      %v494 = vld.sshfl [vmem:[#allocation1 + $0x20] sm:$0xff pattern:$0x75316420]
      %v495 = vld.sshfl [vmem:[#allocation1 + $0x30] sm:$0xff pattern:$0x75316420]
      %520 = vst [vmem:[#allocation2] sm:$0xff] %v436
      %521 = vst [vmem:[#allocation2 + $0x8] sm:$0xf] %v437
      %522 = vst [vmem:[#allocation2 + $0x10] sm:$0xff] %v444
      %523 = vst [vmem:[#allocation2 + $0x18] sm:$0xf] %v445
      %524 = vst [vmem:[#allocation2 + $0x20] sm:$0xff] %v449
      %525 = vst [vmem:[#allocation2 + $0x28] sm:$0xf] %v450
      %526 = vst [vmem:[#allocation2 + $0x30] sm:$0xff] %v454
      %527 = vst [vmem:[#allocation2 + $0x38] sm:$0xf] %v455
      %528 = vst [vmem:[#allocation2 + $0x40] sm:$0xff] %v459
      %529 = vst [vmem:[#allocation2 + $0x48] sm:$0xf] %v460
      %530 = vst [vmem:[#allocation2 + $0x50] sm:$0xff] %v464
      %531 = vst [vmem:[#allocation2 + $0x58] sm:$0xf] %v465
      %532 = vst [vmem:[#allocation2 + $0x60] sm:$0xff] %v469
      %533 = vst [vmem:[#allocation2 + $0x68] sm:$0xf] %v470
      %534 = vst [vmem:[#allocation2 + $0x70] sm:$0xff] %v474
      %535 = vst [vmem:[#allocation2 + $0x78] sm:$0xf] %v475
      %536 = vst [vmem:[#allocation2 + $0x80] sm:$0xff] %v479
      %537 = vst [vmem:[#allocation2 + $0x88] sm:$0xf] %v480
      %538 = vst [vmem:[#allocation2 + $0x90] sm:$0xff] %v484
      %539 = vst [vmem:[#allocation2 + $0x98] sm:$0xf] %v485
      %540 = vst [vmem:[#allocation2 + $0xa0] sm:$0xff] %v489
      %541 = vst [vmem:[#allocation2 + $0xa8] sm:$0xf] %v490
      %542 = vst [vmem:[#allocation2 + $0xb0] sm:$0xff] %v494
      %543 = vst [vmem:[#allocation2 + $0xb8] sm:$0xf] %v495
      %v544 = vld [vmem:[#allocation2] sm:$0xff]
      %v545 = vld [vmem:[#allocation2 + $0x10] sm:$0xff]
      %v546 = vld [vmem:[#allocation2 + $0x20] sm:$0xff]
      %v547 = vld [vmem:[#allocation2 + $0x30] sm:$0xff]
      %v548 = vld [vmem:[#allocation2 + $0x40] sm:$0xff]
      %v549 = vld [vmem:[#allocation2 + $0x50] sm:$0xff]
      %v550 = vld [vmem:[#allocation2 + $0x60] sm:$0xff]
      %v551 = vld [vmem:[#allocation2 + $0x70] sm:$0xff]
      %552 = vst [vmem:[#allocation3] sm:$0xff] %v544
      %553 = vst [vmem:[#allocation3 + $0xc8] sm:$0xff] %v545
      %554 = vst [vmem:[#allocation3 + $0x190] sm:$0xff] %v546
      %555 = vst [vmem:[#allocation3 + $0x258] sm:$0xff] %v547
      %556 = vst [vmem:[#allocation3 + $0x320] sm:$0xff] %v548
      %557 = vst [vmem:[#allocation3 + $0x3e8] sm:$0xff] %v549
      %558 = vst [vmem:[#allocation3 + $0x4b0] sm:$0xff] %v550
      %559 = vst [vmem:[#allocation3 + $0x578] sm:$0xff] %v551
      %v560 = vld [vmem:[#allocation2 + $0x1] sm:$0xff]
      %v561 = vld [vmem:[#allocation2 + $0x11] sm:$0xff]
      %v562 = vld [vmem:[#allocation2 + $0x21] sm:$0xff]
      %v563 = vld [vmem:[#allocation2 + $0x31] sm:$0xff]
      %v564 = vld [vmem:[#allocation2 + $0x41] sm:$0xff]
      %v565 = vld [vmem:[#allocation2 + $0x51] sm:$0xff]
      %v566 = vld [vmem:[#allocation2 + $0x61] sm:$0xff]
      %v567 = vld [vmem:[#allocation2 + $0x71] sm:$0xff]
      %568 = vst [vmem:[#allocation3 + $0x8] sm:$0xff] %v560
      %569 = vst [vmem:[#allocation3 + $0xd0] sm:$0xff] %v561
      %570 = vst [vmem:[#allocation3 + $0x198] sm:$0xff] %v562
      %571 = vst [vmem:[#allocation3 + $0x260] sm:$0xff] %v563
      %572 = vst [vmem:[#allocation3 + $0x328] sm:$0xff] %v564
      %573 = vst [vmem:[#allocation3 + $0x3f0] sm:$0xff] %v565
      %574 = vst [vmem:[#allocation3 + $0x4b8] sm:$0xff] %v566
      %575 = vst [vmem:[#allocation3 + $0x580] sm:$0xff] %v567
      %v576 = vld [vmem:[#allocation2 + $0x2] sm:$0xff]
      %v577 = vld [vmem:[#allocation2 + $0x12] sm:$0xff]
      %v578 = vld [vmem:[#allocation2 + $0x22] sm:$0xff]
      %v579 = vld [vmem:[#allocation2 + $0x32] sm:$0xff]
      %v580 = vld [vmem:[#allocation2 + $0x42] sm:$0xff]
      %v581 = vld [vmem:[#allocation2 + $0x52] sm:$0xff]
      %v582 = vld [vmem:[#allocation2 + $0x62] sm:$0xff]
      %v583 = vld [vmem:[#allocation2 + $0x72] sm:$0xff]
      %584 = vst [vmem:[#allocation3 + $0x10] sm:$0xff] %v576
      %585 = vst [vmem:[#allocation3 + $0xd8] sm:$0xff] %v577
      %586 = vst [vmem:[#allocation3 + $0x1a0] sm:$0xff] %v578
      %587 = vst [vmem:[#allocation3 + $0x268] sm:$0xff] %v579
      %588 = vst [vmem:[#allocation3 + $0x330] sm:$0xff] %v580
      %589 = vst [vmem:[#allocation3 + $0x3f8] sm:$0xff] %v581
      %590 = vst [vmem:[#allocation3 + $0x4c0] sm:$0xff] %v582
      %591 = vst [vmem:[#allocation3 + $0x588] sm:$0xff] %v583
      %v592 = vld [vmem:[#allocation2 + $0x3] sm:$0xff]
      %v593 = vld [vmem:[#allocation2 + $0x13] sm:$0xff]
      %v594 = vld [vmem:[#allocation2 + $0x23] sm:$0xff]
      %v595 = vld [vmem:[#allocation2 + $0x33] sm:$0xff]
      %v596 = vld [vmem:[#allocation2 + $0x43] sm:$0xff]
      %v597 = vld [vmem:[#allocation2 + $0x53] sm:$0xff]
      %v598 = vld [vmem:[#allocation2 + $0x63] sm:$0xff]
      %v599 = vld [vmem:[#allocation2 + $0x73] sm:$0xff]
      %600 = vst [vmem:[#allocation3 + $0x18] sm:$0xff] %v592
      %601 = vst [vmem:[#allocation3 + $0xe0] sm:$0xff] %v593
      %602 = vst [vmem:[#allocation3 + $0x1a8] sm:$0xff] %v594
      %603 = vst [vmem:[#allocation3 + $0x270] sm:$0xff] %v595
      %604 = vst [vmem:[#allocation3 + $0x338] sm:$0xff] %v596
      %605 = vst [vmem:[#allocation3 + $0x400] sm:$0xff] %v597
      %606 = vst [vmem:[#allocation3 + $0x4c8] sm:$0xff] %v598
      %607 = vst [vmem:[#allocation3 + $0x590] sm:$0xff] %v599
      %v608 = vld [vmem:[#allocation2 + $0x4] sm:$0xff]
      %v609 = vld [vmem:[#allocation2 + $0x14] sm:$0xff]
      %v610 = vld [vmem:[#allocation2 + $0x24] sm:$0xff]
      %v611 = vld [vmem:[#allocation2 + $0x34] sm:$0xff]
      %v612 = vld [vmem:[#allocation2 + $0x44] sm:$0xff]
      %v613 = vld [vmem:[#allocation2 + $0x54] sm:$0xff]
      %v614 = vld [vmem:[#allocation2 + $0x64] sm:$0xff]
      %v615 = vld [vmem:[#allocation2 + $0x74] sm:$0xff]
      %616 = vst [vmem:[#allocation3 + $0x20] sm:$0xff] %v608
      %617 = vst [vmem:[#allocation3 + $0xe8] sm:$0xff] %v609
      %618 = vst [vmem:[#allocation3 + $0x1b0] sm:$0xff] %v610
      %619 = vst [vmem:[#allocation3 + $0x278] sm:$0xff] %v611
      %620 = vst [vmem:[#allocation3 + $0x340] sm:$0xff] %v612
      %621 = vst [vmem:[#allocation3 + $0x408] sm:$0xff] %v613
      %622 = vst [vmem:[#allocation3 + $0x4d0] sm:$0xff] %v614
      %623 = vst [vmem:[#allocation3 + $0x598] sm:$0xff] %v615
      %s624 = scalar_lea.vmem [#allocation2], 16
      %v625 = vld [vmem:[%s624] sm:$0xff]
      %v626 = vld [vmem:[%s624 + $0x10] sm:$0xff]
      %v627 = vld [vmem:[%s624 + $0x20] sm:$0xff]
      %v628 = vld [vmem:[%s624 + $0x30] sm:$0xff]
      %v629 = vld [vmem:[%s624 + $0x40] sm:$0xff]
      %v630 = vld [vmem:[%s624 + $0x50] sm:$0xff]
      %v631 = vld [vmem:[%s624 + $0x60] sm:$0xff]
      %v632 = vld [vmem:[%s624 + $0x70] sm:$0xff]
      %633 = vst [vmem:[#allocation3 + $0x28] sm:$0xff] %v625
      %634 = vst [vmem:[#allocation3 + $0xf0] sm:$0xff] %v626
      %635 = vst [vmem:[#allocation3 + $0x1b8] sm:$0xff] %v627
      %636 = vst [vmem:[#allocation3 + $0x280] sm:$0xff] %v628
      %637 = vst [vmem:[#allocation3 + $0x348] sm:$0xff] %v629
      %638 = vst [vmem:[#allocation3 + $0x410] sm:$0xff] %v630
      %639 = vst [vmem:[#allocation3 + $0x4d8] sm:$0xff] %v631
      %640 = vst [vmem:[#allocation3 + $0x5a0] sm:$0xff] %v632
      %v641 = vld [vmem:[%s624 + $0x1] sm:$0xff]
      %v642 = vld [vmem:[%s624 + $0x11] sm:$0xff]
      %v643 = vld [vmem:[%s624 + $0x21] sm:$0xff]
      %v644 = vld [vmem:[%s624 + $0x31] sm:$0xff]
      %v645 = vld [vmem:[%s624 + $0x41] sm:$0xff]
      %v646 = vld [vmem:[%s624 + $0x51] sm:$0xff]
      %v647 = vld [vmem:[%s624 + $0x61] sm:$0xff]
      %v648 = vld [vmem:[%s624 + $0x71] sm:$0xff]
      %649 = vst [vmem:[#allocation3 + $0x30] sm:$0xff] %v641
      %650 = vst [vmem:[#allocation3 + $0xf8] sm:$0xff] %v642
      %651 = vst [vmem:[#allocation3 + $0x1c0] sm:$0xff] %v643
      %652 = vst [vmem:[#allocation3 + $0x288] sm:$0xff] %v644
      %653 = vst [vmem:[#allocation3 + $0x350] sm:$0xff] %v645
      %654 = vst [vmem:[#allocation3 + $0x418] sm:$0xff] %v646
      %655 = vst [vmem:[#allocation3 + $0x4e0] sm:$0xff] %v647
      %656 = vst [vmem:[#allocation3 + $0x5a8] sm:$0xff] %v648
      %v657 = vld [vmem:[%s624 + $0x2] sm:$0xff]
      %v658 = vld [vmem:[%s624 + $0x12] sm:$0xff]
      %v659 = vld [vmem:[%s624 + $0x22] sm:$0xff]
      %v660 = vld [vmem:[%s624 + $0x32] sm:$0xff]
      %v661 = vld [vmem:[%s624 + $0x42] sm:$0xff]
      %v662 = vld [vmem:[%s624 + $0x52] sm:$0xff]
      %v663 = vld [vmem:[%s624 + $0x62] sm:$0xff]
      %v664 = vld [vmem:[%s624 + $0x72] sm:$0xff]
      %665 = vst [vmem:[#allocation3 + $0x38] sm:$0xff] %v657
      %666 = vst [vmem:[#allocation3 + $0x100] sm:$0xff] %v658
      %667 = vst [vmem:[#allocation3 + $0x1c8] sm:$0xff] %v659
      %668 = vst [vmem:[#allocation3 + $0x290] sm:$0xff] %v660
      %669 = vst [vmem:[#allocation3 + $0x358] sm:$0xff] %v661
      %670 = vst [vmem:[#allocation3 + $0x420] sm:$0xff] %v662
      %671 = vst [vmem:[#allocation3 + $0x4e8] sm:$0xff] %v663
      %672 = vst [vmem:[#allocation3 + $0x5b0] sm:$0xff] %v664
      %v673 = vld [vmem:[%s624 + $0x3] sm:$0xff]
      %v674 = vld [vmem:[%s624 + $0x13] sm:$0xff]
      %v675 = vld [vmem:[%s624 + $0x23] sm:$0xff]
      %v676 = vld [vmem:[%s624 + $0x33] sm:$0xff]
      %v677 = vld [vmem:[%s624 + $0x43] sm:$0xff]
      %v678 = vld [vmem:[%s624 + $0x53] sm:$0xff]
      %v679 = vld [vmem:[%s624 + $0x63] sm:$0xff]
      %v680 = vld [vmem:[%s624 + $0x73] sm:$0xff]
      %681 = vst [vmem:[#allocation3 + $0x40] sm:$0xff] %v673
      %682 = vst [vmem:[#allocation3 + $0x108] sm:$0xff] %v674
      %683 = vst [vmem:[#allocation3 + $0x1d0] sm:$0xff] %v675
      %684 = vst [vmem:[#allocation3 + $0x298] sm:$0xff] %v676
      %685 = vst [vmem:[#allocation3 + $0x360] sm:$0xff] %v677
      %686 = vst [vmem:[#allocation3 + $0x428] sm:$0xff] %v678
      %687 = vst [vmem:[#allocation3 + $0x4f0] sm:$0xff] %v679
      %688 = vst [vmem:[#allocation3 + $0x5b8] sm:$0xff] %v680
      %v689 = vld [vmem:[%s624 + $0x4] sm:$0xff]
      %v690 = vld [vmem:[%s624 + $0x14] sm:$0xff]
      %v691 = vld [vmem:[%s624 + $0x24] sm:$0xff]
      %v692 = vld [vmem:[%s624 + $0x34] sm:$0xff]
      %v693 = vld [vmem:[%s624 + $0x44] sm:$0xff]
      %v694 = vld [vmem:[%s624 + $0x54] sm:$0xff]
      %v695 = vld [vmem:[%s624 + $0x64] sm:$0xff]
      %v696 = vld [vmem:[%s624 + $0x74] sm:$0xff]
      %697 = vst [vmem:[#allocation3 + $0x48] sm:$0xff] %v689
      %698 = vst [vmem:[#allocation3 + $0x110] sm:$0xff] %v690
      %699 = vst [vmem:[#allocation3 + $0x1d8] sm:$0xff] %v691
      %700 = vst [vmem:[#allocation3 + $0x2a0] sm:$0xff] %v692
      %701 = vst [vmem:[#allocation3 + $0x368] sm:$0xff] %v693
      %702 = vst [vmem:[#allocation3 + $0x430] sm:$0xff] %v694
      %703 = vst [vmem:[#allocation3 + $0x4f8] sm:$0xff] %v695
      %704 = vst [vmem:[#allocation3 + $0x5c0] sm:$0xff] %v696
      %s705 = scalar_lea.vmem [#allocation2], 32
      %v706 = vld [vmem:[%s705] sm:$0xff]
      %v707 = vld [vmem:[%s705 + $0x10] sm:$0xff]
      %v708 = vld [vmem:[%s705 + $0x20] sm:$0xff]
      %v709 = vld [vmem:[%s705 + $0x30] sm:$0xff]
      %v710 = vld [vmem:[%s705 + $0x40] sm:$0xff]
      %v711 = vld [vmem:[%s705 + $0x50] sm:$0xff]
      %v712 = vld [vmem:[%s705 + $0x60] sm:$0xff]
      %v713 = vld [vmem:[%s705 + $0x70] sm:$0xff]
      %714 = vst [vmem:[#allocation3 + $0x50] sm:$0xff] %v706
      %715 = vst [vmem:[#allocation3 + $0x118] sm:$0xff] %v707
      %716 = vst [vmem:[#allocation3 + $0x1e0] sm:$0xff] %v708
      %717 = vst [vmem:[#allocation3 + $0x2a8] sm:$0xff] %v709
      %718 = vst [vmem:[#allocation3 + $0x370] sm:$0xff] %v710
      %719 = vst [vmem:[#allocation3 + $0x438] sm:$0xff] %v711
      %720 = vst [vmem:[#allocation3 + $0x500] sm:$0xff] %v712
      %721 = vst [vmem:[#allocation3 + $0x5c8] sm:$0xff] %v713
      %v722 = vld [vmem:[%s705 + $0x1] sm:$0xff]
      %v723 = vld [vmem:[%s705 + $0x11] sm:$0xff]
      %v724 = vld [vmem:[%s705 + $0x21] sm:$0xff]
      %v725 = vld [vmem:[%s705 + $0x31] sm:$0xff]
      %v726 = vld [vmem:[%s705 + $0x41] sm:$0xff]
      %v727 = vld [vmem:[%s705 + $0x51] sm:$0xff]
      %v728 = vld [vmem:[%s705 + $0x61] sm:$0xff]
      %v729 = vld [vmem:[%s705 + $0x71] sm:$0xff]
      %730 = vst [vmem:[#allocation3 + $0x58] sm:$0xff] %v722
      %731 = vst [vmem:[#allocation3 + $0x120] sm:$0xff] %v723
      %732 = vst [vmem:[#allocation3 + $0x1e8] sm:$0xff] %v724
      %733 = vst [vmem:[#allocation3 + $0x2b0] sm:$0xff] %v725
      %734 = vst [vmem:[#allocation3 + $0x378] sm:$0xff] %v726
      %735 = vst [vmem:[#allocation3 + $0x440] sm:$0xff] %v727
      %736 = vst [vmem:[#allocation3 + $0x508] sm:$0xff] %v728
      %737 = vst [vmem:[#allocation3 + $0x5d0] sm:$0xff] %v729
      %v738 = vld [vmem:[%s705 + $0x2] sm:$0xff]
      %v739 = vld [vmem:[%s705 + $0x12] sm:$0xff]
      %v740 = vld [vmem:[%s705 + $0x22] sm:$0xff]
      %v741 = vld [vmem:[%s705 + $0x32] sm:$0xff]
      %v742 = vld [vmem:[%s705 + $0x42] sm:$0xff]
      %v743 = vld [vmem:[%s705 + $0x52] sm:$0xff]
      %v744 = vld [vmem:[%s705 + $0x62] sm:$0xff]
      %v745 = vld [vmem:[%s705 + $0x72] sm:$0xff]
      %746 = vst [vmem:[#allocation3 + $0x60] sm:$0xff] %v738
      %747 = vst [vmem:[#allocation3 + $0x128] sm:$0xff] %v739
      %748 = vst [vmem:[#allocation3 + $0x1f0] sm:$0xff] %v740
      %749 = vst [vmem:[#allocation3 + $0x2b8] sm:$0xff] %v741
      %750 = vst [vmem:[#allocation3 + $0x380] sm:$0xff] %v742
      %751 = vst [vmem:[#allocation3 + $0x448] sm:$0xff] %v743
      %752 = vst [vmem:[#allocation3 + $0x510] sm:$0xff] %v744
      %753 = vst [vmem:[#allocation3 + $0x5d8] sm:$0xff] %v745
      %v754 = vld [vmem:[%s705 + $0x3] sm:$0xff]
      %v755 = vld [vmem:[%s705 + $0x13] sm:$0xff]
      %v756 = vld [vmem:[%s705 + $0x23] sm:$0xff]
      %v757 = vld [vmem:[%s705 + $0x33] sm:$0xff]
      %v758 = vld [vmem:[%s705 + $0x43] sm:$0xff]
      %v759 = vld [vmem:[%s705 + $0x53] sm:$0xff]
      %v760 = vld [vmem:[%s705 + $0x63] sm:$0xff]
      %v761 = vld [vmem:[%s705 + $0x73] sm:$0xff]
      %762 = vst [vmem:[#allocation3 + $0x68] sm:$0xff] %v754
      %763 = vst [vmem:[#allocation3 + $0x130] sm:$0xff] %v755
      %764 = vst [vmem:[#allocation3 + $0x1f8] sm:$0xff] %v756
      %765 = vst [vmem:[#allocation3 + $0x2c0] sm:$0xff] %v757
      %766 = vst [vmem:[#allocation3 + $0x388] sm:$0xff] %v758
      %767 = vst [vmem:[#allocation3 + $0x450] sm:$0xff] %v759
      %768 = vst [vmem:[#allocation3 + $0x518] sm:$0xff] %v760
      %769 = vst [vmem:[#allocation3 + $0x5e0] sm:$0xff] %v761
      %v770 = vld [vmem:[%s705 + $0x4] sm:$0xff]
      %v771 = vld [vmem:[%s705 + $0x14] sm:$0xff]
      %v772 = vld [vmem:[%s705 + $0x24] sm:$0xff]
      %v773 = vld [vmem:[%s705 + $0x34] sm:$0xff]
      %v774 = vld [vmem:[%s705 + $0x44] sm:$0xff]
      %v775 = vld [vmem:[%s705 + $0x54] sm:$0xff]
      %v776 = vld [vmem:[%s705 + $0x64] sm:$0xff]
      %v777 = vld [vmem:[%s705 + $0x74] sm:$0xff]
      %778 = vst [vmem:[#allocation3 + $0x70] sm:$0xff] %v770
      %779 = vst [vmem:[#allocation3 + $0x138] sm:$0xff] %v771
      %780 = vst [vmem:[#allocation3 + $0x200] sm:$0xff] %v772
      %781 = vst [vmem:[#allocation3 + $0x2c8] sm:$0xff] %v773
      %782 = vst [vmem:[#allocation3 + $0x390] sm:$0xff] %v774
      %783 = vst [vmem:[#allocation3 + $0x458] sm:$0xff] %v775
      %784 = vst [vmem:[#allocation3 + $0x520] sm:$0xff] %v776
      %785 = vst [vmem:[#allocation3 + $0x5e8] sm:$0xff] %v777
      %s786 = scalar_lea.vmem [#allocation2], 48
      %v787 = vld [vmem:[%s786] sm:$0xff]
      %v788 = vld [vmem:[%s786 + $0x10] sm:$0xff]
      %v789 = vld [vmem:[%s786 + $0x20] sm:$0xff]
      %v790 = vld [vmem:[%s786 + $0x30] sm:$0xff]
      %v791 = vld [vmem:[%s786 + $0x40] sm:$0xff]
      %v792 = vld [vmem:[%s786 + $0x50] sm:$0xff]
      %v793 = vld [vmem:[%s786 + $0x60] sm:$0xff]
      %v794 = vld [vmem:[%s786 + $0x70] sm:$0xff]
      %795 = vst [vmem:[#allocation3 + $0x78] sm:$0xff] %v787
      %796 = vst [vmem:[#allocation3 + $0x140] sm:$0xff] %v788
      %797 = vst [vmem:[#allocation3 + $0x208] sm:$0xff] %v789
      %798 = vst [vmem:[#allocation3 + $0x2d0] sm:$0xff] %v790
      %799 = vst [vmem:[#allocation3 + $0x398] sm:$0xff] %v791
      %800 = vst [vmem:[#allocation3 + $0x460] sm:$0xff] %v792
      %801 = vst [vmem:[#allocation3 + $0x528] sm:$0xff] %v793
      %802 = vst [vmem:[#allocation3 + $0x5f0] sm:$0xff] %v794
      %v803 = vld [vmem:[%s786 + $0x1] sm:$0xff]
      %v804 = vld [vmem:[%s786 + $0x11] sm:$0xff]
      %v805 = vld [vmem:[%s786 + $0x21] sm:$0xff]
      %v806 = vld [vmem:[%s786 + $0x31] sm:$0xff]
      %v807 = vld [vmem:[%s786 + $0x41] sm:$0xff]
      %v808 = vld [vmem:[%s786 + $0x51] sm:$0xff]
      %v809 = vld [vmem:[%s786 + $0x61] sm:$0xff]
      %v810 = vld [vmem:[%s786 + $0x71] sm:$0xff]
      %811 = vst [vmem:[#allocation3 + $0x80] sm:$0xff] %v803
      %812 = vst [vmem:[#allocation3 + $0x148] sm:$0xff] %v804
      %813 = vst [vmem:[#allocation3 + $0x210] sm:$0xff] %v805
      %814 = vst [vmem:[#allocation3 + $0x2d8] sm:$0xff] %v806
      %815 = vst [vmem:[#allocation3 + $0x3a0] sm:$0xff] %v807
      %816 = vst [vmem:[#allocation3 + $0x468] sm:$0xff] %v808
      %817 = vst [vmem:[#allocation3 + $0x530] sm:$0xff] %v809
      %818 = vst [vmem:[#allocation3 + $0x5f8] sm:$0xff] %v810
      %v819 = vld [vmem:[%s786 + $0x2] sm:$0xff]
      %v820 = vld [vmem:[%s786 + $0x12] sm:$0xff]
      %v821 = vld [vmem:[%s786 + $0x22] sm:$0xff]
      %v822 = vld [vmem:[%s786 + $0x32] sm:$0xff]
      %v823 = vld [vmem:[%s786 + $0x42] sm:$0xff]
      %v824 = vld [vmem:[%s786 + $0x52] sm:$0xff]
      %v825 = vld [vmem:[%s786 + $0x62] sm:$0xff]
      %v826 = vld [vmem:[%s786 + $0x72] sm:$0xff]
      %827 = vst [vmem:[#allocation3 + $0x88] sm:$0xff] %v819
      %828 = vst [vmem:[#allocation3 + $0x150] sm:$0xff] %v820
      %829 = vst [vmem:[#allocation3 + $0x218] sm:$0xff] %v821
      %830 = vst [vmem:[#allocation3 + $0x2e0] sm:$0xff] %v822
      %831 = vst [vmem:[#allocation3 + $0x3a8] sm:$0xff] %v823
      %832 = vst [vmem:[#allocation3 + $0x470] sm:$0xff] %v824
      %833 = vst [vmem:[#allocation3 + $0x538] sm:$0xff] %v825
      %834 = vst [vmem:[#allocation3 + $0x600] sm:$0xff] %v826
      %v835 = vld [vmem:[%s786 + $0x3] sm:$0xff]
      %v836 = vld [vmem:[%s786 + $0x13] sm:$0xff]
      %v837 = vld [vmem:[%s786 + $0x23] sm:$0xff]
      %v838 = vld [vmem:[%s786 + $0x33] sm:$0xff]
      %v839 = vld [vmem:[%s786 + $0x43] sm:$0xff]
      %v840 = vld [vmem:[%s786 + $0x53] sm:$0xff]
      %v841 = vld [vmem:[%s786 + $0x63] sm:$0xff]
      %v842 = vld [vmem:[%s786 + $0x73] sm:$0xff]
      %843 = vst [vmem:[#allocation3 + $0x90] sm:$0xff] %v835
      %844 = vst [vmem:[#allocation3 + $0x158] sm:$0xff] %v836
      %845 = vst [vmem:[#allocation3 + $0x220] sm:$0xff] %v837
      %846 = vst [vmem:[#allocation3 + $0x2e8] sm:$0xff] %v838
      %847 = vst [vmem:[#allocation3 + $0x3b0] sm:$0xff] %v839
      %848 = vst [vmem:[#allocation3 + $0x478] sm:$0xff] %v840
      %849 = vst [vmem:[#allocation3 + $0x540] sm:$0xff] %v841
      %850 = vst [vmem:[#allocation3 + $0x608] sm:$0xff] %v842
      %v851 = vld [vmem:[%s786 + $0x4] sm:$0xff]
      %v852 = vld [vmem:[%s786 + $0x14] sm:$0xff]
      %v853 = vld [vmem:[%s786 + $0x24] sm:$0xff]
      %v854 = vld [vmem:[%s786 + $0x34] sm:$0xff]
      %v855 = vld [vmem:[%s786 + $0x44] sm:$0xff]
      %v856 = vld [vmem:[%s786 + $0x54] sm:$0xff]
      %v857 = vld [vmem:[%s786 + $0x64] sm:$0xff]
      %v858 = vld [vmem:[%s786 + $0x74] sm:$0xff]
      %859 = vst [vmem:[#allocation3 + $0x98] sm:$0xff] %v851
      %860 = vst [vmem:[#allocation3 + $0x160] sm:$0xff] %v852
      %861 = vst [vmem:[#allocation3 + $0x228] sm:$0xff] %v853
      %862 = vst [vmem:[#allocation3 + $0x2f0] sm:$0xff] %v854
      %863 = vst [vmem:[#allocation3 + $0x3b8] sm:$0xff] %v855
      %864 = vst [vmem:[#allocation3 + $0x480] sm:$0xff] %v856
      %865 = vst [vmem:[#allocation3 + $0x548] sm:$0xff] %v857
      %866 = vst [vmem:[#allocation3 + $0x610] sm:$0xff] %v858
      %s867 = scalar_lea.vmem [#allocation2], 64
      %v868 = vld [vmem:[%s867] sm:$0xff]
      %v869 = vld [vmem:[%s867 + $0x10] sm:$0xff]
      %v870 = vld [vmem:[%s867 + $0x20] sm:$0xff]
      %v871 = vld [vmem:[%s867 + $0x30] sm:$0xff]
      %v872 = vld [vmem:[%s867 + $0x40] sm:$0xff]
      %v873 = vld [vmem:[%s867 + $0x50] sm:$0xff]
      %v874 = vld [vmem:[%s867 + $0x60] sm:$0xff]
      %v875 = vld [vmem:[%s867 + $0x70] sm:$0xff]
      %876 = vst [vmem:[#allocation3 + $0xa0] sm:$0xff] %v868
      %877 = vst [vmem:[#allocation3 + $0x168] sm:$0xff] %v869
      %878 = vst [vmem:[#allocation3 + $0x230] sm:$0xff] %v870
      %879 = vst [vmem:[#allocation3 + $0x2f8] sm:$0xff] %v871
      %880 = vst [vmem:[#allocation3 + $0x3c0] sm:$0xff] %v872
      %881 = vst [vmem:[#allocation3 + $0x488] sm:$0xff] %v873
      %882 = vst [vmem:[#allocation3 + $0x550] sm:$0xff] %v874
      %883 = vst [vmem:[#allocation3 + $0x618] sm:$0xff] %v875
      %v884 = vld [vmem:[%s867 + $0x1] sm:$0xff]
      %v885 = vld [vmem:[%s867 + $0x11] sm:$0xff]
      %v886 = vld [vmem:[%s867 + $0x21] sm:$0xff]
      %v887 = vld [vmem:[%s867 + $0x31] sm:$0xff]
      %v888 = vld [vmem:[%s867 + $0x41] sm:$0xff]
      %v889 = vld [vmem:[%s867 + $0x51] sm:$0xff]
      %v890 = vld [vmem:[%s867 + $0x61] sm:$0xff]
      %v891 = vld [vmem:[%s867 + $0x71] sm:$0xff]
      %892 = vst [vmem:[#allocation3 + $0xa8] sm:$0xff] %v884
      %893 = vst [vmem:[#allocation3 + $0x170] sm:$0xff] %v885
      %894 = vst [vmem:[#allocation3 + $0x238] sm:$0xff] %v886
      %895 = vst [vmem:[#allocation3 + $0x300] sm:$0xff] %v887
      %896 = vst [vmem:[#allocation3 + $0x3c8] sm:$0xff] %v888
      %897 = vst [vmem:[#allocation3 + $0x490] sm:$0xff] %v889
      %898 = vst [vmem:[#allocation3 + $0x558] sm:$0xff] %v890
      %899 = vst [vmem:[#allocation3 + $0x620] sm:$0xff] %v891
      %v900 = vld [vmem:[%s867 + $0x2] sm:$0xff]
      %v901 = vld [vmem:[%s867 + $0x12] sm:$0xff]
      %v902 = vld [vmem:[%s867 + $0x22] sm:$0xff]
      %v903 = vld [vmem:[%s867 + $0x32] sm:$0xff]
      %v904 = vld [vmem:[%s867 + $0x42] sm:$0xff]
      %v905 = vld [vmem:[%s867 + $0x52] sm:$0xff]
      %v906 = vld [vmem:[%s867 + $0x62] sm:$0xff]
      %v907 = vld [vmem:[%s867 + $0x72] sm:$0xff]
      %908 = vst [vmem:[#allocation3 + $0xb0] sm:$0xff] %v900
      %909 = vst [vmem:[#allocation3 + $0x178] sm:$0xff] %v901
      %910 = vst [vmem:[#allocation3 + $0x240] sm:$0xff] %v902
      %911 = vst [vmem:[#allocation3 + $0x308] sm:$0xff] %v903
      %912 = vst [vmem:[#allocation3 + $0x3d0] sm:$0xff] %v904
      %913 = vst [vmem:[#allocation3 + $0x498] sm:$0xff] %v905
      %914 = vst [vmem:[#allocation3 + $0x560] sm:$0xff] %v906
      %915 = vst [vmem:[#allocation3 + $0x628] sm:$0xff] %v907
      %v916 = vld [vmem:[%s867 + $0x3] sm:$0xff]
      %v917 = vld [vmem:[%s867 + $0x13] sm:$0xff]
      %v918 = vld [vmem:[%s867 + $0x23] sm:$0xff]
      %v919 = vld [vmem:[%s867 + $0x33] sm:$0xff]
      %v920 = vld [vmem:[%s867 + $0x43] sm:$0xff]
      %v921 = vld [vmem:[%s867 + $0x53] sm:$0xff]
      %v922 = vld [vmem:[%s867 + $0x63] sm:$0xff]
      %v923 = vld [vmem:[%s867 + $0x73] sm:$0xff]
      %924 = vst [vmem:[#allocation3 + $0xb8] sm:$0xff] %v916
      %925 = vst [vmem:[#allocation3 + $0x180] sm:$0xff] %v917
      %926 = vst [vmem:[#allocation3 + $0x248] sm:$0xff] %v918
      %927 = vst [vmem:[#allocation3 + $0x310] sm:$0xff] %v919
      %928 = vst [vmem:[#allocation3 + $0x3d8] sm:$0xff] %v920
      %929 = vst [vmem:[#allocation3 + $0x4a0] sm:$0xff] %v921
      %930 = vst [vmem:[#allocation3 + $0x568] sm:$0xff] %v922
      %931 = vst [vmem:[#allocation3 + $0x630] sm:$0xff] %v923
      %v932 = vld [vmem:[%s867 + $0x4] sm:$0xff]
      %v933 = vld [vmem:[%s867 + $0x14] sm:$0xff]
      %v934 = vld [vmem:[%s867 + $0x24] sm:$0xff]
      %v935 = vld [vmem:[%s867 + $0x34] sm:$0xff]
      %v936 = vld [vmem:[%s867 + $0x44] sm:$0xff]
      %v937 = vld [vmem:[%s867 + $0x54] sm:$0xff]
      %v938 = vld [vmem:[%s867 + $0x64] sm:$0xff]
      %v939 = vld [vmem:[%s867 + $0x74] sm:$0xff]
      %940 = vst [vmem:[#allocation3 + $0xc0] sm:$0xff] %v932
      %941 = vst [vmem:[#allocation3 + $0x188] sm:$0xff] %v933
      %942 = vst [vmem:[#allocation3 + $0x250] sm:$0xff] %v934
      %943 = vst [vmem:[#allocation3 + $0x318] sm:$0xff] %v935
      %944 = vst [vmem:[#allocation3 + $0x3e0] sm:$0xff] %v936
      %945 = vst [vmem:[#allocation3 + $0x4a8] sm:$0xff] %v937
      %946 = vst [vmem:[#allocation3 + $0x570] sm:$0xff] %v938
      %947 = vst [vmem:[#allocation3 + $0x638] sm:$0xff] %v939
      %v948 = vld [vmem:[#allocation3] sm:$0xff]
      %v949 = vld [vmem:[#allocation3 + $0x8] sm:$0xff]
      %v950 = vld [vmem:[#allocation3 + $0x10] sm:$0xff]
      %v951 = vld [vmem:[#allocation3 + $0x18] sm:$0xff]
      %v952 = vld [vmem:[#allocation3 + $0x20] sm:$0xff]
      %v953 = vld [vmem:[#allocation3 + $0x28] sm:$0xff]
      %v954 = vld [vmem:[#allocation3 + $0x30] sm:$0xff]
      %v955 = vld [vmem:[#allocation3 + $0x38] sm:$0xff]
      %v956 = vld [vmem:[#allocation3 + $0x40] sm:$0xff]
      %v957 = vld [vmem:[#allocation3 + $0x48] sm:$0xff]
      %v958 = vld [vmem:[#allocation3 + $0x50] sm:$0xff]
      %v959 = vld [vmem:[#allocation3 + $0x58] sm:$0xff]
      %v960 = vld [vmem:[#allocation3 + $0x60] sm:$0xff]
      %v961 = vld [vmem:[#allocation3 + $0x68] sm:$0xff]
      %v962 = vld [vmem:[#allocation3 + $0x70] sm:$0xff]
      %v963 = vld [vmem:[#allocation3 + $0x78] sm:$0xff]
      %v964 = vld [vmem:[#allocation3 + $0x80] sm:$0xff]
      %v965 = vld [vmem:[#allocation3 + $0x88] sm:$0xff]
      %v966 = vld [vmem:[#allocation3 + $0x90] sm:$0xff]
      %v967 = vld [vmem:[#allocation3 + $0x98] sm:$0xff]
      %v968 = vld [vmem:[#allocation3 + $0xa0] sm:$0xff]
      %v969 = vld [vmem:[#allocation3 + $0xa8] sm:$0xff]
      %v970 = vld [vmem:[#allocation3 + $0xb0] sm:$0xff]
      %v971 = vld [vmem:[#allocation3 + $0xb8] sm:$0xff]
      %v972 = vld [vmem:[#allocation3 + $0xc0] sm:$0xff]
      %v973 = vld [vmem:[#allocation3 + $0xc8] sm:$0xff]
      %v974 = vld [vmem:[#allocation3 + $0xd0] sm:$0xff]
      %v975 = vld [vmem:[#allocation3 + $0xd8] sm:$0xff]
      %v976 = vld [vmem:[#allocation3 + $0xe0] sm:$0xff]
      %v977 = vld [vmem:[#allocation3 + $0xe8] sm:$0xff]
      %v978 = vld [vmem:[#allocation3 + $0xf0] sm:$0xff]
      %v979 = vld [vmem:[#allocation3 + $0xf8] sm:$0xff]
      %v980 = vld [vmem:[#allocation3 + $0x100] sm:$0xff]
      %v981 = vld [vmem:[#allocation3 + $0x108] sm:$0xff]
      %v982 = vld [vmem:[#allocation3 + $0x110] sm:$0xff]
      %v983 = vld [vmem:[#allocation3 + $0x118] sm:$0xff]
      %v984 = vld [vmem:[#allocation3 + $0x120] sm:$0xff]
      %v985 = vld [vmem:[#allocation3 + $0x128] sm:$0xff]
      %v986 = vld [vmem:[#allocation3 + $0x130] sm:$0xff]
      %v987 = vld [vmem:[#allocation3 + $0x138] sm:$0xff]
      %v988 = vld [vmem:[#allocation3 + $0x140] sm:$0xff]
      %v989 = vld [vmem:[#allocation3 + $0x148] sm:$0xff]
      %v990 = vld [vmem:[#allocation3 + $0x150] sm:$0xff]
      %v991 = vld [vmem:[#allocation3 + $0x158] sm:$0xff]
      %v992 = vld [vmem:[#allocation3 + $0x160] sm:$0xff]
      %v993 = vld [vmem:[#allocation3 + $0x168] sm:$0xff]
      %v994 = vld [vmem:[#allocation3 + $0x170] sm:$0xff]
      %v995 = vld [vmem:[#allocation3 + $0x178] sm:$0xff]
      %v996 = vld [vmem:[#allocation3 + $0x180] sm:$0xff]
      %v997 = vld [vmem:[#allocation3 + $0x188] sm:$0xff]
      %v998 = vld [vmem:[#allocation3 + $0x190] sm:$0xff]
      %v999 = vld [vmem:[#allocation3 + $0x198] sm:$0xff]
      %v1000 = vld [vmem:[#allocation3 + $0x1a0] sm:$0xff]
      %v1001 = vld [vmem:[#allocation3 + $0x1a8] sm:$0xff]
      %v1002 = vld [vmem:[#allocation3 + $0x1b0] sm:$0xff]
      %v1003 = vld [vmem:[#allocation3 + $0x1b8] sm:$0xff]
      %v1004 = vld [vmem:[#allocation3 + $0x1c0] sm:$0xff]
      %v1005 = vld [vmem:[#allocation3 + $0x1c8] sm:$0xff]
      %v1006 = vld [vmem:[#allocation3 + $0x1d0] sm:$0xff]
      %v1007 = vld [vmem:[#allocation3 + $0x1d8] sm:$0xff]
      %v1008 = vld [vmem:[#allocation3 + $0x1e0] sm:$0xff]
      %v1009 = vld [vmem:[#allocation3 + $0x1e8] sm:$0xff]
      %v1010 = vld [vmem:[#allocation3 + $0x1f0] sm:$0xff]
      %v1011 = vld [vmem:[#allocation3 + $0x1f8] sm:$0xff]
      %v1012 = vld [vmem:[#allocation3 + $0x200] sm:$0xff]
      %v1013 = vld [vmem:[#allocation3 + $0x208] sm:$0xff]
      %v1014 = vld [vmem:[#allocation3 + $0x210] sm:$0xff]
      %v1015 = vld [vmem:[#allocation3 + $0x218] sm:$0xff]
      %v1016 = vld [vmem:[#allocation3 + $0x220] sm:$0xff]
      %v1017 = vld [vmem:[#allocation3 + $0x228] sm:$0xff]
      %v1018 = vld [vmem:[#allocation3 + $0x230] sm:$0xff]
      %v1019 = vld [vmem:[#allocation3 + $0x238] sm:$0xff]
      %v1020 = vld [vmem:[#allocation3 + $0x240] sm:$0xff]
      %v1021 = vld [vmem:[#allocation3 + $0x248] sm:$0xff]
      %v1022 = vld [vmem:[#allocation3 + $0x250] sm:$0xff]
      %v1023 = vld [vmem:[#allocation3 + $0x258] sm:$0xff]
      %v1024 = vld [vmem:[#allocation3 + $0x260] sm:$0xff]
      %v1025 = vld [vmem:[#allocation3 + $0x268] sm:$0xff]
      %v1026 = vld [vmem:[#allocation3 + $0x270] sm:$0xff]
      %v1027 = vld [vmem:[#allocation3 + $0x278] sm:$0xff]
      %v1028 = vld [vmem:[#allocation3 + $0x280] sm:$0xff]
      %v1029 = vld [vmem:[#allocation3 + $0x288] sm:$0xff]
      %v1030 = vld [vmem:[#allocation3 + $0x290] sm:$0xff]
      %v1031 = vld [vmem:[#allocation3 + $0x298] sm:$0xff]
      %v1032 = vld [vmem:[#allocation3 + $0x2a0] sm:$0xff]
      %v1033 = vld [vmem:[#allocation3 + $0x2a8] sm:$0xff]
      %v1034 = vld [vmem:[#allocation3 + $0x2b0] sm:$0xff]
      %v1035 = vld [vmem:[#allocation3 + $0x2b8] sm:$0xff]
      %v1036 = vld [vmem:[#allocation3 + $0x2c0] sm:$0xff]
      %v1037 = vld [vmem:[#allocation3 + $0x2c8] sm:$0xff]
      %v1038 = vld [vmem:[#allocation3 + $0x2d0] sm:$0xff]
      %v1039 = vld [vmem:[#allocation3 + $0x2d8] sm:$0xff]
      %v1040 = vld [vmem:[#allocation3 + $0x2e0] sm:$0xff]
      %v1041 = vld [vmem:[#allocation3 + $0x2e8] sm:$0xff]
      %v1042 = vld [vmem:[#allocation3 + $0x2f0] sm:$0xff]
      %v1043 = vld [vmem:[#allocation3 + $0x2f8] sm:$0xff]
      %v1044 = vld [vmem:[#allocation3 + $0x300] sm:$0xff]
      %v1045 = vld [vmem:[#allocation3 + $0x308] sm:$0xff]
      %v1046 = vld [vmem:[#allocation3 + $0x310] sm:$0xff]
      %v1047 = vld [vmem:[#allocation3 + $0x318] sm:$0xff]
      %v1048 = vld [vmem:[#allocation3 + $0x320] sm:$0xff]
      %v1049 = vld [vmem:[#allocation3 + $0x328] sm:$0xff]
      %v1050 = vld [vmem:[#allocation3 + $0x330] sm:$0xff]
      %v1051 = vld [vmem:[#allocation3 + $0x338] sm:$0xff]
      %v1052 = vld [vmem:[#allocation3 + $0x340] sm:$0xff]
      %v1053 = vld [vmem:[#allocation3 + $0x348] sm:$0xff]
      %v1054 = vld [vmem:[#allocation3 + $0x350] sm:$0xff]
      %v1055 = vld [vmem:[#allocation3 + $0x358] sm:$0xff]
      %v1056 = vld [vmem:[#allocation3 + $0x360] sm:$0xff]
      %v1057 = vld [vmem:[#allocation3 + $0x368] sm:$0xff]
      %v1058 = vld [vmem:[#allocation3 + $0x370] sm:$0xff]
      %v1059 = vld [vmem:[#allocation3 + $0x378] sm:$0xff]
      %v1060 = vld [vmem:[#allocation3 + $0x380] sm:$0xff]
      %v1061 = vld [vmem:[#allocation3 + $0x388] sm:$0xff]
      %v1062 = vld [vmem:[#allocation3 + $0x390] sm:$0xff]
      %v1063 = vld [vmem:[#allocation3 + $0x398] sm:$0xff]
      %v1064 = vld [vmem:[#allocation3 + $0x3a0] sm:$0xff]
      %v1065 = vld [vmem:[#allocation3 + $0x3a8] sm:$0xff]
      %v1066 = vld [vmem:[#allocation3 + $0x3b0] sm:$0xff]
      %v1067 = vld [vmem:[#allocation3 + $0x3b8] sm:$0xff]
      %v1068 = vld [vmem:[#allocation3 + $0x3c0] sm:$0xff]
      %v1069 = vld [vmem:[#allocation3 + $0x3c8] sm:$0xff]
      %v1070 = vld [vmem:[#allocation3 + $0x3d0] sm:$0xff]
      %v1071 = vld [vmem:[#allocation3 + $0x3d8] sm:$0xff]
      %v1072 = vld [vmem:[#allocation3 + $0x3e0] sm:$0xff]
      %v1073 = vld [vmem:[#allocation3 + $0x3e8] sm:$0xff]
      %v1074 = vld [vmem:[#allocation3 + $0x3f0] sm:$0xff]
      %v1075 = vld [vmem:[#allocation3 + $0x3f8] sm:$0xff]
      %v1076 = vld [vmem:[#allocation3 + $0x400] sm:$0xff]
      %v1077 = vld [vmem:[#allocation3 + $0x408] sm:$0xff]
      %v1078 = vld [vmem:[#allocation3 + $0x410] sm:$0xff]
      %v1079 = vld [vmem:[#allocation3 + $0x418] sm:$0xff]
      %v1080 = vld [vmem:[#allocation3 + $0x420] sm:$0xff]
      %v1081 = vld [vmem:[#allocation3 + $0x428] sm:$0xff]
      %v1082 = vld [vmem:[#allocation3 + $0x430] sm:$0xff]
      %v1083 = vld [vmem:[#allocation3 + $0x438] sm:$0xff]
      %v1084 = vld [vmem:[#allocation3 + $0x440] sm:$0xff]
      %v1085 = vld [vmem:[#allocation3 + $0x448] sm:$0xff]
      %v1086 = vld [vmem:[#allocation3 + $0x450] sm:$0xff]
      %v1087 = vld [vmem:[#allocation3 + $0x458] sm:$0xff]
      %v1088 = vld [vmem:[#allocation3 + $0x460] sm:$0xff]
      %v1089 = vld [vmem:[#allocation3 + $0x468] sm:$0xff]
      %v1090 = vld [vmem:[#allocation3 + $0x470] sm:$0xff]
      %v1091 = vld [vmem:[#allocation3 + $0x478] sm:$0xff]
      %v1092 = vld [vmem:[#allocation3 + $0x480] sm:$0xff]
      %v1093 = vld [vmem:[#allocation3 + $0x488] sm:$0xff]
      %v1094 = vld [vmem:[#allocation3 + $0x490] sm:$0xff]
      %v1095 = vld [vmem:[#allocation3 + $0x498] sm:$0xff]
      %v1096 = vld [vmem:[#allocation3 + $0x4a0] sm:$0xff]
      %v1097 = vld [vmem:[#allocation3 + $0x4a8] sm:$0xff]
      %v1098 = vld [vmem:[#allocation3 + $0x4b0] sm:$0xff]
      %v1099 = vld [vmem:[#allocation3 + $0x4b8] sm:$0xff]
      %v1100 = vld [vmem:[#allocation3 + $0x4c0] sm:$0xff]
      %v1101 = vld [vmem:[#allocation3 + $0x4c8] sm:$0xff]
      %v1102 = vld [vmem:[#allocation3 + $0x4d0] sm:$0xff]
      %v1103 = vld [vmem:[#allocation3 + $0x4d8] sm:$0xff]
      %v1104 = vld [vmem:[#allocation3 + $0x4e0] sm:$0xff]
      %v1105 = vld [vmem:[#allocation3 + $0x4e8] sm:$0xff]
      %v1106 = vld [vmem:[#allocation3 + $0x4f0] sm:$0xff]
      %v1107 = vld [vmem:[#allocation3 + $0x4f8] sm:$0xff]
      %v1108 = vld [vmem:[#allocation3 + $0x500] sm:$0xff]
      %v1109 = vld [vmem:[#allocation3 + $0x508] sm:$0xff]
      %v1110 = vld [vmem:[#allocation3 + $0x510] sm:$0xff]
      %v1111 = vld [vmem:[#allocation3 + $0x518] sm:$0xff]
      %v1112 = vld [vmem:[#allocation3 + $0x520] sm:$0xff]
      %v1113 = vld [vmem:[#allocation3 + $0x528] sm:$0xff]
      %v1114 = vld [vmem:[#allocation3 + $0x530] sm:$0xff]
      %v1115 = vld [vmem:[#allocation3 + $0x538] sm:$0xff]
      %v1116 = vld [vmem:[#allocation3 + $0x540] sm:$0xff]
      %v1117 = vld [vmem:[#allocation3 + $0x548] sm:$0xff]
      %v1118 = vld [vmem:[#allocation3 + $0x550] sm:$0xff]
      %v1119 = vld [vmem:[#allocation3 + $0x558] sm:$0xff]
      %v1120 = vld [vmem:[#allocation3 + $0x560] sm:$0xff]
      %v1121 = vld [vmem:[#allocation3 + $0x568] sm:$0xff]
      %v1122 = vld [vmem:[#allocation3 + $0x570] sm:$0xff]
      %v1123 = vld [vmem:[#allocation3 + $0x578] sm:$0xff]
      %v1124 = vld [vmem:[#allocation3 + $0x580] sm:$0xff]
      %v1125 = vld [vmem:[#allocation3 + $0x588] sm:$0xff]
      %v1126 = vld [vmem:[#allocation3 + $0x590] sm:$0xff]
      %v1127 = vld [vmem:[#allocation3 + $0x598] sm:$0xff]
      %v1128 = vld [vmem:[#allocation3 + $0x5a0] sm:$0xff]
      %v1129 = vld [vmem:[#allocation3 + $0x5a8] sm:$0xff]
      %v1130 = vld [vmem:[#allocation3 + $0x5b0] sm:$0xff]
      %v1131 = vld [vmem:[#allocation3 + $0x5b8] sm:$0xff]
      %v1132 = vld [vmem:[#allocation3 + $0x5c0] sm:$0xff]
      %v1133 = vld [vmem:[#allocation3 + $0x5c8] sm:$0xff]
      %v1134 = vld [vmem:[#allocation3 + $0x5d0] sm:$0xff]
      %v1135 = vld [vmem:[#allocation3 + $0x5d8] sm:$0xff]
      %v1136 = vld [vmem:[#allocation3 + $0x5e0] sm:$0xff]
      %v1137 = vld [vmem:[#allocation3 + $0x5e8] sm:$0xff]
      %v1138 = vld [vmem:[#allocation3 + $0x5f0] sm:$0xff]
      %v1139 = vld [vmem:[#allocation3 + $0x5f8] sm:$0xff]
      %v1140 = vld [vmem:[#allocation3 + $0x600] sm:$0xff]
      %v1141 = vld [vmem:[#allocation3 + $0x608] sm:$0xff]
      %v1142 = vld [vmem:[#allocation3 + $0x610] sm:$0xff]
      %v1143 = vld [vmem:[#allocation3 + $0x618] sm:$0xff]
      %v1144 = vld [vmem:[#allocation3 + $0x620] sm:$0xff]
      %v1145 = vld [vmem:[#allocation3 + $0x628] sm:$0xff]
      %v1146 = vld [vmem:[#allocation3 + $0x630] sm:$0xff]
      %v1147 = vld [vmem:[#allocation3 + $0x638] sm:$0xff]
      %v1148 = vld [vmem:[%s3] sm:$0xff]
      %v1149 = vld [vmem:[%s3 + $0x8] sm:$0xff]
      %v1150 = vld [vmem:[%s3 + $0x10] sm:$0xff]
      %v1151 = vld [vmem:[%s3 + $0x18] sm:$0xff]
      %v1152 = vld [vmem:[%s3 + $0x20] sm:$0xff]
      %v1153 = vld [vmem:[%s3 + $0x28] sm:$0xff]
      %v1154 = vld [vmem:[%s3 + $0x30] sm:$0xff]
      %v1155 = vld [vmem:[%s3 + $0x38] sm:$0xff]
      %v1156 = vld [vmem:[%s3 + $0x40] sm:$0xff]
      %v1157 = vld [vmem:[%s3 + $0x48] sm:$0xff]
      %v1158 = vld [vmem:[%s3 + $0x50] sm:$0xff]
      %v1159 = vld [vmem:[%s3 + $0x58] sm:$0xff]
      %v1160 = vld [vmem:[%s3 + $0x60] sm:$0xff]
      %v1161 = vld [vmem:[%s3 + $0x68] sm:$0xff]
      %v1162 = vld [vmem:[%s3 + $0x70] sm:$0xff]
      %v1163 = vld [vmem:[%s3 + $0x78] sm:$0xff]
      %v1164 = vld [vmem:[%s3 + $0x80] sm:$0xff]
      %v1165 = vld [vmem:[%s3 + $0x88] sm:$0xff]
      %v1166 = vld [vmem:[%s3 + $0x90] sm:$0xff]
      %v1167 = vld [vmem:[%s3 + $0x98] sm:$0xff]
      %v1168 = vld [vmem:[%s3 + $0xa0] sm:$0xff]
      %v1169 = vld [vmem:[%s3 + $0xa8] sm:$0xff]
      %v1170 = vld [vmem:[%s3 + $0xb0] sm:$0xff]
      %v1171 = vld [vmem:[%s3 + $0xb8] sm:$0xff]
      %v1172 = vld [vmem:[%s3 + $0xc0] sm:$0xff]
      %v1173 = vld [vmem:[%s3 + $0xc8] sm:$0xff]
      %v1174 = vld [vmem:[%s3 + $0xd0] sm:$0xff]
      %v1175 = vld [vmem:[%s3 + $0xd8] sm:$0xff]
      %v1176 = vld [vmem:[%s3 + $0xe0] sm:$0xff]
      %v1177 = vld [vmem:[%s3 + $0xe8] sm:$0xff]
      %v1178 = vld [vmem:[%s3 + $0xf0] sm:$0xff]
      %v1179 = vld [vmem:[%s3 + $0xf8] sm:$0xff]
      %v1180 = vld [vmem:[%s3 + $0x100] sm:$0xff]
      %v1181 = vld [vmem:[%s3 + $0x108] sm:$0xff]
      %v1182 = vld [vmem:[%s3 + $0x110] sm:$0xff]
      %v1183 = vld [vmem:[%s3 + $0x118] sm:$0xff]
      %v1184 = vld [vmem:[%s3 + $0x120] sm:$0xff]
      %v1185 = vld [vmem:[%s3 + $0x128] sm:$0xff]
      %v1186 = vld [vmem:[%s3 + $0x130] sm:$0xff]
      %v1187 = vld [vmem:[%s3 + $0x138] sm:$0xff]
      %v1188 = vld [vmem:[%s3 + $0x140] sm:$0xff]
      %v1189 = vld [vmem:[%s3 + $0x148] sm:$0xff]
      %v1190 = vld [vmem:[%s3 + $0x150] sm:$0xff]
      %v1191 = vld [vmem:[%s3 + $0x158] sm:$0xff]
      %v1192 = vld [vmem:[%s3 + $0x160] sm:$0xff]
      %v1193 = vld [vmem:[%s3 + $0x168] sm:$0xff]
      %v1194 = vld [vmem:[%s3 + $0x170] sm:$0xff]
      %v1195 = vld [vmem:[%s3 + $0x178] sm:$0xff]
      %v1196 = vld [vmem:[%s3 + $0x180] sm:$0xff]
      %v1197 = vld [vmem:[%s3 + $0x188] sm:$0xff]
      %v1198 = vld [vmem:[%s3 + $0x190] sm:$0xff]
      %v1199 = vld [vmem:[%s3 + $0x198] sm:$0xff]
      %v1200 = vld [vmem:[%s3 + $0x1a0] sm:$0xff]
      %v1201 = vld [vmem:[%s3 + $0x1a8] sm:$0xff]
      %v1202 = vld [vmem:[%s3 + $0x1b0] sm:$0xff]
      %v1203 = vld [vmem:[%s3 + $0x1b8] sm:$0xff]
      %v1204 = vld [vmem:[%s3 + $0x1c0] sm:$0xff]
      %v1205 = vld [vmem:[%s3 + $0x1c8] sm:$0xff]
      %v1206 = vld [vmem:[%s3 + $0x1d0] sm:$0xff]
      %v1207 = vld [vmem:[%s3 + $0x1d8] sm:$0xff]
      %v1208 = vld [vmem:[%s3 + $0x1e0] sm:$0xff]
      %v1209 = vld [vmem:[%s3 + $0x1e8] sm:$0xff]
      %v1210 = vld [vmem:[%s3 + $0x1f0] sm:$0xff]
      %v1211 = vld [vmem:[%s3 + $0x1f8] sm:$0xff]
      %v1212 = vld [vmem:[%s3 + $0x200] sm:$0xff]
      %v1213 = vld [vmem:[%s3 + $0x208] sm:$0xff]
      %v1214 = vld [vmem:[%s3 + $0x210] sm:$0xff]
      %v1215 = vld [vmem:[%s3 + $0x218] sm:$0xff]
      %v1216 = vld [vmem:[%s3 + $0x220] sm:$0xff]
      %v1217 = vld [vmem:[%s3 + $0x228] sm:$0xff]
      %v1218 = vld [vmem:[%s3 + $0x230] sm:$0xff]
      %v1219 = vld [vmem:[%s3 + $0x238] sm:$0xff]
      %v1220 = vld [vmem:[%s3 + $0x240] sm:$0xff]
      %v1221 = vld [vmem:[%s3 + $0x248] sm:$0xff]
      %v1222 = vld [vmem:[%s3 + $0x250] sm:$0xff]
      %v1223 = vld [vmem:[%s3 + $0x258] sm:$0xff]
      %v1224 = vld [vmem:[%s3 + $0x260] sm:$0xff]
      %v1225 = vld [vmem:[%s3 + $0x268] sm:$0xff]
      %v1226 = vld [vmem:[%s3 + $0x270] sm:$0xff]
      %v1227 = vld [vmem:[%s3 + $0x278] sm:$0xff]
      %v1228 = vld [vmem:[%s3 + $0x280] sm:$0xff]
      %v1229 = vld [vmem:[%s3 + $0x288] sm:$0xff]
      %v1230 = vld [vmem:[%s3 + $0x290] sm:$0xff]
      %v1231 = vld [vmem:[%s3 + $0x298] sm:$0xff]
      %v1232 = vld [vmem:[%s3 + $0x2a0] sm:$0xff]
      %v1233 = vld [vmem:[%s3 + $0x2a8] sm:$0xff]
      %v1234 = vld [vmem:[%s3 + $0x2b0] sm:$0xff]
      %v1235 = vld [vmem:[%s3 + $0x2b8] sm:$0xff]
      %v1236 = vld [vmem:[%s3 + $0x2c0] sm:$0xff]
      %v1237 = vld [vmem:[%s3 + $0x2c8] sm:$0xff]
      %v1238 = vld [vmem:[%s3 + $0x2d0] sm:$0xff]
      %v1239 = vld [vmem:[%s3 + $0x2d8] sm:$0xff]
      %v1240 = vld [vmem:[%s3 + $0x2e0] sm:$0xff]
      %v1241 = vld [vmem:[%s3 + $0x2e8] sm:$0xff]
      %v1242 = vld [vmem:[%s3 + $0x2f0] sm:$0xff]
      %v1243 = vld [vmem:[%s3 + $0x2f8] sm:$0xff]
      %v1244 = vld [vmem:[%s3 + $0x300] sm:$0xff]
      %v1245 = vld [vmem:[%s3 + $0x308] sm:$0xff]
      %v1246 = vld [vmem:[%s3 + $0x310] sm:$0xff]
      %v1247 = vld [vmem:[%s3 + $0x318] sm:$0xff]
      %v1248 = vld [vmem:[%s3 + $0x320] sm:$0xff]
      %v1249 = vld [vmem:[%s3 + $0x328] sm:$0xff]
      %v1250 = vld [vmem:[%s3 + $0x330] sm:$0xff]
      %v1251 = vld [vmem:[%s3 + $0x338] sm:$0xff]
      %v1252 = vld [vmem:[%s3 + $0x340] sm:$0xff]
      %v1253 = vld [vmem:[%s3 + $0x348] sm:$0xff]
      %v1254 = vld [vmem:[%s3 + $0x350] sm:$0xff]
      %v1255 = vld [vmem:[%s3 + $0x358] sm:$0xff]
      %v1256 = vld [vmem:[%s3 + $0x360] sm:$0xff]
      %v1257 = vld [vmem:[%s3 + $0x368] sm:$0xff]
      %v1258 = vld [vmem:[%s3 + $0x370] sm:$0xff]
      %v1259 = vld [vmem:[%s3 + $0x378] sm:$0xff]
      %v1260 = vld [vmem:[%s3 + $0x380] sm:$0xff]
      %v1261 = vld [vmem:[%s3 + $0x388] sm:$0xff]
      %v1262 = vld [vmem:[%s3 + $0x390] sm:$0xff]
      %v1263 = vld [vmem:[%s3 + $0x398] sm:$0xff]
      %v1264 = vld [vmem:[%s3 + $0x3a0] sm:$0xff]
      %v1265 = vld [vmem:[%s3 + $0x3a8] sm:$0xff]
      %v1266 = vld [vmem:[%s3 + $0x3b0] sm:$0xff]
      %v1267 = vld [vmem:[%s3 + $0x3b8] sm:$0xff]
      %v1268 = vld [vmem:[%s3 + $0x3c0] sm:$0xff]
      %v1269 = vld [vmem:[%s3 + $0x3c8] sm:$0xff]
      %v1270 = vld [vmem:[%s3 + $0x3d0] sm:$0xff]
      %v1271 = vld [vmem:[%s3 + $0x3d8] sm:$0xff]
      %v1272 = vld [vmem:[%s3 + $0x3e0] sm:$0xff]
      %v1273 = vld [vmem:[%s3 + $0x3e8] sm:$0xff]
      %v1274 = vld [vmem:[%s3 + $0x3f0] sm:$0xff]
      %v1275 = vld [vmem:[%s3 + $0x3f8] sm:$0xff]
      %v1276 = vld [vmem:[%s3 + $0x400] sm:$0xff]
      %v1277 = vld [vmem:[%s3 + $0x408] sm:$0xff]
      %v1278 = vld [vmem:[%s3 + $0x410] sm:$0xff]
      %v1279 = vld [vmem:[%s3 + $0x418] sm:$0xff]
      %v1280 = vld [vmem:[%s3 + $0x420] sm:$0xff]
      %v1281 = vld [vmem:[%s3 + $0x428] sm:$0xff]
      %v1282 = vld [vmem:[%s3 + $0x430] sm:$0xff]
      %v1283 = vld [vmem:[%s3 + $0x438] sm:$0xff]
      %v1284 = vld [vmem:[%s3 + $0x440] sm:$0xff]
      %v1285 = vld [vmem:[%s3 + $0x448] sm:$0xff]
      %v1286 = vld [vmem:[%s3 + $0x450] sm:$0xff]
      %v1287 = vld [vmem:[%s3 + $0x458] sm:$0xff]
      %v1288 = vld [vmem:[%s3 + $0x460] sm:$0xff]
      %v1289 = vld [vmem:[%s3 + $0x468] sm:$0xff]
      %v1290 = vld [vmem:[%s3 + $0x470] sm:$0xff]
      %v1291 = vld [vmem:[%s3 + $0x478] sm:$0xff]
      %v1292 = vld [vmem:[%s3 + $0x480] sm:$0xff]
      %v1293 = vld [vmem:[%s3 + $0x488] sm:$0xff]
      %v1294 = vld [vmem:[%s3 + $0x490] sm:$0xff]
      %v1295 = vld [vmem:[%s3 + $0x498] sm:$0xff]
      %v1296 = vld [vmem:[%s3 + $0x4a0] sm:$0xff]
      %v1297 = vld [vmem:[%s3 + $0x4a8] sm:$0xff]
      %v1298 = vld [vmem:[%s3 + $0x4b0] sm:$0xff]
      %v1299 = vld [vmem:[%s3 + $0x4b8] sm:$0xff]
      %v1300 = vld [vmem:[%s3 + $0x4c0] sm:$0xff]
      %v1301 = vld [vmem:[%s3 + $0x4c8] sm:$0xff]
      %v1302 = vld [vmem:[%s3 + $0x4d0] sm:$0xff]
      %v1303 = vld [vmem:[%s3 + $0x4d8] sm:$0xff]
      %v1304 = vld [vmem:[%s3 + $0x4e0] sm:$0xff]
      %v1305 = vld [vmem:[%s3 + $0x4e8] sm:$0xff]
      %v1306 = vld [vmem:[%s3 + $0x4f0] sm:$0xff]
      %v1307 = vld [vmem:[%s3 + $0x4f8] sm:$0xff]
      %v1308 = vld [vmem:[%s3 + $0x500] sm:$0xff]
      %v1309 = vld [vmem:[%s3 + $0x508] sm:$0xff]
      %v1310 = vld [vmem:[%s3 + $0x510] sm:$0xff]
      %v1311 = vld [vmem:[%s3 + $0x518] sm:$0xff]
      %v1312 = vld [vmem:[%s3 + $0x520] sm:$0xff]
      %v1313 = vld [vmem:[%s3 + $0x528] sm:$0xff]
      %v1314 = vld [vmem:[%s3 + $0x530] sm:$0xff]
      %v1315 = vld [vmem:[%s3 + $0x538] sm:$0xff]
      %v1316 = vld [vmem:[%s3 + $0x540] sm:$0xff]
      %v1317 = vld [vmem:[%s3 + $0x548] sm:$0xff]
      %v1318 = vld [vmem:[%s3 + $0x550] sm:$0xff]
      %v1319 = vld [vmem:[%s3 + $0x558] sm:$0xff]
      %v1320 = vld [vmem:[%s3 + $0x560] sm:$0xff]
      %v1321 = vld [vmem:[%s3 + $0x568] sm:$0xff]
      %v1322 = vld [vmem:[%s3 + $0x570] sm:$0xff]
      %v1323 = vld [vmem:[%s3 + $0x578] sm:$0xff]
      %v1324 = vld [vmem:[%s3 + $0x580] sm:$0xff]
      %v1325 = vld [vmem:[%s3 + $0x588] sm:$0xff]
      %v1326 = vld [vmem:[%s3 + $0x590] sm:$0xff]
      %v1327 = vld [vmem:[%s3 + $0x598] sm:$0xff]
      %v1328 = vld [vmem:[%s3 + $0x5a0] sm:$0xff]
      %v1329 = vld [vmem:[%s3 + $0x5a8] sm:$0xff]
      %v1330 = vld [vmem:[%s3 + $0x5b0] sm:$0xff]
      %v1331 = vld [vmem:[%s3 + $0x5b8] sm:$0xff]
      %v1332 = vld [vmem:[%s3 + $0x5c0] sm:$0xff]
      %v1333 = vld [vmem:[%s3 + $0x5c8] sm:$0xff]
      %v1334 = vld [vmem:[%s3 + $0x5d0] sm:$0xff]
      %v1335 = vld [vmem:[%s3 + $0x5d8] sm:$0xff]
      %v1336 = vld [vmem:[%s3 + $0x5e0] sm:$0xff]
      %v1337 = vld [vmem:[%s3 + $0x5e8] sm:$0xff]
      %v1338 = vld [vmem:[%s3 + $0x5f0] sm:$0xff]
      %v1339 = vld [vmem:[%s3 + $0x5f8] sm:$0xff]
      %v1340 = vld [vmem:[%s3 + $0x600] sm:$0xff]
      %v1341 = vld [vmem:[%s3 + $0x608] sm:$0xff]
      %v1342 = vld [vmem:[%s3 + $0x610] sm:$0xff]
      %v1343 = vld [vmem:[%s3 + $0x618] sm:$0xff]
      %v1344 = vld [vmem:[%s3 + $0x620] sm:$0xff]
      %v1345 = vld [vmem:[%s3 + $0x628] sm:$0xff]
      %v1346 = vld [vmem:[%s3 + $0x630] sm:$0xff]
      %v1347 = vld [vmem:[%s3 + $0x638] sm:$0xff]
      %v1348 = vld [vmem:[%s3 + $0x640] sm:$0xff]
      %v1349 = vld [vmem:[%s3 + $0x648] sm:$0xff]
      %v1350 = vld [vmem:[%s3 + $0x650] sm:$0xff]
      %v1351 = vld [vmem:[%s3 + $0x658] sm:$0xff]
      %v1352 = vld [vmem:[%s3 + $0x660] sm:$0xff]
      %v1353 = vld [vmem:[%s3 + $0x668] sm:$0xff]
      %v1354 = vld [vmem:[%s3 + $0x670] sm:$0xff]
      %v1355 = vld [vmem:[%s3 + $0x678] sm:$0xff]
      %v1356 = vld [vmem:[%s3 + $0x680] sm:$0xff]
      %v1357 = vld [vmem:[%s3 + $0x688] sm:$0xff]
      %v1358 = vld [vmem:[%s3 + $0x690] sm:$0xff]
      %v1359 = vld [vmem:[%s3 + $0x698] sm:$0xff]
      %v1360 = vld [vmem:[%s3 + $0x6a0] sm:$0xff]
      %v1361 = vld [vmem:[%s3 + $0x6a8] sm:$0xff]
      %v1362 = vld [vmem:[%s3 + $0x6b0] sm:$0xff]
      %v1363 = vld [vmem:[%s3 + $0x6b8] sm:$0xff]
      %v1364 = vld [vmem:[%s3 + $0x6c0] sm:$0xff]
      %v1365 = vld [vmem:[%s3 + $0x6c8] sm:$0xff]
      %v1366 = vld [vmem:[%s3 + $0x6d0] sm:$0xff]
      %v1367 = vld [vmem:[%s3 + $0x6d8] sm:$0xff]
      %v1368 = vld [vmem:[%s3 + $0x6e0] sm:$0xff]
      %v1369 = vld [vmem:[%s3 + $0x6e8] sm:$0xff]
      %v1370 = vld [vmem:[%s3 + $0x6f0] sm:$0xff]
      %v1371 = vld [vmem:[%s3 + $0x6f8] sm:$0xff]
      %v1372 = vld [vmem:[%s3 + $0x700] sm:$0xff]
      %v1373 = vld [vmem:[%s3 + $0x708] sm:$0xff]
      %v1374 = vld [vmem:[%s3 + $0x710] sm:$0xff]
      %v1375 = vld [vmem:[%s3 + $0x718] sm:$0xff]
      %v1376 = vld [vmem:[%s3 + $0x720] sm:$0xff]
      %v1377 = vld [vmem:[%s3 + $0x728] sm:$0xff]
      %v1378 = vld [vmem:[%s3 + $0x730] sm:$0xff]
      %v1379 = vld [vmem:[%s3 + $0x738] sm:$0xff]
      %v1380 = vld [vmem:[%s3 + $0x740] sm:$0xff]
      %v1381 = vld [vmem:[%s3 + $0x748] sm:$0xff]
      %v1382 = vld [vmem:[%s3 + $0x750] sm:$0xff]
      %v1383 = vld [vmem:[%s3 + $0x758] sm:$0xff]
      %v1384 = vld [vmem:[%s3 + $0x760] sm:$0xff]
      %v1385 = vld [vmem:[%s3 + $0x768] sm:$0xff]
      %v1386 = vld [vmem:[%s3 + $0x770] sm:$0xff]
      %v1387 = vld [vmem:[%s3 + $0x778] sm:$0xff]
      %v1388 = vld [vmem:[%s3 + $0x780] sm:$0xff]
      %v1389 = vld [vmem:[%s3 + $0x788] sm:$0xff]
      %v1390 = vld [vmem:[%s3 + $0x790] sm:$0xff]
      %v1391 = vld [vmem:[%s3 + $0x798] sm:$0xff]
      %v1392 = vld [vmem:[%s3 + $0x7a0] sm:$0xff]
      %v1393 = vld [vmem:[%s3 + $0x7a8] sm:$0xff]
      %v1394 = vld [vmem:[%s3 + $0x7b0] sm:$0xff]
      %v1395 = vld [vmem:[%s3 + $0x7b8] sm:$0xff]
      %v1396 = vld [vmem:[%s3 + $0x7c0] sm:$0xff]
      %v1397 = vld [vmem:[%s3 + $0x7c8] sm:$0xff]
      %v1398 = vld [vmem:[%s3 + $0x7d0] sm:$0xff]
      %v1399 = vld [vmem:[%s3 + $0x7d8] sm:$0xff]
      %v1400 = vld [vmem:[%s3 + $0x7e0] sm:$0xff]
      %v1401 = vld [vmem:[%s3 + $0x7e8] sm:$0xff]
      %v1402 = vld [vmem:[%s3 + $0x7f0] sm:$0xff]
      %v1403 = vld [vmem:[%s3 + $0x7f8] sm:$0xff]
      %v1404 = vld [vmem:[%s3 + $0x800] sm:$0xff]
      %v1405 = vld [vmem:[%s3 + $0x808] sm:$0xff]
      %v1406 = vld [vmem:[%s3 + $0x810] sm:$0xff]
      %v1407 = vld [vmem:[%s3 + $0x818] sm:$0xff]
      %v1408 = vld [vmem:[%s3 + $0x820] sm:$0xff]
      %v1409 = vld [vmem:[%s3 + $0x828] sm:$0xff]
      %v1410 = vld [vmem:[%s3 + $0x830] sm:$0xff]
      %v1411 = vld [vmem:[%s3 + $0x838] sm:$0xff]
      %v1412 = vld [vmem:[%s3 + $0x840] sm:$0xff]
      %v1413 = vld [vmem:[%s3 + $0x848] sm:$0xff]
      %v1414 = vld [vmem:[%s3 + $0x850] sm:$0xff]
      %v1415 = vld [vmem:[%s3 + $0x858] sm:$0xff]
      %v1416 = vld [vmem:[%s3 + $0x860] sm:$0xff]
      %v1417 = vld [vmem:[%s3 + $0x868] sm:$0xff]
      %v1418 = vld [vmem:[%s3 + $0x870] sm:$0xff]
      %v1419 = vld [vmem:[%s3 + $0x878] sm:$0xff]
      %v1420 = vld [vmem:[%s3 + $0x880] sm:$0xff]
      %v1421 = vld [vmem:[%s3 + $0x888] sm:$0xff]
      %v1422 = vld [vmem:[%s3 + $0x890] sm:$0xff]
      %v1423 = vld [vmem:[%s3 + $0x898] sm:$0xff]
      %v1424 = vld [vmem:[%s3 + $0x8a0] sm:$0xff]
      %v1425 = vld [vmem:[%s3 + $0x8a8] sm:$0xff]
      %v1426 = vld [vmem:[%s3 + $0x8b0] sm:$0xff]
      %v1427 = vld [vmem:[%s3 + $0x8b8] sm:$0xff]
      %v1428 = vld [vmem:[%s3 + $0x8c0] sm:$0xff]
      %v1429 = vld [vmem:[%s3 + $0x8c8] sm:$0xff]
      %v1430 = vld [vmem:[%s3 + $0x8d0] sm:$0xff]
      %v1431 = vld [vmem:[%s3 + $0x8d8] sm:$0xff]
      %v1432 = vld [vmem:[%s3 + $0x8e0] sm:$0xff]
      %v1433 = vld [vmem:[%s3 + $0x8e8] sm:$0xff]
      %v1434 = vld [vmem:[%s3 + $0x8f0] sm:$0xff]
      %v1435 = vld [vmem:[%s3 + $0x8f8] sm:$0xff]
      %v1436 = vld [vmem:[%s3 + $0x900] sm:$0xff]
      %v1437 = vld [vmem:[%s3 + $0x908] sm:$0xff]
      %v1438 = vld [vmem:[%s3 + $0x910] sm:$0xff]
      %v1439 = vld [vmem:[%s3 + $0x918] sm:$0xff]
      %v1440 = vld [vmem:[%s3 + $0x920] sm:$0xff]
      %v1441 = vld [vmem:[%s3 + $0x928] sm:$0xff]
      %v1442 = vld [vmem:[%s3 + $0x930] sm:$0xff]
      %v1443 = vld [vmem:[%s3 + $0x938] sm:$0xff]
      %v1444 = vld [vmem:[%s3 + $0x940] sm:$0xff]
      %v1445 = vld [vmem:[%s3 + $0x948] sm:$0xff]
      %v1446 = vld [vmem:[%s3 + $0x950] sm:$0xff]
      %v1447 = vld [vmem:[%s3 + $0x958] sm:$0xff]
      %v1448 = vld [vmem:[%s3 + $0x960] sm:$0xff]
      %v1449 = vld [vmem:[%s3 + $0x968] sm:$0xff]
      %v1450 = vld [vmem:[%s3 + $0x970] sm:$0xff]
      %v1451 = vld [vmem:[%s3 + $0x978] sm:$0xff]
      %v1452 = vld [vmem:[%s3 + $0x980] sm:$0xff]
      %v1453 = vld [vmem:[%s3 + $0x988] sm:$0xff]
      %v1454 = vld [vmem:[%s3 + $0x990] sm:$0xff]
      %v1455 = vld [vmem:[%s3 + $0x998] sm:$0xff]
      %v1456 = vld [vmem:[%s3 + $0x9a0] sm:$0xff]
      %v1457 = vld [vmem:[%s3 + $0x9a8] sm:$0xff]
      %v1458 = vld [vmem:[%s3 + $0x9b0] sm:$0xff]
      %v1459 = vld [vmem:[%s3 + $0x9b8] sm:$0xff]
      %v1460 = vld [vmem:[%s3 + $0x9c0] sm:$0xff]
      %v1461 = vld [vmem:[%s3 + $0x9c8] sm:$0xff]
      %v1462 = vld [vmem:[%s3 + $0x9d0] sm:$0xff]
      %v1463 = vld [vmem:[%s3 + $0x9d8] sm:$0xff]
      %v1464 = vld [vmem:[%s3 + $0x9e0] sm:$0xff]
      %v1465 = vld [vmem:[%s3 + $0x9e8] sm:$0xff]
      %v1466 = vld [vmem:[%s3 + $0x9f0] sm:$0xff]
      %v1467 = vld [vmem:[%s3 + $0x9f8] sm:$0xff]
      %v1468 = vld [vmem:[%s3 + $0xa00] sm:$0xff]
      %v1469 = vld [vmem:[%s3 + $0xa08] sm:$0xff]
      %v1470 = vld [vmem:[%s3 + $0xa10] sm:$0xff]
      %v1471 = vld [vmem:[%s3 + $0xa18] sm:$0xff]
      %v1472 = vld [vmem:[%s3 + $0xa20] sm:$0xff]
      %v1473 = vld [vmem:[%s3 + $0xa28] sm:$0xff]
      %v1474 = vld [vmem:[%s3 + $0xa30] sm:$0xff]
      %v1475 = vld [vmem:[%s3 + $0xa38] sm:$0xff]
      %v1476 = vld [vmem:[%s3 + $0xa40] sm:$0xff]
      %v1477 = vld [vmem:[%s3 + $0xa48] sm:$0xff]
      %v1478 = vld [vmem:[%s3 + $0xa50] sm:$0xff]
      %v1479 = vld [vmem:[%s3 + $0xa58] sm:$0xff]
      %v1480 = vld [vmem:[%s3 + $0xa60] sm:$0xff]
      %v1481 = vld [vmem:[%s3 + $0xa68] sm:$0xff]
      %v1482 = vld [vmem:[%s3 + $0xa70] sm:$0xff]
      %v1483 = vld [vmem:[%s3 + $0xa78] sm:$0xff]
      %v1484 = vld [vmem:[%s3 + $0xa80] sm:$0xff]
      %v1485 = vld [vmem:[%s3 + $0xa88] sm:$0xff]
      %v1486 = vld [vmem:[%s3 + $0xa90] sm:$0xff]
      %v1487 = vld [vmem:[%s3 + $0xa98] sm:$0xff]
      %v1488 = vld [vmem:[%s3 + $0xaa0] sm:$0xff]
      %v1489 = vld [vmem:[%s3 + $0xaa8] sm:$0xff]
      %v1490 = vld [vmem:[%s3 + $0xab0] sm:$0xff]
      %v1491 = vld [vmem:[%s3 + $0xab8] sm:$0xff]
      %v1492 = vld [vmem:[%s3 + $0xac0] sm:$0xff]
      %v1493 = vld [vmem:[%s3 + $0xac8] sm:$0xff]
      %v1494 = vld [vmem:[%s3 + $0xad0] sm:$0xff]
      %v1495 = vld [vmem:[%s3 + $0xad8] sm:$0xff]
      %v1496 = vld [vmem:[%s3 + $0xae0] sm:$0xff]
      %v1497 = vld [vmem:[%s3 + $0xae8] sm:$0xff]
      %v1498 = vld [vmem:[%s3 + $0xaf0] sm:$0xff]
      %v1499 = vld [vmem:[%s3 + $0xaf8] sm:$0xff]
      %v1500 = vld [vmem:[%s3 + $0xb00] sm:$0xff]
      %v1501 = vld [vmem:[%s3 + $0xb08] sm:$0xff]
      %v1502 = vld [vmem:[%s3 + $0xb10] sm:$0xff]
      %v1503 = vld [vmem:[%s3 + $0xb18] sm:$0xff]
      %v1504 = vld [vmem:[%s3 + $0xb20] sm:$0xff]
      %v1505 = vld [vmem:[%s3 + $0xb28] sm:$0xff]
      %v1506 = vld [vmem:[%s3 + $0xb30] sm:$0xff]
      %v1507 = vld [vmem:[%s3 + $0xb38] sm:$0xff]
      %v1508 = vld [vmem:[%s3 + $0xb40] sm:$0xff]
      %v1509 = vld [vmem:[%s3 + $0xb48] sm:$0xff]
      %v1510 = vld [vmem:[%s3 + $0xb50] sm:$0xff]
      %v1511 = vld [vmem:[%s3 + $0xb58] sm:$0xff]
      %v1512 = vld [vmem:[%s3 + $0xb60] sm:$0xff]
      %v1513 = vld [vmem:[%s3 + $0xb68] sm:$0xff]
      %v1514 = vld [vmem:[%s3 + $0xb70] sm:$0xff]
      %v1515 = vld [vmem:[%s3 + $0xb78] sm:$0xff]
      %v1516 = vld [vmem:[%s3 + $0xb80] sm:$0xff]
      %v1517 = vld [vmem:[%s3 + $0xb88] sm:$0xff]
      %v1518 = vld [vmem:[%s3 + $0xb90] sm:$0xff]
      %v1519 = vld [vmem:[%s3 + $0xb98] sm:$0xff]
      %v1520 = vld [vmem:[%s3 + $0xba0] sm:$0xff]
      %v1521 = vld [vmem:[%s3 + $0xba8] sm:$0xff]
      %v1522 = vld [vmem:[%s3 + $0xbb0] sm:$0xff]
      %v1523 = vld [vmem:[%s3 + $0xbb8] sm:$0xff]
      %v1524 = vld [vmem:[%s3 + $0xbc0] sm:$0xff]
      %v1525 = vld [vmem:[%s3 + $0xbc8] sm:$0xff]
      %v1526 = vld [vmem:[%s3 + $0xbd0] sm:$0xff]
      %v1527 = vld [vmem:[%s3 + $0xbd8] sm:$0xff]
      %v1528 = vld [vmem:[%s3 + $0xbe0] sm:$0xff]
      %v1529 = vld [vmem:[%s3 + $0xbe8] sm:$0xff]
      %v1530 = vld [vmem:[%s3 + $0xbf0] sm:$0xff]
      %v1531 = vld [vmem:[%s3 + $0xbf8] sm:$0xff]
      %v1532 = vld [vmem:[%s3 + $0xc00] sm:$0xff]
      %v1533 = vld [vmem:[%s3 + $0xc08] sm:$0xff]
      %v1534 = vld [vmem:[%s3 + $0xc10] sm:$0xff]
      %v1535 = vld [vmem:[%s3 + $0xc18] sm:$0xff]
      %v1536 = vld [vmem:[%s3 + $0xc20] sm:$0xff]
      %v1537 = vld [vmem:[%s3 + $0xc28] sm:$0xff]
      %v1538 = vld [vmem:[%s3 + $0xc30] sm:$0xff]
      %v1539 = vld [vmem:[%s3 + $0xc38] sm:$0xff]
      %v1540 = vld [vmem:[%s3 + $0xc40] sm:$0xff]
      %v1541 = vld [vmem:[%s3 + $0xc48] sm:$0xff]
      %v1542 = vld [vmem:[%s3 + $0xc50] sm:$0xff]
      %v1543 = vld [vmem:[%s3 + $0xc58] sm:$0xff]
      %v1544 = vld [vmem:[%s3 + $0xc60] sm:$0xff]
      %v1545 = vld [vmem:[%s3 + $0xc68] sm:$0xff]
      %v1546 = vld [vmem:[%s3 + $0xc70] sm:$0xff]
      %v1547 = vld [vmem:[%s3 + $0xc78] sm:$0xff]
      %v1548 = vld [vmem:[%s4] sm:$0x1]
      %v1550 = vperm.slane %v1548, 0
      %1552 = vmatpush.msra.mxu0 %v1163
      %1553 = vmatpush.msra.mxu0 %v1162
      %1554 = vmatpush.msra.mxu0 %v1161
      %1555 = vmatpush.msra.mxu0 %v1160
      %1556 = vmatpush.msra.mxu0 %v1159
      %1557 = vmatpush.msra.mxu0 %v1158
      %1558 = vmatpush.msra.mxu0 %v1157
      %1559 = vmatpush.msra.mxu0 %v1156
      %1560 = vmatpush.msra.mxu0 %v1155
      %1561 = vmatpush.msra.mxu0 %v1154
      %1562 = vmatpush.msra.mxu0 %v1153
      %1563 = vmatpush.msra.mxu0 %v1152
      %1564 = vmatpush.msra.mxu0 %v1151
      %1565 = vmatpush.msra.mxu0 %v1150
      %1566 = vmatpush.msra.mxu0 %v1149
      %1567 = vmatpush.msra.mxu0 %v1148
      %1568 = vmatmul.f32.gmra.mxu0 %v948
      %v1569 = vpop.f32.mrf.mxu0
      %v1570 = vadd.f32 %v1550, %v1569
      %1571 = vmatmul.f32.gmra.mxu0 %v973
      %v1572 = vpop.f32.mrf.mxu0
      %v1573 = vadd.f32 %v1550, %v1572
      %1574 = vmatmul.f32.gmra.mxu0 %v998
      %v1575 = vpop.f32.mrf.mxu0
      %v1576 = vadd.f32 %v1550, %v1575
      %1577 = vmatmul.f32.gmra.mxu0 %v1023
      %v1578 = vpop.f32.mrf.mxu0
      %v1579 = vadd.f32 %v1550, %v1578
      %1580 = vmatmul.f32.gmra.mxu0 %v1048
      %v1581 = vpop.f32.mrf.mxu0
      %v1582 = vadd.f32 %v1550, %v1581
      %1583 = vmatmul.f32.gmra.mxu0 %v1073
      %v1584 = vpop.f32.mrf.mxu0
      %v1585 = vadd.f32 %v1550, %v1584
      %1586 = vmatmul.f32.gmra.mxu0 %v1098
      %v1587 = vpop.f32.mrf.mxu0
      %v1588 = vadd.f32 %v1550, %v1587
      %1589 = vmatmul.f32.gmra.mxu0 %v1123
      %v1590 = vpop.f32.mrf.mxu0
      %v1591 = vadd.f32 %v1550, %v1590
      %1592 = vdwg.mxu0
      %1593 = vmatpush.msra.mxu0 %v1179
      %1594 = vmatpush.msra.mxu0 %v1178
      %1595 = vmatpush.msra.mxu0 %v1177
      %1596 = vmatpush.msra.mxu0 %v1176
      %1597 = vmatpush.msra.mxu0 %v1175
      %1598 = vmatpush.msra.mxu0 %v1174
      %1599 = vmatpush.msra.mxu0 %v1173
      %1600 = vmatpush.msra.mxu0 %v1172
      %1601 = vmatpush.msra.mxu0 %v1171
      %1602 = vmatpush.msra.mxu0 %v1170
      %1603 = vmatpush.msra.mxu0 %v1169
      %1604 = vmatpush.msra.mxu0 %v1168
      %1605 = vmatpush.msra.mxu0 %v1167
      %1606 = vmatpush.msra.mxu0 %v1166
      %1607 = vmatpush.msra.mxu0 %v1165
      %1608 = vmatpush.msra.mxu0 %v1164
      %1609 = vmatmul.f32.gmra.mxu0 %v949
      %v1610 = vpop.f32.mrf.mxu0
      %v1611 = vadd.f32 %v1570, %v1610
      %1612 = vmatmul.f32.gmra.mxu0 %v974
      %v1613 = vpop.f32.mrf.mxu0
      %v1614 = vadd.f32 %v1573, %v1613
      %1615 = vmatmul.f32.gmra.mxu0 %v999
      %v1616 = vpop.f32.mrf.mxu0
      %v1617 = vadd.f32 %v1576, %v1616
      %1618 = vmatmul.f32.gmra.mxu0 %v1024
      %v1619 = vpop.f32.mrf.mxu0
      %v1620 = vadd.f32 %v1579, %v1619
      %1621 = vmatmul.f32.gmra.mxu0 %v1049
      %v1622 = vpop.f32.mrf.mxu0
      %v1623 = vadd.f32 %v1582, %v1622
      %1624 = vmatmul.f32.gmra.mxu0 %v1074
      %v1625 = vpop.f32.mrf.mxu0
      %v1626 = vadd.f32 %v1585, %v1625
      %1627 = vmatmul.f32.gmra.mxu0 %v1099
      %v1628 = vpop.f32.mrf.mxu0
      %v1629 = vadd.f32 %v1588, %v1628
      %1630 = vmatmul.f32.gmra.mxu0 %v1124
      %v1631 = vpop.f32.mrf.mxu0
      %v1632 = vadd.f32 %v1591, %v1631
      %1633 = vdwg.mxu0
      %1634 = vmatpush.msra.mxu0 %v1195
      %1635 = vmatpush.msra.mxu0 %v1194
      %1636 = vmatpush.msra.mxu0 %v1193
      %1637 = vmatpush.msra.mxu0 %v1192
      %1638 = vmatpush.msra.mxu0 %v1191
      %1639 = vmatpush.msra.mxu0 %v1190
      %1640 = vmatpush.msra.mxu0 %v1189
      %1641 = vmatpush.msra.mxu0 %v1188
      %1642 = vmatpush.msra.mxu0 %v1187
      %1643 = vmatpush.msra.mxu0 %v1186
      %1644 = vmatpush.msra.mxu0 %v1185
      %1645 = vmatpush.msra.mxu0 %v1184
      %1646 = vmatpush.msra.mxu0 %v1183
      %1647 = vmatpush.msra.mxu0 %v1182
      %1648 = vmatpush.msra.mxu0 %v1181
      %1649 = vmatpush.msra.mxu0 %v1180
      %1650 = vmatmul.f32.gmra.mxu0 %v950
      %v1651 = vpop.f32.mrf.mxu0
      %v1652 = vadd.f32 %v1611, %v1651
      %1653 = vmatmul.f32.gmra.mxu0 %v975
      %v1654 = vpop.f32.mrf.mxu0
      %v1655 = vadd.f32 %v1614, %v1654
      %1656 = vmatmul.f32.gmra.mxu0 %v1000
      %v1657 = vpop.f32.mrf.mxu0
      %v1658 = vadd.f32 %v1617, %v1657
      %1659 = vmatmul.f32.gmra.mxu0 %v1025
      %v1660 = vpop.f32.mrf.mxu0
      %v1661 = vadd.f32 %v1620, %v1660
      %1662 = vmatmul.f32.gmra.mxu0 %v1050
      %v1663 = vpop.f32.mrf.mxu0
      %v1664 = vadd.f32 %v1623, %v1663
      %1665 = vmatmul.f32.gmra.mxu0 %v1075
      %v1666 = vpop.f32.mrf.mxu0
      %v1667 = vadd.f32 %v1626, %v1666
      %1668 = vmatmul.f32.gmra.mxu0 %v1100
      %v1669 = vpop.f32.mrf.mxu0
      %v1670 = vadd.f32 %v1629, %v1669
      %1671 = vmatmul.f32.gmra.mxu0 %v1125
      %v1672 = vpop.f32.mrf.mxu0
      %v1673 = vadd.f32 %v1632, %v1672
      %1674 = vdwg.mxu0
      %1675 = vmatpush.msra.mxu0 %v1211
      %1676 = vmatpush.msra.mxu0 %v1210
      %1677 = vmatpush.msra.mxu0 %v1209
      %1678 = vmatpush.msra.mxu0 %v1208
      %1679 = vmatpush.msra.mxu0 %v1207
      %1680 = vmatpush.msra.mxu0 %v1206
      %1681 = vmatpush.msra.mxu0 %v1205
      %1682 = vmatpush.msra.mxu0 %v1204
      %1683 = vmatpush.msra.mxu0 %v1203
      %1684 = vmatpush.msra.mxu0 %v1202
      %1685 = vmatpush.msra.mxu0 %v1201
      %1686 = vmatpush.msra.mxu0 %v1200
      %1687 = vmatpush.msra.mxu0 %v1199
      %1688 = vmatpush.msra.mxu0 %v1198
      %1689 = vmatpush.msra.mxu0 %v1197
      %1690 = vmatpush.msra.mxu0 %v1196
      %1691 = vmatmul.f32.gmra.mxu0 %v951
      %v1692 = vpop.f32.mrf.mxu0
      %v1693 = vadd.f32 %v1652, %v1692
      %1694 = vmatmul.f32.gmra.mxu0 %v976
      %v1695 = vpop.f32.mrf.mxu0
      %v1696 = vadd.f32 %v1655, %v1695
      %1697 = vmatmul.f32.gmra.mxu0 %v1001
      %v1698 = vpop.f32.mrf.mxu0
      %v1699 = vadd.f32 %v1658, %v1698
      %1700 = vmatmul.f32.gmra.mxu0 %v1026
      %v1701 = vpop.f32.mrf.mxu0
      %v1702 = vadd.f32 %v1661, %v1701
      %1703 = vmatmul.f32.gmra.mxu0 %v1051
      %v1704 = vpop.f32.mrf.mxu0
      %v1705 = vadd.f32 %v1664, %v1704
      %1706 = vmatmul.f32.gmra.mxu0 %v1076
      %v1707 = vpop.f32.mrf.mxu0
      %v1708 = vadd.f32 %v1667, %v1707
      %1709 = vmatmul.f32.gmra.mxu0 %v1101
      %v1710 = vpop.f32.mrf.mxu0
      %v1711 = vadd.f32 %v1670, %v1710
      %1712 = vmatmul.f32.gmra.mxu0 %v1126
      %v1713 = vpop.f32.mrf.mxu0
      %v1714 = vadd.f32 %v1673, %v1713
      %1715 = vdwg.mxu0
      %1716 = vmatpush.msra.mxu0 %v1227
      %1717 = vmatpush.msra.mxu0 %v1226
      %1718 = vmatpush.msra.mxu0 %v1225
      %1719 = vmatpush.msra.mxu0 %v1224
      %1720 = vmatpush.msra.mxu0 %v1223
      %1721 = vmatpush.msra.mxu0 %v1222
      %1722 = vmatpush.msra.mxu0 %v1221
      %1723 = vmatpush.msra.mxu0 %v1220
      %1724 = vmatpush.msra.mxu0 %v1219
      %1725 = vmatpush.msra.mxu0 %v1218
      %1726 = vmatpush.msra.mxu0 %v1217
      %1727 = vmatpush.msra.mxu0 %v1216
      %1728 = vmatpush.msra.mxu0 %v1215
      %1729 = vmatpush.msra.mxu0 %v1214
      %1730 = vmatpush.msra.mxu0 %v1213
      %1731 = vmatpush.msra.mxu0 %v1212
      %1732 = vmatmul.f32.gmra.mxu0 %v952
      %v1733 = vpop.f32.mrf.mxu0
      %v1734 = vadd.f32 %v1693, %v1733
      %1735 = vmatmul.f32.gmra.mxu0 %v977
      %v1736 = vpop.f32.mrf.mxu0
      %v1737 = vadd.f32 %v1696, %v1736
      %1738 = vmatmul.f32.gmra.mxu0 %v1002
      %v1739 = vpop.f32.mrf.mxu0
      %v1740 = vadd.f32 %v1699, %v1739
      %1741 = vmatmul.f32.gmra.mxu0 %v1027
      %v1742 = vpop.f32.mrf.mxu0
      %v1743 = vadd.f32 %v1702, %v1742
      %1744 = vmatmul.f32.gmra.mxu0 %v1052
      %v1745 = vpop.f32.mrf.mxu0
      %v1746 = vadd.f32 %v1705, %v1745
      %1747 = vmatmul.f32.gmra.mxu0 %v1077
      %v1748 = vpop.f32.mrf.mxu0
      %v1749 = vadd.f32 %v1708, %v1748
      %1750 = vmatmul.f32.gmra.mxu0 %v1102
      %v1751 = vpop.f32.mrf.mxu0
      %v1752 = vadd.f32 %v1711, %v1751
      %1753 = vmatmul.f32.gmra.mxu0 %v1127
      %v1754 = vpop.f32.mrf.mxu0
      %v1755 = vadd.f32 %v1714, %v1754
      %1756 = vdwg.mxu0
      %1757 = vmatpush.msra.mxu0 %v1243
      %1758 = vmatpush.msra.mxu0 %v1242
      %1759 = vmatpush.msra.mxu0 %v1241
      %1760 = vmatpush.msra.mxu0 %v1240
      %1761 = vmatpush.msra.mxu0 %v1239
      %1762 = vmatpush.msra.mxu0 %v1238
      %1763 = vmatpush.msra.mxu0 %v1237
      %1764 = vmatpush.msra.mxu0 %v1236
      %1765 = vmatpush.msra.mxu0 %v1235
      %1766 = vmatpush.msra.mxu0 %v1234
      %1767 = vmatpush.msra.mxu0 %v1233
      %1768 = vmatpush.msra.mxu0 %v1232
      %1769 = vmatpush.msra.mxu0 %v1231
      %1770 = vmatpush.msra.mxu0 %v1230
      %1771 = vmatpush.msra.mxu0 %v1229
      %1772 = vmatpush.msra.mxu0 %v1228
      %1773 = vmatmul.f32.gmra.mxu0 %v953
      %v1774 = vpop.f32.mrf.mxu0
      %v1775 = vadd.f32 %v1734, %v1774
      %1776 = vmatmul.f32.gmra.mxu0 %v978
      %v1777 = vpop.f32.mrf.mxu0
      %v1778 = vadd.f32 %v1737, %v1777
      %1779 = vmatmul.f32.gmra.mxu0 %v1003
      %v1780 = vpop.f32.mrf.mxu0
      %v1781 = vadd.f32 %v1740, %v1780
      %1782 = vmatmul.f32.gmra.mxu0 %v1028
      %v1783 = vpop.f32.mrf.mxu0
      %v1784 = vadd.f32 %v1743, %v1783
      %1785 = vmatmul.f32.gmra.mxu0 %v1053
      %v1786 = vpop.f32.mrf.mxu0
      %v1787 = vadd.f32 %v1746, %v1786
      %1788 = vmatmul.f32.gmra.mxu0 %v1078
      %v1789 = vpop.f32.mrf.mxu0
      %v1790 = vadd.f32 %v1749, %v1789
      %1791 = vmatmul.f32.gmra.mxu0 %v1103
      %v1792 = vpop.f32.mrf.mxu0
      %v1793 = vadd.f32 %v1752, %v1792
      %1794 = vmatmul.f32.gmra.mxu0 %v1128
      %v1795 = vpop.f32.mrf.mxu0
      %v1796 = vadd.f32 %v1755, %v1795
      %1797 = vdwg.mxu0
      %1798 = vmatpush.msra.mxu0 %v1259
      %1799 = vmatpush.msra.mxu0 %v1258
      %1800 = vmatpush.msra.mxu0 %v1257
      %1801 = vmatpush.msra.mxu0 %v1256
      %1802 = vmatpush.msra.mxu0 %v1255
      %1803 = vmatpush.msra.mxu0 %v1254
      %1804 = vmatpush.msra.mxu0 %v1253
      %1805 = vmatpush.msra.mxu0 %v1252
      %1806 = vmatpush.msra.mxu0 %v1251
      %1807 = vmatpush.msra.mxu0 %v1250
      %1808 = vmatpush.msra.mxu0 %v1249
      %1809 = vmatpush.msra.mxu0 %v1248
      %1810 = vmatpush.msra.mxu0 %v1247
      %1811 = vmatpush.msra.mxu0 %v1246
      %1812 = vmatpush.msra.mxu0 %v1245
      %1813 = vmatpush.msra.mxu0 %v1244
      %1814 = vmatmul.f32.gmra.mxu0 %v954
      %v1815 = vpop.f32.mrf.mxu0
      %v1816 = vadd.f32 %v1775, %v1815
      %1817 = vmatmul.f32.gmra.mxu0 %v979
      %v1818 = vpop.f32.mrf.mxu0
      %v1819 = vadd.f32 %v1778, %v1818
      %1820 = vmatmul.f32.gmra.mxu0 %v1004
      %v1821 = vpop.f32.mrf.mxu0
      %v1822 = vadd.f32 %v1781, %v1821
      %1823 = vmatmul.f32.gmra.mxu0 %v1029
      %v1824 = vpop.f32.mrf.mxu0
      %v1825 = vadd.f32 %v1784, %v1824
      %1826 = vmatmul.f32.gmra.mxu0 %v1054
      %v1827 = vpop.f32.mrf.mxu0
      %v1828 = vadd.f32 %v1787, %v1827
      %1829 = vmatmul.f32.gmra.mxu0 %v1079
      %v1830 = vpop.f32.mrf.mxu0
      %v1831 = vadd.f32 %v1790, %v1830
      %1832 = vmatmul.f32.gmra.mxu0 %v1104
      %v1833 = vpop.f32.mrf.mxu0
      %v1834 = vadd.f32 %v1793, %v1833
      %1835 = vmatmul.f32.gmra.mxu0 %v1129
      %v1836 = vpop.f32.mrf.mxu0
      %v1837 = vadd.f32 %v1796, %v1836
      %1838 = vdwg.mxu0
      %1839 = vmatpush.msra.mxu0 %v1275
      %1840 = vmatpush.msra.mxu0 %v1274
      %1841 = vmatpush.msra.mxu0 %v1273
      %1842 = vmatpush.msra.mxu0 %v1272
      %1843 = vmatpush.msra.mxu0 %v1271
      %1844 = vmatpush.msra.mxu0 %v1270
      %1845 = vmatpush.msra.mxu0 %v1269
      %1846 = vmatpush.msra.mxu0 %v1268
      %1847 = vmatpush.msra.mxu0 %v1267
      %1848 = vmatpush.msra.mxu0 %v1266
      %1849 = vmatpush.msra.mxu0 %v1265
      %1850 = vmatpush.msra.mxu0 %v1264
      %1851 = vmatpush.msra.mxu0 %v1263
      %1852 = vmatpush.msra.mxu0 %v1262
      %1853 = vmatpush.msra.mxu0 %v1261
      %1854 = vmatpush.msra.mxu0 %v1260
      %1855 = vmatmul.f32.gmra.mxu0 %v955
      %v1856 = vpop.f32.mrf.mxu0
      %v1857 = vadd.f32 %v1816, %v1856
      %1858 = vmatmul.f32.gmra.mxu0 %v980
      %v1859 = vpop.f32.mrf.mxu0
      %v1860 = vadd.f32 %v1819, %v1859
      %1861 = vmatmul.f32.gmra.mxu0 %v1005
      %v1862 = vpop.f32.mrf.mxu0
      %v1863 = vadd.f32 %v1822, %v1862
      %1864 = vmatmul.f32.gmra.mxu0 %v1030
      %v1865 = vpop.f32.mrf.mxu0
      %v1866 = vadd.f32 %v1825, %v1865
      %1867 = vmatmul.f32.gmra.mxu0 %v1055
      %v1868 = vpop.f32.mrf.mxu0
      %v1869 = vadd.f32 %v1828, %v1868
      %1870 = vmatmul.f32.gmra.mxu0 %v1080
      %v1871 = vpop.f32.mrf.mxu0
      %v1872 = vadd.f32 %v1831, %v1871
      %1873 = vmatmul.f32.gmra.mxu0 %v1105
      %v1874 = vpop.f32.mrf.mxu0
      %v1875 = vadd.f32 %v1834, %v1874
      %1876 = vmatmul.f32.gmra.mxu0 %v1130
      %v1877 = vpop.f32.mrf.mxu0
      %v1878 = vadd.f32 %v1837, %v1877
      %1879 = vdwg.mxu0
      %1880 = vmatpush.msra.mxu0 %v1291
      %1881 = vmatpush.msra.mxu0 %v1290
      %1882 = vmatpush.msra.mxu0 %v1289
      %1883 = vmatpush.msra.mxu0 %v1288
      %1884 = vmatpush.msra.mxu0 %v1287
      %1885 = vmatpush.msra.mxu0 %v1286
      %1886 = vmatpush.msra.mxu0 %v1285
      %1887 = vmatpush.msra.mxu0 %v1284
      %1888 = vmatpush.msra.mxu0 %v1283
      %1889 = vmatpush.msra.mxu0 %v1282
      %1890 = vmatpush.msra.mxu0 %v1281
      %1891 = vmatpush.msra.mxu0 %v1280
      %1892 = vmatpush.msra.mxu0 %v1279
      %1893 = vmatpush.msra.mxu0 %v1278
      %1894 = vmatpush.msra.mxu0 %v1277
      %1895 = vmatpush.msra.mxu0 %v1276
      %1896 = vmatmul.f32.gmra.mxu0 %v956
      %v1897 = vpop.f32.mrf.mxu0
      %v1898 = vadd.f32 %v1857, %v1897
      %1899 = vmatmul.f32.gmra.mxu0 %v981
      %v1900 = vpop.f32.mrf.mxu0
      %v1901 = vadd.f32 %v1860, %v1900
      %1902 = vmatmul.f32.gmra.mxu0 %v1006
      %v1903 = vpop.f32.mrf.mxu0
      %v1904 = vadd.f32 %v1863, %v1903
      %1905 = vmatmul.f32.gmra.mxu0 %v1031
      %v1906 = vpop.f32.mrf.mxu0
      %v1907 = vadd.f32 %v1866, %v1906
      %1908 = vmatmul.f32.gmra.mxu0 %v1056
      %v1909 = vpop.f32.mrf.mxu0
      %v1910 = vadd.f32 %v1869, %v1909
      %1911 = vmatmul.f32.gmra.mxu0 %v1081
      %v1912 = vpop.f32.mrf.mxu0
      %v1913 = vadd.f32 %v1872, %v1912
      %1914 = vmatmul.f32.gmra.mxu0 %v1106
      %v1915 = vpop.f32.mrf.mxu0
      %v1916 = vadd.f32 %v1875, %v1915
      %1917 = vmatmul.f32.gmra.mxu0 %v1131
      %v1918 = vpop.f32.mrf.mxu0
      %v1919 = vadd.f32 %v1878, %v1918
      %1920 = vdwg.mxu0
      %1921 = vmatpush.msra.mxu0 %v1307
      %1922 = vmatpush.msra.mxu0 %v1306
      %1923 = vmatpush.msra.mxu0 %v1305
      %1924 = vmatpush.msra.mxu0 %v1304
      %1925 = vmatpush.msra.mxu0 %v1303
      %1926 = vmatpush.msra.mxu0 %v1302
      %1927 = vmatpush.msra.mxu0 %v1301
      %1928 = vmatpush.msra.mxu0 %v1300
      %1929 = vmatpush.msra.mxu0 %v1299
      %1930 = vmatpush.msra.mxu0 %v1298
      %1931 = vmatpush.msra.mxu0 %v1297
      %1932 = vmatpush.msra.mxu0 %v1296
      %1933 = vmatpush.msra.mxu0 %v1295
      %1934 = vmatpush.msra.mxu0 %v1294
      %1935 = vmatpush.msra.mxu0 %v1293
      %1936 = vmatpush.msra.mxu0 %v1292
      %1937 = vmatmul.f32.gmra.mxu0 %v957
      %v1938 = vpop.f32.mrf.mxu0
      %v1939 = vadd.f32 %v1898, %v1938
      %1940 = vmatmul.f32.gmra.mxu0 %v982
      %v1941 = vpop.f32.mrf.mxu0
      %v1942 = vadd.f32 %v1901, %v1941
      %1943 = vmatmul.f32.gmra.mxu0 %v1007
      %v1944 = vpop.f32.mrf.mxu0
      %v1945 = vadd.f32 %v1904, %v1944
      %1946 = vmatmul.f32.gmra.mxu0 %v1032
      %v1947 = vpop.f32.mrf.mxu0
      %v1948 = vadd.f32 %v1907, %v1947
      %1949 = vmatmul.f32.gmra.mxu0 %v1057
      %v1950 = vpop.f32.mrf.mxu0
      %v1951 = vadd.f32 %v1910, %v1950
      %1952 = vmatmul.f32.gmra.mxu0 %v1082
      %v1953 = vpop.f32.mrf.mxu0
      %v1954 = vadd.f32 %v1913, %v1953
      %1955 = vmatmul.f32.gmra.mxu0 %v1107
      %v1956 = vpop.f32.mrf.mxu0
      %v1957 = vadd.f32 %v1916, %v1956
      %1958 = vmatmul.f32.gmra.mxu0 %v1132
      %v1959 = vpop.f32.mrf.mxu0
      %v1960 = vadd.f32 %v1919, %v1959
      %1961 = vdwg.mxu0
      %1962 = vmatpush.msra.mxu0 %v1323
      %1963 = vmatpush.msra.mxu0 %v1322
      %1964 = vmatpush.msra.mxu0 %v1321
      %1965 = vmatpush.msra.mxu0 %v1320
      %1966 = vmatpush.msra.mxu0 %v1319
      %1967 = vmatpush.msra.mxu0 %v1318
      %1968 = vmatpush.msra.mxu0 %v1317
      %1969 = vmatpush.msra.mxu0 %v1316
      %1970 = vmatpush.msra.mxu0 %v1315
      %1971 = vmatpush.msra.mxu0 %v1314
      %1972 = vmatpush.msra.mxu0 %v1313
      %1973 = vmatpush.msra.mxu0 %v1312
      %1974 = vmatpush.msra.mxu0 %v1311
      %1975 = vmatpush.msra.mxu0 %v1310
      %1976 = vmatpush.msra.mxu0 %v1309
      %1977 = vmatpush.msra.mxu0 %v1308
      %1978 = vmatmul.f32.gmra.mxu0 %v958
      %v1979 = vpop.f32.mrf.mxu0
      %v1980 = vadd.f32 %v1939, %v1979
      %1981 = vmatmul.f32.gmra.mxu0 %v983
      %v1982 = vpop.f32.mrf.mxu0
      %v1983 = vadd.f32 %v1942, %v1982
      %1984 = vmatmul.f32.gmra.mxu0 %v1008
      %v1985 = vpop.f32.mrf.mxu0
      %v1986 = vadd.f32 %v1945, %v1985
      %1987 = vmatmul.f32.gmra.mxu0 %v1033
      %v1988 = vpop.f32.mrf.mxu0
      %v1989 = vadd.f32 %v1948, %v1988
      %1990 = vmatmul.f32.gmra.mxu0 %v1058
      %v1991 = vpop.f32.mrf.mxu0
      %v1992 = vadd.f32 %v1951, %v1991
      %1993 = vmatmul.f32.gmra.mxu0 %v1083
      %v1994 = vpop.f32.mrf.mxu0
      %v1995 = vadd.f32 %v1954, %v1994
      %1996 = vmatmul.f32.gmra.mxu0 %v1108
      %v1997 = vpop.f32.mrf.mxu0
      %v1998 = vadd.f32 %v1957, %v1997
      %1999 = vmatmul.f32.gmra.mxu0 %v1133
      %v2000 = vpop.f32.mrf.mxu0
      %v2001 = vadd.f32 %v1960, %v2000
      %2002 = vdwg.mxu0
      %2003 = vmatpush.msra.mxu0 %v1339
      %2004 = vmatpush.msra.mxu0 %v1338
      %2005 = vmatpush.msra.mxu0 %v1337
      %2006 = vmatpush.msra.mxu0 %v1336
      %2007 = vmatpush.msra.mxu0 %v1335
      %2008 = vmatpush.msra.mxu0 %v1334
      %2009 = vmatpush.msra.mxu0 %v1333
      %2010 = vmatpush.msra.mxu0 %v1332
      %2011 = vmatpush.msra.mxu0 %v1331
      %2012 = vmatpush.msra.mxu0 %v1330
      %2013 = vmatpush.msra.mxu0 %v1329
      %2014 = vmatpush.msra.mxu0 %v1328
      %2015 = vmatpush.msra.mxu0 %v1327
      %2016 = vmatpush.msra.mxu0 %v1326
      %2017 = vmatpush.msra.mxu0 %v1325
      %2018 = vmatpush.msra.mxu0 %v1324
      %2019 = vmatmul.f32.gmra.mxu0 %v959
      %v2020 = vpop.f32.mrf.mxu0
      %v2021 = vadd.f32 %v1980, %v2020
      %2022 = vmatmul.f32.gmra.mxu0 %v984
      %v2023 = vpop.f32.mrf.mxu0
      %v2024 = vadd.f32 %v1983, %v2023
      %2025 = vmatmul.f32.gmra.mxu0 %v1009
      %v2026 = vpop.f32.mrf.mxu0
      %v2027 = vadd.f32 %v1986, %v2026
      %2028 = vmatmul.f32.gmra.mxu0 %v1034
      %v2029 = vpop.f32.mrf.mxu0
      %v2030 = vadd.f32 %v1989, %v2029
      %2031 = vmatmul.f32.gmra.mxu0 %v1059
      %v2032 = vpop.f32.mrf.mxu0
      %v2033 = vadd.f32 %v1992, %v2032
      %2034 = vmatmul.f32.gmra.mxu0 %v1084
      %v2035 = vpop.f32.mrf.mxu0
      %v2036 = vadd.f32 %v1995, %v2035
      %2037 = vmatmul.f32.gmra.mxu0 %v1109
      %v2038 = vpop.f32.mrf.mxu0
      %v2039 = vadd.f32 %v1998, %v2038
      %2040 = vmatmul.f32.gmra.mxu0 %v1134
      %v2041 = vpop.f32.mrf.mxu0
      %v2042 = vadd.f32 %v2001, %v2041
      %2043 = vdwg.mxu0
      %2044 = vmatpush.msra.mxu0 %v1355
      %2045 = vmatpush.msra.mxu0 %v1354
      %2046 = vmatpush.msra.mxu0 %v1353
      %2047 = vmatpush.msra.mxu0 %v1352
      %2048 = vmatpush.msra.mxu0 %v1351
      %2049 = vmatpush.msra.mxu0 %v1350
      %2050 = vmatpush.msra.mxu0 %v1349
      %2051 = vmatpush.msra.mxu0 %v1348
      %2052 = vmatpush.msra.mxu0 %v1347
      %2053 = vmatpush.msra.mxu0 %v1346
      %2054 = vmatpush.msra.mxu0 %v1345
      %2055 = vmatpush.msra.mxu0 %v1344
      %2056 = vmatpush.msra.mxu0 %v1343
      %2057 = vmatpush.msra.mxu0 %v1342
      %2058 = vmatpush.msra.mxu0 %v1341
      %2059 = vmatpush.msra.mxu0 %v1340
      %2060 = vmatmul.f32.gmra.mxu0 %v960
      %v2061 = vpop.f32.mrf.mxu0
      %v2062 = vadd.f32 %v2021, %v2061
      %2063 = vmatmul.f32.gmra.mxu0 %v985
      %v2064 = vpop.f32.mrf.mxu0
      %v2065 = vadd.f32 %v2024, %v2064
      %2066 = vmatmul.f32.gmra.mxu0 %v1010
      %v2067 = vpop.f32.mrf.mxu0
      %v2068 = vadd.f32 %v2027, %v2067
      %2069 = vmatmul.f32.gmra.mxu0 %v1035
      %v2070 = vpop.f32.mrf.mxu0
      %v2071 = vadd.f32 %v2030, %v2070
      %2072 = vmatmul.f32.gmra.mxu0 %v1060
      %v2073 = vpop.f32.mrf.mxu0
      %v2074 = vadd.f32 %v2033, %v2073
      %2075 = vmatmul.f32.gmra.mxu0 %v1085
      %v2076 = vpop.f32.mrf.mxu0
      %v2077 = vadd.f32 %v2036, %v2076
      %2078 = vmatmul.f32.gmra.mxu0 %v1110
      %v2079 = vpop.f32.mrf.mxu0
      %v2080 = vadd.f32 %v2039, %v2079
      %2081 = vmatmul.f32.gmra.mxu0 %v1135
      %v2082 = vpop.f32.mrf.mxu0
      %v2083 = vadd.f32 %v2042, %v2082
      %2084 = vdwg.mxu0
      %2085 = vmatpush.msra.mxu0 %v1371
      %2086 = vmatpush.msra.mxu0 %v1370
      %2087 = vmatpush.msra.mxu0 %v1369
      %2088 = vmatpush.msra.mxu0 %v1368
      %2089 = vmatpush.msra.mxu0 %v1367
      %2090 = vmatpush.msra.mxu0 %v1366
      %2091 = vmatpush.msra.mxu0 %v1365
      %2092 = vmatpush.msra.mxu0 %v1364
      %2093 = vmatpush.msra.mxu0 %v1363
      %2094 = vmatpush.msra.mxu0 %v1362
      %2095 = vmatpush.msra.mxu0 %v1361
      %2096 = vmatpush.msra.mxu0 %v1360
      %2097 = vmatpush.msra.mxu0 %v1359
      %2098 = vmatpush.msra.mxu0 %v1358
      %2099 = vmatpush.msra.mxu0 %v1357
      %2100 = vmatpush.msra.mxu0 %v1356
      %2101 = vmatmul.f32.gmra.mxu0 %v961
      %v2102 = vpop.f32.mrf.mxu0
      %v2103 = vadd.f32 %v2062, %v2102
      %2104 = vmatmul.f32.gmra.mxu0 %v986
      %v2105 = vpop.f32.mrf.mxu0
      %v2106 = vadd.f32 %v2065, %v2105
      %2107 = vmatmul.f32.gmra.mxu0 %v1011
      %v2108 = vpop.f32.mrf.mxu0
      %v2109 = vadd.f32 %v2068, %v2108
      %2110 = vmatmul.f32.gmra.mxu0 %v1036
      %v2111 = vpop.f32.mrf.mxu0
      %v2112 = vadd.f32 %v2071, %v2111
      %2113 = vmatmul.f32.gmra.mxu0 %v1061
      %v2114 = vpop.f32.mrf.mxu0
      %v2115 = vadd.f32 %v2074, %v2114
      %2116 = vmatmul.f32.gmra.mxu0 %v1086
      %v2117 = vpop.f32.mrf.mxu0
      %v2118 = vadd.f32 %v2077, %v2117
      %2119 = vmatmul.f32.gmra.mxu0 %v1111
      %v2120 = vpop.f32.mrf.mxu0
      %v2121 = vadd.f32 %v2080, %v2120
      %2122 = vmatmul.f32.gmra.mxu0 %v1136
      %v2123 = vpop.f32.mrf.mxu0
      %v2124 = vadd.f32 %v2083, %v2123
      %2125 = vdwg.mxu0
      %2126 = vmatpush.msra.mxu0 %v1387
      %2127 = vmatpush.msra.mxu0 %v1386
      %2128 = vmatpush.msra.mxu0 %v1385
      %2129 = vmatpush.msra.mxu0 %v1384
      %2130 = vmatpush.msra.mxu0 %v1383
      %2131 = vmatpush.msra.mxu0 %v1382
      %2132 = vmatpush.msra.mxu0 %v1381
      %2133 = vmatpush.msra.mxu0 %v1380
      %2134 = vmatpush.msra.mxu0 %v1379
      %2135 = vmatpush.msra.mxu0 %v1378
      %2136 = vmatpush.msra.mxu0 %v1377
      %2137 = vmatpush.msra.mxu0 %v1376
      %2138 = vmatpush.msra.mxu0 %v1375
      %2139 = vmatpush.msra.mxu0 %v1374
      %2140 = vmatpush.msra.mxu0 %v1373
      %2141 = vmatpush.msra.mxu0 %v1372
      %2142 = vmatmul.f32.gmra.mxu0 %v962
      %v2143 = vpop.f32.mrf.mxu0
      %v2144 = vadd.f32 %v2103, %v2143
      %2145 = vmatmul.f32.gmra.mxu0 %v987
      %v2146 = vpop.f32.mrf.mxu0
      %v2147 = vadd.f32 %v2106, %v2146
      %2148 = vmatmul.f32.gmra.mxu0 %v1012
      %v2149 = vpop.f32.mrf.mxu0
      %v2150 = vadd.f32 %v2109, %v2149
      %2151 = vmatmul.f32.gmra.mxu0 %v1037
      %v2152 = vpop.f32.mrf.mxu0
      %v2153 = vadd.f32 %v2112, %v2152
      %2154 = vmatmul.f32.gmra.mxu0 %v1062
      %v2155 = vpop.f32.mrf.mxu0
      %v2156 = vadd.f32 %v2115, %v2155
      %2157 = vmatmul.f32.gmra.mxu0 %v1087
      %v2158 = vpop.f32.mrf.mxu0
      %v2159 = vadd.f32 %v2118, %v2158
      %2160 = vmatmul.f32.gmra.mxu0 %v1112
      %v2161 = vpop.f32.mrf.mxu0
      %v2162 = vadd.f32 %v2121, %v2161
      %2163 = vmatmul.f32.gmra.mxu0 %v1137
      %v2164 = vpop.f32.mrf.mxu0
      %v2165 = vadd.f32 %v2124, %v2164
      %2166 = vdwg.mxu0
      %2167 = vmatpush.msra.mxu0 %v1403
      %2168 = vmatpush.msra.mxu0 %v1402
      %2169 = vmatpush.msra.mxu0 %v1401
      %2170 = vmatpush.msra.mxu0 %v1400
      %2171 = vmatpush.msra.mxu0 %v1399
      %2172 = vmatpush.msra.mxu0 %v1398
      %2173 = vmatpush.msra.mxu0 %v1397
      %2174 = vmatpush.msra.mxu0 %v1396
      %2175 = vmatpush.msra.mxu0 %v1395
      %2176 = vmatpush.msra.mxu0 %v1394
      %2177 = vmatpush.msra.mxu0 %v1393
      %2178 = vmatpush.msra.mxu0 %v1392
      %2179 = vmatpush.msra.mxu0 %v1391
      %2180 = vmatpush.msra.mxu0 %v1390
      %2181 = vmatpush.msra.mxu0 %v1389
      %2182 = vmatpush.msra.mxu0 %v1388
      %2183 = vmatmul.f32.gmra.mxu0 %v963
      %v2184 = vpop.f32.mrf.mxu0
      %v2185 = vadd.f32 %v2144, %v2184
      %2186 = vmatmul.f32.gmra.mxu0 %v988
      %v2187 = vpop.f32.mrf.mxu0
      %v2188 = vadd.f32 %v2147, %v2187
      %2189 = vmatmul.f32.gmra.mxu0 %v1013
      %v2190 = vpop.f32.mrf.mxu0
      %v2191 = vadd.f32 %v2150, %v2190
      %2192 = vmatmul.f32.gmra.mxu0 %v1038
      %v2193 = vpop.f32.mrf.mxu0
      %v2194 = vadd.f32 %v2153, %v2193
      %2195 = vmatmul.f32.gmra.mxu0 %v1063
      %v2196 = vpop.f32.mrf.mxu0
      %v2197 = vadd.f32 %v2156, %v2196
      %2198 = vmatmul.f32.gmra.mxu0 %v1088
      %v2199 = vpop.f32.mrf.mxu0
      %v2200 = vadd.f32 %v2159, %v2199
      %2201 = vmatmul.f32.gmra.mxu0 %v1113
      %v2202 = vpop.f32.mrf.mxu0
      %v2203 = vadd.f32 %v2162, %v2202
      %2204 = vmatmul.f32.gmra.mxu0 %v1138
      %v2205 = vpop.f32.mrf.mxu0
      %v2206 = vadd.f32 %v2165, %v2205
      %2207 = vdwg.mxu0
      %2208 = vmatpush.msra.mxu0 %v1419
      %2209 = vmatpush.msra.mxu0 %v1418
      %2210 = vmatpush.msra.mxu0 %v1417
      %2211 = vmatpush.msra.mxu0 %v1416
      %2212 = vmatpush.msra.mxu0 %v1415
      %2213 = vmatpush.msra.mxu0 %v1414
      %2214 = vmatpush.msra.mxu0 %v1413
      %2215 = vmatpush.msra.mxu0 %v1412
      %2216 = vmatpush.msra.mxu0 %v1411
      %2217 = vmatpush.msra.mxu0 %v1410
      %2218 = vmatpush.msra.mxu0 %v1409
      %2219 = vmatpush.msra.mxu0 %v1408
      %2220 = vmatpush.msra.mxu0 %v1407
      %2221 = vmatpush.msra.mxu0 %v1406
      %2222 = vmatpush.msra.mxu0 %v1405
      %2223 = vmatpush.msra.mxu0 %v1404
      %2224 = vmatmul.f32.gmra.mxu0 %v964
      %v2225 = vpop.f32.mrf.mxu0
      %v2226 = vadd.f32 %v2185, %v2225
      %2227 = vmatmul.f32.gmra.mxu0 %v989
      %v2228 = vpop.f32.mrf.mxu0
      %v2229 = vadd.f32 %v2188, %v2228
      %2230 = vmatmul.f32.gmra.mxu0 %v1014
      %v2231 = vpop.f32.mrf.mxu0
      %v2232 = vadd.f32 %v2191, %v2231
      %2233 = vmatmul.f32.gmra.mxu0 %v1039
      %v2234 = vpop.f32.mrf.mxu0
      %v2235 = vadd.f32 %v2194, %v2234
      %2236 = vmatmul.f32.gmra.mxu0 %v1064
      %v2237 = vpop.f32.mrf.mxu0
      %v2238 = vadd.f32 %v2197, %v2237
      %2239 = vmatmul.f32.gmra.mxu0 %v1089
      %v2240 = vpop.f32.mrf.mxu0
      %v2241 = vadd.f32 %v2200, %v2240
      %2242 = vmatmul.f32.gmra.mxu0 %v1114
      %v2243 = vpop.f32.mrf.mxu0
      %v2244 = vadd.f32 %v2203, %v2243
      %2245 = vmatmul.f32.gmra.mxu0 %v1139
      %v2246 = vpop.f32.mrf.mxu0
      %v2247 = vadd.f32 %v2206, %v2246
      %2248 = vdwg.mxu0
      %2249 = vmatpush.msra.mxu0 %v1435
      %2250 = vmatpush.msra.mxu0 %v1434
      %2251 = vmatpush.msra.mxu0 %v1433
      %2252 = vmatpush.msra.mxu0 %v1432
      %2253 = vmatpush.msra.mxu0 %v1431
      %2254 = vmatpush.msra.mxu0 %v1430
      %2255 = vmatpush.msra.mxu0 %v1429
      %2256 = vmatpush.msra.mxu0 %v1428
      %2257 = vmatpush.msra.mxu0 %v1427
      %2258 = vmatpush.msra.mxu0 %v1426
      %2259 = vmatpush.msra.mxu0 %v1425
      %2260 = vmatpush.msra.mxu0 %v1424
      %2261 = vmatpush.msra.mxu0 %v1423
      %2262 = vmatpush.msra.mxu0 %v1422
      %2263 = vmatpush.msra.mxu0 %v1421
      %2264 = vmatpush.msra.mxu0 %v1420
      %2265 = vmatmul.f32.gmra.mxu0 %v965
      %v2266 = vpop.f32.mrf.mxu0
      %v2267 = vadd.f32 %v2226, %v2266
      %2268 = vmatmul.f32.gmra.mxu0 %v990
      %v2269 = vpop.f32.mrf.mxu0
      %v2270 = vadd.f32 %v2229, %v2269
      %2271 = vmatmul.f32.gmra.mxu0 %v1015
      %v2272 = vpop.f32.mrf.mxu0
      %v2273 = vadd.f32 %v2232, %v2272
      %2274 = vmatmul.f32.gmra.mxu0 %v1040
      %v2275 = vpop.f32.mrf.mxu0
      %v2276 = vadd.f32 %v2235, %v2275
      %2277 = vmatmul.f32.gmra.mxu0 %v1065
      %v2278 = vpop.f32.mrf.mxu0
      %v2279 = vadd.f32 %v2238, %v2278
      %2280 = vmatmul.f32.gmra.mxu0 %v1090
      %v2281 = vpop.f32.mrf.mxu0
      %v2282 = vadd.f32 %v2241, %v2281
      %2283 = vmatmul.f32.gmra.mxu0 %v1115
      %v2284 = vpop.f32.mrf.mxu0
      %v2285 = vadd.f32 %v2244, %v2284
      %2286 = vmatmul.f32.gmra.mxu0 %v1140
      %v2287 = vpop.f32.mrf.mxu0
      %v2288 = vadd.f32 %v2247, %v2287
      %2289 = vdwg.mxu0
      %2290 = vmatpush.msra.mxu0 %v1451
      %2291 = vmatpush.msra.mxu0 %v1450
      %2292 = vmatpush.msra.mxu0 %v1449
      %2293 = vmatpush.msra.mxu0 %v1448
      %2294 = vmatpush.msra.mxu0 %v1447
      %2295 = vmatpush.msra.mxu0 %v1446
      %2296 = vmatpush.msra.mxu0 %v1445
      %2297 = vmatpush.msra.mxu0 %v1444
      %2298 = vmatpush.msra.mxu0 %v1443
      %2299 = vmatpush.msra.mxu0 %v1442
      %2300 = vmatpush.msra.mxu0 %v1441
      %2301 = vmatpush.msra.mxu0 %v1440
      %2302 = vmatpush.msra.mxu0 %v1439
      %2303 = vmatpush.msra.mxu0 %v1438
      %2304 = vmatpush.msra.mxu0 %v1437
      %2305 = vmatpush.msra.mxu0 %v1436
      %2306 = vmatmul.f32.gmra.mxu0 %v966
      %v2307 = vpop.f32.mrf.mxu0
      %v2308 = vadd.f32 %v2267, %v2307
      %2309 = vmatmul.f32.gmra.mxu0 %v991
      %v2310 = vpop.f32.mrf.mxu0
      %v2311 = vadd.f32 %v2270, %v2310
      %2312 = vmatmul.f32.gmra.mxu0 %v1016
      %v2313 = vpop.f32.mrf.mxu0
      %v2314 = vadd.f32 %v2273, %v2313
      %2315 = vmatmul.f32.gmra.mxu0 %v1041
      %v2316 = vpop.f32.mrf.mxu0
      %v2317 = vadd.f32 %v2276, %v2316
      %2318 = vmatmul.f32.gmra.mxu0 %v1066
      %v2319 = vpop.f32.mrf.mxu0
      %v2320 = vadd.f32 %v2279, %v2319
      %2321 = vmatmul.f32.gmra.mxu0 %v1091
      %v2322 = vpop.f32.mrf.mxu0
      %v2323 = vadd.f32 %v2282, %v2322
      %2324 = vmatmul.f32.gmra.mxu0 %v1116
      %v2325 = vpop.f32.mrf.mxu0
      %v2326 = vadd.f32 %v2285, %v2325
      %2327 = vmatmul.f32.gmra.mxu0 %v1141
      %v2328 = vpop.f32.mrf.mxu0
      %v2329 = vadd.f32 %v2288, %v2328
      %2330 = vdwg.mxu0
      %2331 = vmatpush.msra.mxu0 %v1467
      %2332 = vmatpush.msra.mxu0 %v1466
      %2333 = vmatpush.msra.mxu0 %v1465
      %2334 = vmatpush.msra.mxu0 %v1464
      %2335 = vmatpush.msra.mxu0 %v1463
      %2336 = vmatpush.msra.mxu0 %v1462
      %2337 = vmatpush.msra.mxu0 %v1461
      %2338 = vmatpush.msra.mxu0 %v1460
      %2339 = vmatpush.msra.mxu0 %v1459
      %2340 = vmatpush.msra.mxu0 %v1458
      %2341 = vmatpush.msra.mxu0 %v1457
      %2342 = vmatpush.msra.mxu0 %v1456
      %2343 = vmatpush.msra.mxu0 %v1455
      %2344 = vmatpush.msra.mxu0 %v1454
      %2345 = vmatpush.msra.mxu0 %v1453
      %2346 = vmatpush.msra.mxu0 %v1452
      %2347 = vmatmul.f32.gmra.mxu0 %v967
      %v2348 = vpop.f32.mrf.mxu0
      %v2349 = vadd.f32 %v2308, %v2348
      %2350 = vmatmul.f32.gmra.mxu0 %v992
      %v2351 = vpop.f32.mrf.mxu0
      %v2352 = vadd.f32 %v2311, %v2351
      %2353 = vmatmul.f32.gmra.mxu0 %v1017
      %v2354 = vpop.f32.mrf.mxu0
      %v2355 = vadd.f32 %v2314, %v2354
      %2356 = vmatmul.f32.gmra.mxu0 %v1042
      %v2357 = vpop.f32.mrf.mxu0
      %v2358 = vadd.f32 %v2317, %v2357
      %2359 = vmatmul.f32.gmra.mxu0 %v1067
      %v2360 = vpop.f32.mrf.mxu0
      %v2361 = vadd.f32 %v2320, %v2360
      %2362 = vmatmul.f32.gmra.mxu0 %v1092
      %v2363 = vpop.f32.mrf.mxu0
      %v2364 = vadd.f32 %v2323, %v2363
      %2365 = vmatmul.f32.gmra.mxu0 %v1117
      %v2366 = vpop.f32.mrf.mxu0
      %v2367 = vadd.f32 %v2326, %v2366
      %2368 = vmatmul.f32.gmra.mxu0 %v1142
      %v2369 = vpop.f32.mrf.mxu0
      %v2370 = vadd.f32 %v2329, %v2369
      %2371 = vdwg.mxu0
      %2372 = vmatpush.msra.mxu0 %v1483
      %2373 = vmatpush.msra.mxu0 %v1482
      %2374 = vmatpush.msra.mxu0 %v1481
      %2375 = vmatpush.msra.mxu0 %v1480
      %2376 = vmatpush.msra.mxu0 %v1479
      %2377 = vmatpush.msra.mxu0 %v1478
      %2378 = vmatpush.msra.mxu0 %v1477
      %2379 = vmatpush.msra.mxu0 %v1476
      %2380 = vmatpush.msra.mxu0 %v1475
      %2381 = vmatpush.msra.mxu0 %v1474
      %2382 = vmatpush.msra.mxu0 %v1473
      %2383 = vmatpush.msra.mxu0 %v1472
      %2384 = vmatpush.msra.mxu0 %v1471
      %2385 = vmatpush.msra.mxu0 %v1470
      %2386 = vmatpush.msra.mxu0 %v1469
      %2387 = vmatpush.msra.mxu0 %v1468
      %2388 = vmatmul.f32.gmra.mxu0 %v968
      %v2389 = vpop.f32.mrf.mxu0
      %v2390 = vadd.f32 %v2349, %v2389
      %2391 = vmatmul.f32.gmra.mxu0 %v993
      %v2392 = vpop.f32.mrf.mxu0
      %v2393 = vadd.f32 %v2352, %v2392
      %2394 = vmatmul.f32.gmra.mxu0 %v1018
      %v2395 = vpop.f32.mrf.mxu0
      %v2396 = vadd.f32 %v2355, %v2395
      %2397 = vmatmul.f32.gmra.mxu0 %v1043
      %v2398 = vpop.f32.mrf.mxu0
      %v2399 = vadd.f32 %v2358, %v2398
      %2400 = vmatmul.f32.gmra.mxu0 %v1068
      %v2401 = vpop.f32.mrf.mxu0
      %v2402 = vadd.f32 %v2361, %v2401
      %2403 = vmatmul.f32.gmra.mxu0 %v1093
      %v2404 = vpop.f32.mrf.mxu0
      %v2405 = vadd.f32 %v2364, %v2404
      %2406 = vmatmul.f32.gmra.mxu0 %v1118
      %v2407 = vpop.f32.mrf.mxu0
      %v2408 = vadd.f32 %v2367, %v2407
      %2409 = vmatmul.f32.gmra.mxu0 %v1143
      %v2410 = vpop.f32.mrf.mxu0
      %v2411 = vadd.f32 %v2370, %v2410
      %2412 = vdwg.mxu0
      %2413 = vmatpush.msra.mxu0 %v1499
      %2414 = vmatpush.msra.mxu0 %v1498
      %2415 = vmatpush.msra.mxu0 %v1497
      %2416 = vmatpush.msra.mxu0 %v1496
      %2417 = vmatpush.msra.mxu0 %v1495
      %2418 = vmatpush.msra.mxu0 %v1494
      %2419 = vmatpush.msra.mxu0 %v1493
      %2420 = vmatpush.msra.mxu0 %v1492
      %2421 = vmatpush.msra.mxu0 %v1491
      %2422 = vmatpush.msra.mxu0 %v1490
      %2423 = vmatpush.msra.mxu0 %v1489
      %2424 = vmatpush.msra.mxu0 %v1488
      %2425 = vmatpush.msra.mxu0 %v1487
      %2426 = vmatpush.msra.mxu0 %v1486
      %2427 = vmatpush.msra.mxu0 %v1485
      %2428 = vmatpush.msra.mxu0 %v1484
      %2429 = vmatmul.f32.gmra.mxu0 %v969
      %v2430 = vpop.f32.mrf.mxu0
      %v2431 = vadd.f32 %v2390, %v2430
      %2432 = vmatmul.f32.gmra.mxu0 %v994
      %v2433 = vpop.f32.mrf.mxu0
      %v2434 = vadd.f32 %v2393, %v2433
      %2435 = vmatmul.f32.gmra.mxu0 %v1019
      %v2436 = vpop.f32.mrf.mxu0
      %v2437 = vadd.f32 %v2396, %v2436
      %2438 = vmatmul.f32.gmra.mxu0 %v1044
      %v2439 = vpop.f32.mrf.mxu0
      %v2440 = vadd.f32 %v2399, %v2439
      %2441 = vmatmul.f32.gmra.mxu0 %v1069
      %v2442 = vpop.f32.mrf.mxu0
      %v2443 = vadd.f32 %v2402, %v2442
      %2444 = vmatmul.f32.gmra.mxu0 %v1094
      %v2445 = vpop.f32.mrf.mxu0
      %v2446 = vadd.f32 %v2405, %v2445
      %2447 = vmatmul.f32.gmra.mxu0 %v1119
      %v2448 = vpop.f32.mrf.mxu0
      %v2449 = vadd.f32 %v2408, %v2448
      %2450 = vmatmul.f32.gmra.mxu0 %v1144
      %v2451 = vpop.f32.mrf.mxu0
      %v2452 = vadd.f32 %v2411, %v2451
      %2453 = vdwg.mxu0
      %2454 = vmatpush.msra.mxu0 %v1515
      %2455 = vmatpush.msra.mxu0 %v1514
      %2456 = vmatpush.msra.mxu0 %v1513
      %2457 = vmatpush.msra.mxu0 %v1512
      %2458 = vmatpush.msra.mxu0 %v1511
      %2459 = vmatpush.msra.mxu0 %v1510
      %2460 = vmatpush.msra.mxu0 %v1509
      %2461 = vmatpush.msra.mxu0 %v1508
      %2462 = vmatpush.msra.mxu0 %v1507
      %2463 = vmatpush.msra.mxu0 %v1506
      %2464 = vmatpush.msra.mxu0 %v1505
      %2465 = vmatpush.msra.mxu0 %v1504
      %2466 = vmatpush.msra.mxu0 %v1503
      %2467 = vmatpush.msra.mxu0 %v1502
      %2468 = vmatpush.msra.mxu0 %v1501
      %2469 = vmatpush.msra.mxu0 %v1500
      %2470 = vmatmul.f32.gmra.mxu0 %v970
      %v2471 = vpop.f32.mrf.mxu0
      %v2472 = vadd.f32 %v2431, %v2471
      %2473 = vmatmul.f32.gmra.mxu0 %v995
      %v2474 = vpop.f32.mrf.mxu0
      %v2475 = vadd.f32 %v2434, %v2474
      %2476 = vmatmul.f32.gmra.mxu0 %v1020
      %v2477 = vpop.f32.mrf.mxu0
      %v2478 = vadd.f32 %v2437, %v2477
      %2479 = vmatmul.f32.gmra.mxu0 %v1045
      %v2480 = vpop.f32.mrf.mxu0
      %v2481 = vadd.f32 %v2440, %v2480
      %2482 = vmatmul.f32.gmra.mxu0 %v1070
      %v2483 = vpop.f32.mrf.mxu0
      %v2484 = vadd.f32 %v2443, %v2483
      %2485 = vmatmul.f32.gmra.mxu0 %v1095
      %v2486 = vpop.f32.mrf.mxu0
      %v2487 = vadd.f32 %v2446, %v2486
      %2488 = vmatmul.f32.gmra.mxu0 %v1120
      %v2489 = vpop.f32.mrf.mxu0
      %v2490 = vadd.f32 %v2449, %v2489
      %2491 = vmatmul.f32.gmra.mxu0 %v1145
      %v2492 = vpop.f32.mrf.mxu0
      %v2493 = vadd.f32 %v2452, %v2492
      %2494 = vdwg.mxu0
      %2495 = vmatpush.msra.mxu0 %v1531
      %2496 = vmatpush.msra.mxu0 %v1530
      %2497 = vmatpush.msra.mxu0 %v1529
      %2498 = vmatpush.msra.mxu0 %v1528
      %2499 = vmatpush.msra.mxu0 %v1527
      %2500 = vmatpush.msra.mxu0 %v1526
      %2501 = vmatpush.msra.mxu0 %v1525
      %2502 = vmatpush.msra.mxu0 %v1524
      %2503 = vmatpush.msra.mxu0 %v1523
      %2504 = vmatpush.msra.mxu0 %v1522
      %2505 = vmatpush.msra.mxu0 %v1521
      %2506 = vmatpush.msra.mxu0 %v1520
      %2507 = vmatpush.msra.mxu0 %v1519
      %2508 = vmatpush.msra.mxu0 %v1518
      %2509 = vmatpush.msra.mxu0 %v1517
      %2510 = vmatpush.msra.mxu0 %v1516
      %2511 = vmatmul.f32.gmra.mxu0 %v971
      %v2512 = vpop.f32.mrf.mxu0
      %v2513 = vadd.f32 %v2472, %v2512
      %2514 = vmatmul.f32.gmra.mxu0 %v996
      %v2515 = vpop.f32.mrf.mxu0
      %v2516 = vadd.f32 %v2475, %v2515
      %2517 = vmatmul.f32.gmra.mxu0 %v1021
      %v2518 = vpop.f32.mrf.mxu0
      %v2519 = vadd.f32 %v2478, %v2518
      %2520 = vmatmul.f32.gmra.mxu0 %v1046
      %v2521 = vpop.f32.mrf.mxu0
      %v2522 = vadd.f32 %v2481, %v2521
      %2523 = vmatmul.f32.gmra.mxu0 %v1071
      %v2524 = vpop.f32.mrf.mxu0
      %v2525 = vadd.f32 %v2484, %v2524
      %2526 = vmatmul.f32.gmra.mxu0 %v1096
      %v2527 = vpop.f32.mrf.mxu0
      %v2528 = vadd.f32 %v2487, %v2527
      %2529 = vmatmul.f32.gmra.mxu0 %v1121
      %v2530 = vpop.f32.mrf.mxu0
      %v2531 = vadd.f32 %v2490, %v2530
      %2532 = vmatmul.f32.gmra.mxu0 %v1146
      %v2533 = vpop.f32.mrf.mxu0
      %v2534 = vadd.f32 %v2493, %v2533
      %2535 = vdwg.mxu0
      %2536 = vmatpush.msra.mxu0 %v1547
      %2537 = vmatpush.msra.mxu0 %v1546
      %2538 = vmatpush.msra.mxu0 %v1545
      %2539 = vmatpush.msra.mxu0 %v1544
      %2540 = vmatpush.msra.mxu0 %v1543
      %2541 = vmatpush.msra.mxu0 %v1542
      %2542 = vmatpush.msra.mxu0 %v1541
      %2543 = vmatpush.msra.mxu0 %v1540
      %2544 = vmatpush.msra.mxu0 %v1539
      %2545 = vmatpush.msra.mxu0 %v1538
      %2546 = vmatpush.msra.mxu0 %v1537
      %2547 = vmatpush.msra.mxu0 %v1536
      %2548 = vmatpush.msra.mxu0 %v1535
      %2549 = vmatpush.msra.mxu0 %v1534
      %2550 = vmatpush.msra.mxu0 %v1533
      %2551 = vmatpush.msra.mxu0 %v1532
      %2552 = vmatmul.f32.gmra.mxu0 %v972
      %v2553 = vpop.f32.mrf.mxu0
      %v2554 = vadd.f32 %v2513, %v2553
      %2555 = vmatmul.f32.gmra.mxu0 %v997
      %v2556 = vpop.f32.mrf.mxu0
      %v2557 = vadd.f32 %v2516, %v2556
      %2558 = vmatmul.f32.gmra.mxu0 %v1022
      %v2559 = vpop.f32.mrf.mxu0
      %v2560 = vadd.f32 %v2519, %v2559
      %2561 = vmatmul.f32.gmra.mxu0 %v1047
      %v2562 = vpop.f32.mrf.mxu0
      %v2563 = vadd.f32 %v2522, %v2562
      %2564 = vmatmul.f32.gmra.mxu0 %v1072
      %v2565 = vpop.f32.mrf.mxu0
      %v2566 = vadd.f32 %v2525, %v2565
      %2567 = vmatmul.f32.gmra.mxu0 %v1097
      %v2568 = vpop.f32.mrf.mxu0
      %v2569 = vadd.f32 %v2528, %v2568
      %2570 = vmatmul.f32.gmra.mxu0 %v1122
      %v2571 = vpop.f32.mrf.mxu0
      %v2572 = vadd.f32 %v2531, %v2571
      %2573 = vmatmul.f32.gmra.mxu0 %v1147
      %v2574 = vpop.f32.mrf.mxu0
      %v2575 = vadd.f32 %v2534, %v2574
      %2576 = vdwg.mxu0
      %v2577 = vmax.f32 %v2554, 0.0
      %v2578 = vmax.f32 %v2557, 0.0
      %v2579 = vmax.f32 %v2560, 0.0
      %v2580 = vmax.f32 %v2563, 0.0
      %v2581 = vmax.f32 %v2566, 0.0
      %v2582 = vmax.f32 %v2569, 0.0
      %v2583 = vmax.f32 %v2572, 0.0
      %v2584 = vmax.f32 %v2575, 0.0
      %2585 = vst [vmem:[%s224] sm:$0xff] %v2577
      %2586 = vst [vmem:[%s224 + $0x8] sm:$0xff] %v2578
      %2587 = vst [vmem:[%s224 + $0x10] sm:$0xff] %v2579
      %2588 = vst [vmem:[%s224 + $0x18] sm:$0xff] %v2580
      %2589 = vst [vmem:[%s224 + $0x20] sm:$0xff] %v2581
      %2590 = vst [vmem:[%s224 + $0x28] sm:$0xff] %v2582
      %2591 = vst [vmem:[%s224 + $0x30] sm:$0xff] %v2583
      %2592 = vst [vmem:[%s224 + $0x38] sm:$0xff] %v2584
      %p2593 = scmp.lt.s32.totalorder %s16, 1
      %s2594 = scalar_select %p2593, %s16, 1
      %s2595 = smul.addr %s2594, 8
      %s2596 = smul.addr %s2595, 8
      %s2597 = scalar_lea.vmem %s5, %s2596
      // Predicated region
      $region41: #{model_forward.1} parent=39 // pred_check
        %p2598 = pneg %p144
      $region42: #{model_forward.1} parent=39 // pred_check_branch
        %2600 = sbr.rel (%p2598) target = $region44
      $region43: #{model_forward.1} parent=39 // pred_region
        _
      $region44: #{model_forward.1} parent=39 // pred_fallthru
        _
    $region40: #{model_forward.1} parent=5 // pred_fallthru
      _
    %p2601 = scmp.le.s32.totalorder 2, %s11
    // Predicated region
    $region45: #{model_forward.1} parent=5 // pred_check
      %p2602 = pneg %p2601
    $region46: #{model_forward.1} parent=5 // pred_check_branch
      %2604 = sbr.rel (%p2602) target = $region48
    $region47: #{model_forward.1} parent=5 // pred_region
      %s2605 = ssub.s32 %s11, 2
      // Predicated region
      $region49: #{model_forward.1} parent=47 // pred_check
        %p2606 = pneg %p150
      $region50: #{model_forward.1} parent=47 // pred_check_branch
        %2608 = sbr.rel (%p2606) target = $region52
      $region51: #{model_forward.1} parent=47 // pred_region
        %p2609 = scmp.lt.s32.totalorder %s17, 1
        %s2610 = scalar_select %p2609, %s17, 1
        %s2611 = smul.addr %s2610, 8
        %s2612 = smul.addr %s2611, 8
        %s2613 = scalar_lea.vmem %s5, %s2612
      $region52: #{model_forward.1} parent=47 // pred_fallthru
        _
    $region48: #{model_forward.1} parent=5 // pred_fallthru
      _
  $region6: #{model_forward.1} parent=0 // loop_footer
    %s15 = sadd.s32 1, %s11
  $region7: #{model_forward.1} parent=0 // loop_footer_branch
    %10 = sbr.rel target = $region3
  $region8: #{model_forward.1} parent=0 // loop_exit
    _

</llo_original>
